<compile_context>
chip_gen: v7x
topology: tpu7x:2x2x1
jax: 0.10.0
libtpu: 0.0.40
codegen_flags: <defaults>
</compile_context>

<pallas_src>
import jax
import jax.numpy as jnp
from jax.experimental import pallas as pl
from jax.experimental.pallas import tpu as pltpu

# ----------------------------- config (small synthetic shapes) --------------------
N_CLS = 2                       # len(classnames)
SEQ_LEN = 16                    # tokenized prompt length (<= 77)
CTX_DIM = 32                    # transformer width (clip_model.ln_final dim)
N_HEADS = 4
HEAD_DIM = CTX_DIM // N_HEADS
N_LAYERS = 2
MLP_DIM = 4 * CTX_DIM
EMBED_DIM = 32                  # text_projection output dim
NUM_VIEWS = 2                   # cfg.MODEL.PROJECT.NUM_VIEWS
MAX_POS = 77                    # CLIP positional_embedding rows
VOCAB = 512                     # synthetic vocab
SOT_ID = 1
EOT_ID = VOCAB - 1              # largest id so argmax(tokens) finds the EOT position

LN_EPS = 1e-5
NEG_INF = -1e9


def _layer_norm(v, g, beta):
    mu = jnp.mean(v, axis=-1, keepdims=True)
    vc = v - mu
    var = jnp.mean(vc * vc, axis=-1, keepdims=True)
    return vc * jax.lax.rsqrt(var + LN_EPS) * g + beta


# ----------------------------- fused Pallas kernel --------------------------------
def _text_encoder_kernel(
    eot_ref,                  # SMEM (B,) int32 : EOT position per class (scalar prefetch)
    x_ref,                    # (1, S, D) f32   : token emb + pos emb for class b
    ln1_g_ref, ln1_b_ref,     # (1, 1, D) f32
    wq_ref, bq_ref,           # (1, H, D, hd) bf16 / (1, H, 1, hd) f32
    wk_ref, bk_ref,
    wv_ref, bv_ref,
    wo_ref, bo_ref,           # (1, H, hd, D) bf16 / (1, 1, D) f32
    ln2_g_ref, ln2_b_ref,     # (1, 1, D) f32
    w1_ref, b1_ref,           # (1, D, M) bf16 / (1, 1, M) f32
    w2_ref, b2_ref,           # (1, M, D) bf16 / (1, 1, D) f32
    lnf_g_ref, lnf_b_ref,     # (1, D) f32
    proj_ref,                 # (D, E) bf16
    o_ref,                    # (1, 1, E) f32
    x_sc,                     # VMEM (S, D) f32 : residual stream carried across layers
):
    f32 = jnp.float32
    bf16 = jnp.bfloat16
    b = pl.program_id(0)      # class
    l = pl.program_id(1)      # layer

    # First layer step for this class: load its embeddings into the residual scratch.
    @pl.when(l == 0)
    def _():
        x_sc[...] = x_ref[0]

    x = x_sc[...]                                                  # (S, D) f32

    # ----- causal multi-head self-attention (pre-LN residual) ---------------------
    h = _layer_norm(x, ln1_g_ref[0], ln1_b_ref[0]).astype(bf16)    # (S, D)
    row = jax.lax.broadcasted_iota(jnp.int32, (SEQ_LEN, SEQ_LEN), 0)
    col = jax.lax.broadcasted_iota(jnp.int32, (SEQ_LEN, SEQ_LEN), 1)
    causal = col <= row                                            # (S, S)
    scale = 1.0 / (HEAD_DIM ** 0.5)

    attn = jnp.zeros((SEQ_LEN, CTX_DIM), f32)
    for hh in range(N_HEADS):                                      # static unroll
        q = (jnp.dot(h, wq_ref[0, hh], preferred_element_type=f32)
             + bq_ref[0, hh]) * scale                              # (S, hd)
        k = jnp.dot(h, wk_ref[0, hh], preferred_element_type=f32) + bk_ref[0, hh]
        v = jnp.dot(h, wv_ref[0, hh], preferred_element_type=f32) + bv_ref[0, hh]
        # scores = q @ k.T  (contract last dims, no explicit transpose)
        s = jax.lax.dot_general(q.astype(bf16), k.astype(bf16),
                                (((1,), (1,)), ((), ())),
                                preferred_element_type=f32)        # (S, S)
        s = jnp.where(causal, s, NEG_INF)                          # CLIP causal mask
        s = s - jnp.max(s, axis=-1, keepdims=True)
        p = jnp.exp(s)                                             # softmax in f32
        p = p * pl.reciprocal(jnp.sum(p, axis=-1, keepdims=True), approx=True)
        o = jnp.dot(p.astype(bf16), v.astype(bf16),
                    preferred_element_type=f32)                    # (S, hd)
        # per-head Wo slab accumulation == concat(heads) @ Wo, with no lane concat
        attn = attn + jnp.dot(o.astype(bf16), wo_ref[0, hh],
                              preferred_element_type=f32)          # (S, D)
    x = x + attn + bo_ref[0]                                       # residual (VMEM)

    # ----- MLP (pre-LN residual, QuickGELU) ----------------------------------------
    h2 = _layer_norm(x, ln2_g_ref[0], ln2_b_ref[0]).astype(bf16)
    m = jnp.dot(h2, w1_ref[0], preferred_element_type=f32) + b1_ref[0]       # (S, M)
    m = m * jax.nn.sigmoid(1.702 * m)                              # QuickGELU in f32
    m = jnp.dot(m.astype(bf16), w2_ref[0], preferred_element_type=f32) + b2_ref[0]
    x = x + m
    x_sc[...] = x                                                  # carry to layer l+1

    # ----- last layer: ln_final + EOT-token gather + text_projection ---------------
    @pl.when(l == N_LAYERS - 1)
    def _():
        xf = _layer_norm(x, lnf_g_ref[...], lnf_b_ref[...])        # (S, D)
        pos = eot_ref[b]                                           # SMEM scalar
        sel = jax.lax.broadcasted_iota(jnp.int32, (SEQ_LEN, 1), 0) == pos
        feat = jnp.sum(jnp.where(sel, xf, 0.0), axis=0, keepdims=True)       # (1, D)
        tf = jnp.dot(feat.astype(bf16), proj_ref[...],
                     preferred_element_type=f32)                   # (1, E)
        o_ref[0] = tf.astype(o_ref.dtype)


# ----------------------------- forward wrapper -------------------------------------
@jax.jit
def textual_encoder_forward(params, tokenized_prompts):
    B, S = tokenized_prompts.shape
    D, E, L, H, hd, M = CTX_DIM, EMBED_DIM, N_LAYERS, N_HEADS, HEAD_DIM, MLP_DIM

    # Token-embedding lookup + positional embedding (data-dependent vocab gather
    # stays as XLA glue outside the kernel).
    x0 = (params["token_embedding"][tokenized_prompts]
          + params["pos_emb"][:S][None]).astype(jnp.float32)       # (B, S, D)

    # EOT position = argmax of token ids (EOT is the largest id in CLIP's vocab).
    eot_pos = jnp.argmax(tokenized_prompts, axis=-1).astype(jnp.int32)       # (B,)

    def per_layer(tail):
        return pl.BlockSpec((1,) + tail, lambda b, l, eot: (l,) + (0,) * len(tail))

    def per_class(tail):
        return pl.BlockSpec((1,) + tail, lambda b, l, eot: (b,) + (0,) * len(tail))

    def shared(shape):
        return pl.BlockSpec(shape, lambda b, l, eot: (0,) * len(shape))

    feats = pl.pallas_call(
        _text_encoder_kernel,
        out_shape=jax.ShapeDtypeStruct((B, 1, E), jnp.float32),
        grid_spec=pltpu.PrefetchScalarGridSpec(
            num_scalar_prefetch=1,
            grid=(B, L),                          # classes (parallel) x layers (arbitrary)
            in_specs=[
                per_class((S, D)),                                   # x0
                per_layer((1, D)), per_layer((1, D)),                # ln1 g/b
                per_layer((H, D, hd)), per_layer((H, 1, hd)),        # wq / bq
                per_layer((H, D, hd)), per_layer((H, 1, hd)),        # wk / bk
                per_layer((H, D, hd)), per_layer((H, 1, hd)),        # wv / bv
                per_layer((H, hd, D)), per_layer((1, D)),            # wo / bo
                per_layer((1, D)), per_layer((1, D)),                # ln2 g/b
                per_layer((D, M)), per_layer((1, M)),                # w1 / b1
                per_layer((M, D)), per_layer((1, D)),                # w2 / b2
                shared((1, D)), shared((1, D)),                      # ln_final g/b
                shared((D, E)),                                      # text_projection
            ],
            out_specs=pl.BlockSpec((1, 1, E), lambda b, l, eot: (b, 0, 0)),
            scratch_shapes=[pltpu.VMEM((S, D), jnp.float32)],
        ),
        compiler_params=pltpu.CompilerParams(
            dimension_semantics=("parallel", "arbitrary"),
            vmem_limit_bytes=32 * 1024 * 1024,
        ),
    )(
        eot_pos, x0,
        params["ln1_g"], params["ln1_b"],
        params["wq"], params["bq"],
        params["wk"], params["bk"],
        params["wv"], params["bv"],
        params["wo"], params["bo"],
        params["ln2_g"], params["ln2_b"],
        params["w1"], params["b1"],
        params["w2"], params["b2"],
        params["lnf_g"], params["lnf_b"],
        params["text_projection"],
    )

    feats = feats.reshape(B, E)
    # .repeat(1, NUM_VIEWS): pure data duplication -> near-free XLA tile outside kernel.
    return jnp.tile(feats, (1, NUM_VIEWS))


# ----------------------------- parameters / tokens ---------------------------------
def init_params(key):
    ks = jax.random.split(key, 10)
    f32, bf16 = jnp.float32, jnp.bfloat16
    L, D, M, H, hd, E = N_LAYERS, CTX_DIM, MLP_DIM, N_HEADS, HEAD_DIM, EMBED_DIM

    def nrm(k, shape, std=0.02, dtype=f32):
        return (std * jax.random.normal(k, shape, dtype=f32)).astype(dtype)

    # Matmul weights are stored as bf16 ONCE here (outside jit) and laid out per
    # head so the kernel never lane-slices activations.
    return {
        "token_embedding": nrm(ks[0], (VOCAB, D)),
        "pos_emb": nrm(ks[1], (MAX_POS, D), std=0.01),
        "ln1_g": jnp.ones((L, 1, D), f32),
        "ln1_b": jnp.zeros((L, 1, D), f32),
        "wq": nrm(ks[2], (L, H, D, hd), dtype=bf16),
        "bq": jnp.zeros((L, H, 1, hd), f32),
        "wk": nrm(ks[3], (L, H, D, hd), dtype=bf16),
        "bk": jnp.zeros((L, H, 1, hd), f32),
        "wv": nrm(ks[4], (L, H, D, hd), dtype=bf16),
        "bv": jnp.zeros((L, H, 1, hd), f32),
        "wo": nrm(ks[5], (L, H, hd, D), dtype=bf16),
        "bo": jnp.zeros((L, 1, D), f32),
        "ln2_g": jnp.ones((L, 1, D), f32),
        "ln2_b": jnp.zeros((L, 1, D), f32),
        "w1": nrm(ks[6], (L, D, M), dtype=bf16),
        "b1": jnp.zeros((L, 1, M), f32),
        "w2": nrm(ks[7], (L, M, D), dtype=bf16),
        "b2": jnp.zeros((L, 1, D), f32),
        "lnf_g": jnp.ones((1, D), f32),
        "lnf_b": jnp.zeros((1, D), f32),
        "text_projection": nrm(ks[8], (D, E), dtype=bf16),
    }


def build_tokenized_prompts():
    # TODO(synk): clip.tokenize (BPE tokenizer) has no JAX/Pallas equivalent;
    # deterministic synthetic ids: SOT, body ("point cloud of a big {cls}."),
    # EOT (= max id so argmax finds it), zero padding.
    rows = []
    for i in range(N_CLS):
        body = [2 + j + i for j in range(6 + i)]
        row = [SOT_ID] + body + [EOT_ID]
        row = row + [0] * (SEQ_LEN - len(row))
        rows.append(row[:SEQ_LEN])
    return jnp.array(rows, dtype=jnp.int32)          # (N_CLS, SEQ_LEN)


# ----------------------------- main -------------------------------------------------
if __name__ == "__main__":
    params = init_params(jax.random.PRNGKey(0))
    tokenized_prompts = build_tokenized_prompts()

    out = textual_encoder_forward(params, tokenized_prompts)
    jax.block_until_ready(out)

    assert out.shape == (N_CLS, EMBED_DIM * NUM_VIEWS), out.shape
    assert out.dtype == jnp.float32
    assert bool(jnp.all(jnp.isfinite(out)))
    print("KERNEL_OK")
</pallas_src>

<mosaic_0001>
module attributes {stable_mosaic.version = 11 : i64} {
  func.func @_text_encoder_kernel(%arg0: i32, %arg1: i32, %arg2: memref<2xi32, #tpu.memory_space<smem>>, %arg3: memref<1x16x32xf32, #tpu.memory_space<vmem>>, %arg4: memref<1x1x32xf32, #tpu.memory_space<vmem>>, %arg5: memref<1x1x32xf32, #tpu.memory_space<vmem>>, %arg6: memref<1x4x32x8xbf16, #tpu.memory_space<vmem>>, %arg7: memref<1x4x1x8xf32, #tpu.memory_space<vmem>>, %arg8: memref<1x4x32x8xbf16, #tpu.memory_space<vmem>>, %arg9: memref<1x4x1x8xf32, #tpu.memory_space<vmem>>, %arg10: memref<1x4x32x8xbf16, #tpu.memory_space<vmem>>, %arg11: memref<1x4x1x8xf32, #tpu.memory_space<vmem>>, %arg12: memref<1x4x8x32xbf16, #tpu.memory_space<vmem>>, %arg13: memref<1x1x32xf32, #tpu.memory_space<vmem>>, %arg14: memref<1x1x32xf32, #tpu.memory_space<vmem>>, %arg15: memref<1x1x32xf32, #tpu.memory_space<vmem>>, %arg16: memref<1x32x128xbf16, #tpu.memory_space<vmem>>, %arg17: memref<1x1x128xf32, #tpu.memory_space<vmem>>, %arg18: memref<1x128x32xbf16, #tpu.memory_space<vmem>>, %arg19: memref<1x1x32xf32, #tpu.memory_space<vmem>>, %arg20: memref<1x32xf32, #tpu.memory_space<vmem>>, %arg21: memref<1x32xf32, #tpu.memory_space<vmem>>, %arg22: memref<32x32xbf16, #tpu.memory_space<vmem>>, %arg23: memref<1x1x32xf32, #tpu.memory_space<vmem>>, %arg24: memref<16x32xf32, #tpu.memory_space<vmem>>) attributes {dimension_semantics = [#tpu.dimension_semantics<parallel>, #tpu.dimension_semantics<arbitrary>], iteration_bounds = array<i64: 2, 2>, scalar_prefetch = 1 : i64, scratch_operands = 1 : i64, tpu.core_type = #tpu.core_type<tc>, window_params = [{transform_indices = @transform_0, window_bounds = array<i64: 1, 16, 32>}, {transform_indices = @transform_1, window_bounds = array<i64: 1, 1, 32>}, {transform_indices = @transform_2, window_bounds = array<i64: 1, 1, 32>}, {transform_indices = @transform_3, window_bounds = array<i64: 1, 4, 32, 8>}, {transform_indices = @transform_4, window_bounds = array<i64: 1, 4, 1, 8>}, {transform_indices = @transform_5, window_bounds = array<i64: 1, 4, 32, 8>}, {transform_indices = @transform_6, window_bounds = array<i64: 1, 4, 1, 8>}, {transform_indices = @transform_7, window_bounds = array<i64: 1, 4, 32, 8>}, {transform_indices = @transform_8, window_bounds = array<i64: 1, 4, 1, 8>}, {transform_indices = @transform_9, window_bounds = array<i64: 1, 4, 8, 32>}, {transform_indices = @transform_10, window_bounds = array<i64: 1, 1, 32>}, {transform_indices = @transform_11, window_bounds = array<i64: 1, 1, 32>}, {transform_indices = @transform_12, window_bounds = array<i64: 1, 1, 32>}, {transform_indices = @transform_13, window_bounds = array<i64: 1, 32, 128>}, {transform_indices = @transform_14, window_bounds = array<i64: 1, 1, 128>}, {transform_indices = @transform_15, window_bounds = array<i64: 1, 128, 32>}, {transform_indices = @transform_16, window_bounds = array<i64: 1, 1, 32>}, {pipeline_mode = #tpu.pipeline_mode<synchronous>, transform_indices = @transform_17, window_bounds = array<i64: 1, 32>}, {pipeline_mode = #tpu.pipeline_mode<synchronous>, transform_indices = @transform_18, window_bounds = array<i64: 1, 32>}, {pipeline_mode = #tpu.pipeline_mode<synchronous>, transform_indices = @transform_19, window_bounds = array<i64: 32, 32>}, {transform_indices = @transform_20, window_bounds = array<i64: 1, 1, 32>}]} {
    %c0_i32 = arith.constant 0 : i32
    %0 = arith.cmpi eq, %arg1, %c0_i32 : i32
    %1 = arith.extui %0 : i1 to i32
    %c0_i32_0 = arith.constant 0 : i32
    %2 = arith.cmpi ne, %1, %c0_i32_0 : i32
    scf.if %2 {
      %c0_195 = arith.constant 0 : index
      %c0_196 = arith.constant 0 : index
      %c0_197 = arith.constant 0 : index
      %275 = vector.load %arg3[%c0_195, %c0_196, %c0_197] : memref<1x16x32xf32, #tpu.memory_space<vmem>>, vector<1x16x32xf32>
      %276 = vector.shape_cast %275 : vector<1x16x32xf32> to vector<16x32xf32>
      %c0_198 = arith.constant 0 : index
      %c0_199 = arith.constant 0 : index
      %277 = vector.load %arg24[%c0_198, %c0_199] : memref<16x32xf32, #tpu.memory_space<vmem>>, vector<16x32xf32>
      tpu.vector_store %arg24[%c0_198, %c0_199], %276 {strides = array<i32>} : memref<16x32xf32, #tpu.memory_space<vmem>>, vector<16x32xf32>,
    } else {
    }
    %c0 = arith.constant 0 : index
    %c0_1 = arith.constant 0 : index
    %3 = vector.load %arg24[%c0, %c0_1] : memref<16x32xf32, #tpu.memory_space<vmem>>, vector<16x32xf32>
    %c0_2 = arith.constant 0 : index
    %c0_3 = arith.constant 0 : index
    %c0_4 = arith.constant 0 : index
    %4 = vector.load %arg4[%c0_2, %c0_3, %c0_4] : memref<1x1x32xf32, #tpu.memory_space<vmem>>, vector<1x1x32xf32>
    %5 = vector.shape_cast %4 : vector<1x1x32xf32> to vector<1x32xf32>
    %c0_5 = arith.constant 0 : index
    %c0_6 = arith.constant 0 : index
    %c0_7 = arith.constant 0 : index
    %6 = vector.load %arg5[%c0_5, %c0_6, %c0_7] : memref<1x1x32xf32, #tpu.memory_space<vmem>>, vector<1x1x32xf32>
    %7 = vector.shape_cast %6 : vector<1x1x32xf32> to vector<1x32xf32>
    %cst = arith.constant dense<0.000000e+00> : vector<16xf32>
    %8 = vector.multi_reduction <add>, %3, %cst [1] : vector<16x32xf32> to vector<16xf32>
    %9 = vector.shape_cast %8 : vector<16xf32> to vector<16x1xf32>
    %cst_8 = arith.constant 3.200000e+01 : f32
    %10 = vector.broadcast %cst_8 : f32 to vector<16x1xf32>
    %11 = arith.divf %9, %10 : vector<16x1xf32>
    %12 = vector.broadcast %11 : vector<16x1xf32> to vector<16x32xf32>
    %13 = arith.subf %3, %12 : vector<16x32xf32>
    %14 = arith.mulf %13, %13 : vector<16x32xf32>
    %cst_9 = arith.constant dense<0.000000e+00> : vector<16xf32>
    %15 = vector.multi_reduction <add>, %14, %cst_9 [1] : vector<16x32xf32> to vector<16xf32>
    %16 = vector.shape_cast %15 : vector<16xf32> to vector<16x1xf32>
    %cst_10 = arith.constant 3.200000e+01 : f32
    %17 = vector.broadcast %cst_10 : f32 to vector<16x1xf32>
    %18 = arith.divf %16, %17 : vector<16x1xf32>
    %cst_11 = arith.constant 9.99999974E-6 : f32
    %19 = vector.broadcast %cst_11 : f32 to vector<16x1xf32>
    %20 = arith.addf %18, %19 : vector<16x1xf32>
    %21 = math.rsqrt %20 : vector<16x1xf32>
    %22 = vector.broadcast %21 : vector<16x1xf32> to vector<16x32xf32>
    %23 = arith.mulf %13, %22 : vector<16x32xf32>
    %24 = vector.broadcast %5 : vector<1x32xf32> to vector<16x32xf32>
    %25 = arith.mulf %23, %24 : vector<16x32xf32>
    %26 = vector.broadcast %7 : vector<1x32xf32> to vector<16x32xf32>
    %27 = arith.addf %25, %26 : vector<16x32xf32>
    %28 = arith.truncf %27 : vector<16x32xf32> to vector<16x32xbf16>
    %29 = tpu.iota {dimensions = array<i32: 0>} : vector<16x16xi32>
    %30 = tpu.iota {dimensions = array<i32: 1>} : vector<16x16xi32>
    %31 = arith.cmpi sle, %30, %29 : vector<16x16xi32>
    %cst_12 = arith.constant 0.000000e+00 : f32
    %32 = vector.broadcast %cst_12 : f32 to vector<16x32xf32>
    %c0_13 = arith.constant 0 : index
    %c0_14 = arith.constant 0 : index
    %c0_15 = arith.constant 0 : index
    %c0_16 = arith.constant 0 : index
    %33 = vector.load %arg6[%c0_13, %c0_14, %c0_15, %c0_16] : memref<1x4x32x8xbf16, #tpu.memory_space<vmem>>, vector<1x1x32x8xbf16>
    %34 = vector.shape_cast %33 : vector<1x1x32x8xbf16> to vector<32x8xbf16>
    %cst_17 = arith.constant dense<0.000000e+00> : vector<16x8xf32>
    %35 = tpu.matmul %28, %34, %cst_17 {dimension_numbers = #tpu.dot_dimension_numbers<[1], [0], [0], [1], [0, 0, 1, 1], [], []>} : vector<16x32xbf16>, vector<32x8xbf16>, vector<16x8xf32> -> vector<16x8xf32>
    %c0_18 = arith.constant 0 : index
    %c0_19 = arith.constant 0 : index
    %c0_20 = arith.constant 0 : index
    %c0_21 = arith.constant 0 : index
    %36 = vector.load %arg7[%c0_18, %c0_19, %c0_20, %c0_21] : memref<1x4x1x8xf32, #tpu.memory_space<vmem>>, vector<1x1x1x8xf32>
    %37 = vector.shape_cast %36 : vector<1x1x1x8xf32> to vector<1x8xf32>
    %38 = vector.broadcast %37 : vector<1x8xf32> to vector<16x8xf32>
    %39 = arith.addf %35, %38 : vector<16x8xf32>
    %cst_22 = arith.constant 0.353553385 : f32
    %40 = vector.broadcast %cst_22 : f32 to vector<16x8xf32>
    %41 = arith.mulf %39, %40 : vector<16x8xf32>
    %c0_23 = arith.constant 0 : index
    %c0_24 = arith.constant 0 : index
    %c0_25 = arith.constant 0 : index
    %c0_26 = arith.constant 0 : index
    %42 = vector.load %arg8[%c0_23, %c0_24, %c0_25, %c0_26] : memref<1x4x32x8xbf16, #tpu.memory_space<vmem>>, vector<1x1x32x8xbf16>
    %43 = vector.shape_cast %42 : vector<1x1x32x8xbf16> to vector<32x8xbf16>
    %cst_27 = arith.constant dense<0.000000e+00> : vector<16x8xf32>
    %44 = tpu.matmul %28, %43, %cst_27 {dimension_numbers = #tpu.dot_dimension_numbers<[1], [0], [0], [1], [0, 0, 1, 1], [], []>} : vector<16x32xbf16>, vector<32x8xbf16>, vector<16x8xf32> -> vector<16x8xf32>
    %c0_28 = arith.constant 0 : index
    %c0_29 = arith.constant 0 : index
    %c0_30 = arith.constant 0 : index
    %c0_31 = arith.constant 0 : index
    %45 = vector.load %arg9[%c0_28, %c0_29, %c0_30, %c0_31] : memref<1x4x1x8xf32, #tpu.memory_space<vmem>>, vector<1x1x1x8xf32>
    %46 = vector.shape_cast %45 : vector<1x1x1x8xf32> to vector<1x8xf32>
    %47 = vector.broadcast %46 : vector<1x8xf32> to vector<16x8xf32>
    %48 = arith.addf %44, %47 : vector<16x8xf32>
    %c0_32 = arith.constant 0 : index
    %c0_33 = arith.constant 0 : index
    %c0_34 = arith.constant 0 : index
    %c0_35 = arith.constant 0 : index
    %49 = vector.load %arg10[%c0_32, %c0_33, %c0_34, %c0_35] : memref<1x4x32x8xbf16, #tpu.memory_space<vmem>>, vector<1x1x32x8xbf16>
    %50 = vector.shape_cast %49 : vector<1x1x32x8xbf16> to vector<32x8xbf16>
    %cst_36 = arith.constant dense<0.000000e+00> : vector<16x8xf32>
    %51 = tpu.matmul %28, %50, %cst_36 {dimension_numbers = #tpu.dot_dimension_numbers<[1], [0], [0], [1], [0, 0, 1, 1], [], []>} : vector<16x32xbf16>, vector<32x8xbf16>, vector<16x8xf32> -> vector<16x8xf32>
    %c0_37 = arith.constant 0 : index
    %c0_38 = arith.constant 0 : index
    %c0_39 = arith.constant 0 : index
    %c0_40 = arith.constant 0 : index
    %52 = vector.load %arg11[%c0_37, %c0_38, %c0_39, %c0_40] : memref<1x4x1x8xf32, #tpu.memory_space<vmem>>, vector<1x1x1x8xf32>
    %53 = vector.shape_cast %52 : vector<1x1x1x8xf32> to vector<1x8xf32>
    %54 = vector.broadcast %53 : vector<1x8xf32> to vector<16x8xf32>
    %55 = arith.addf %51, %54 : vector<16x8xf32>
    %56 = arith.truncf %41 : vector<16x8xf32> to vector<16x8xbf16>
    %57 = arith.truncf %48 : vector<16x8xf32> to vector<16x8xbf16>
    %cst_41 = arith.constant dense<0.000000e+00> : vector<16x16xf32>
    %58 = tpu.matmul %56, %57, %cst_41 {dimension_numbers = #tpu.dot_dimension_numbers<[1], [1], [0], [0], [0, 0, 1, 0], [], []>} : vector<16x8xbf16>, vector<16x8xbf16>, vector<16x16xf32> -> vector<16x16xf32>
    %cst_42 = arith.constant -1.000000e+09 : f32
    %59 = vector.broadcast %cst_42 : f32 to vector<16x16xf32>
    %60 = arith.select %31, %58, %59 : vector<16x16xi1>, vector<16x16xf32>
    %cst_43 = arith.constant dense<0xFF800000> : vector<16xf32>
    %61 = vector.multi_reduction <maximumf>, %60, %cst_43 [1] : vector<16x16xf32> to vector<16xf32>
    %62 = vector.shape_cast %61 : vector<16xf32> to vector<16x1xf32>
    %63 = vector.broadcast %62 : vector<16x1xf32> to vector<16x16xf32>
    %64 = arith.subf %60, %63 : vector<16x16xf32>
    %65 = math.exp %64 : vector<16x16xf32>
    %cst_44 = arith.constant dense<0.000000e+00> : vector<16xf32>
    %66 = vector.multi_reduction <add>, %65, %cst_44 [1] : vector<16x16xf32> to vector<16xf32>
    %67 = vector.shape_cast %66 : vector<16xf32> to vector<16x1xf32>
    %68 = tpu.reciprocal %67 {approx = true} : vector<16x1xf32> -> vector<16x1xf32>
    %69 = vector.broadcast %68 : vector<16x1xf32> to vector<16x16xf32>
    %70 = arith.mulf %65, %69 : vector<16x16xf32>
    %71 = arith.truncf %70 : vector<16x16xf32> to vector<16x16xbf16>
    %72 = arith.truncf %55 : vector<16x8xf32> to vector<16x8xbf16>
    %cst_45 = arith.constant dense<0.000000e+00> : vector<16x8xf32>
    %73 = tpu.matmul %71, %72, %cst_45 {dimension_numbers = #tpu.dot_dimension_numbers<[1], [0], [0], [1], [0, 0, 1, 1], [], []>} : vector<16x16xbf16>, vector<16x8xbf16>, vector<16x8xf32> -> vector<16x8xf32>
    %74 = arith.truncf %73 : vector<16x8xf32> to vector<16x8xbf16>
    %c0_46 = arith.constant 0 : index
    %c0_47 = arith.constant 0 : index
    %c0_48 = arith.constant 0 : index
    %c0_49 = arith.constant 0 : index
    %75 = vector.load %arg12[%c0_46, %c0_47, %c0_48, %c0_49] : memref<1x4x8x32xbf16, #tpu.memory_space<vmem>>, vector<1x1x8x32xbf16>
    %76 = vector.shape_cast %75 : vector<1x1x8x32xbf16> to vector<8x32xbf16>
    %cst_50 = arith.constant dense<0.000000e+00> : vector<16x32xf32>
    %77 = tpu.matmul %74, %76, %cst_50 {dimension_numbers = #tpu.dot_dimension_numbers<[1], [0], [0], [1], [0, 0, 1, 1], [], []>} : vector<16x8xbf16>, vector<8x32xbf16>, vector<16x32xf32> -> vector<16x32xf32>
    %78 = arith.addf %32, %77 : vector<16x32xf32>
    %c0_51 = arith.constant 0 : index
    %c1 = arith.constant 1 : index
    %c0_52 = arith.constant 0 : index
    %c0_53 = arith.constant 0 : index
    %79 = vector.load %arg6[%c0_51, %c1, %c0_52, %c0_53] : memref<1x4x32x8xbf16, #tpu.memory_space<vmem>>, vector<1x1x32x8xbf16>
    %80 = vector.shape_cast %79 : vector<1x1x32x8xbf16> to vector<32x8xbf16>
    %cst_54 = arith.constant dense<0.000000e+00> : vector<16x8xf32>
    %81 = tpu.matmul %28, %80, %cst_54 {dimension_numbers = #tpu.dot_dimension_numbers<[1], [0], [0], [1], [0, 0, 1, 1], [], []>} : vector<16x32xbf16>, vector<32x8xbf16>, vector<16x8xf32> -> vector<16x8xf32>
    %c0_55 = arith.constant 0 : index
    %c1_56 = arith.constant 1 : index
    %c0_57 = arith.constant 0 : index
    %c0_58 = arith.constant 0 : index
    %82 = vector.load %arg7[%c0_55, %c1_56, %c0_57, %c0_58] : memref<1x4x1x8xf32, #tpu.memory_space<vmem>>, vector<1x1x1x8xf32>
    %83 = vector.shape_cast %82 : vector<1x1x1x8xf32> to vector<1x8xf32>
    %84 = vector.broadcast %83 : vector<1x8xf32> to vector<16x8xf32>
    %85 = arith.addf %81, %84 : vector<16x8xf32>
    %cst_59 = arith.constant 0.353553385 : f32
    %86 = vector.broadcast %cst_59 : f32 to vector<16x8xf32>
    %87 = arith.mulf %85, %86 : vector<16x8xf32>
    %c0_60 = arith.constant 0 : index
    %c1_61 = arith.constant 1 : index
    %c0_62 = arith.constant 0 : index
    %c0_63 = arith.constant 0 : index
    %88 = vector.load %arg8[%c0_60, %c1_61, %c0_62, %c0_63] : memref<1x4x32x8xbf16, #tpu.memory_space<vmem>>, vector<1x1x32x8xbf16>
    %89 = vector.shape_cast %88 : vector<1x1x32x8xbf16> to vector<32x8xbf16>
    %cst_64 = arith.constant dense<0.000000e+00> : vector<16x8xf32>
    %90 = tpu.matmul %28, %89, %cst_64 {dimension_numbers = #tpu.dot_dimension_numbers<[1], [0], [0], [1], [0, 0, 1, 1], [], []>} : vector<16x32xbf16>, vector<32x8xbf16>, vector<16x8xf32> -> vector<16x8xf32>
    %c0_65 = arith.constant 0 : index
    %c1_66 = arith.constant 1 : index
    %c0_67 = arith.constant 0 : index
    %c0_68 = arith.constant 0 : index
    %91 = vector.load %arg9[%c0_65, %c1_66, %c0_67, %c0_68] : memref<1x4x1x8xf32, #tpu.memory_space<vmem>>, vector<1x1x1x8xf32>
    %92 = vector.shape_cast %91 : vector<1x1x1x8xf32> to vector<1x8xf32>
    %93 = vector.broadcast %92 : vector<1x8xf32> to vector<16x8xf32>
    %94 = arith.addf %90, %93 : vector<16x8xf32>
    %c0_69 = arith.constant 0 : index
    %c1_70 = arith.constant 1 : index
    %c0_71 = arith.constant 0 : index
    %c0_72 = arith.constant 0 : index
    %95 = vector.load %arg10[%c0_69, %c1_70, %c0_71, %c0_72] : memref<1x4x32x8xbf16, #tpu.memory_space<vmem>>, vector<1x1x32x8xbf16>
    %96 = vector.shape_cast %95 : vector<1x1x32x8xbf16> to vector<32x8xbf16>
    %cst_73 = arith.constant dense<0.000000e+00> : vector<16x8xf32>
    %97 = tpu.matmul %28, %96, %cst_73 {dimension_numbers = #tpu.dot_dimension_numbers<[1], [0], [0], [1], [0, 0, 1, 1], [], []>} : vector<16x32xbf16>, vector<32x8xbf16>, vector<16x8xf32> -> vector<16x8xf32>
    %c0_74 = arith.constant 0 : index
    %c1_75 = arith.constant 1 : index
    %c0_76 = arith.constant 0 : index
    %c0_77 = arith.constant 0 : index
    %98 = vector.load %arg11[%c0_74, %c1_75, %c0_76, %c0_77] : memref<1x4x1x8xf32, #tpu.memory_space<vmem>>, vector<1x1x1x8xf32>
    %99 = vector.shape_cast %98 : vector<1x1x1x8xf32> to vector<1x8xf32>
    %100 = vector.broadcast %99 : vector<1x8xf32> to vector<16x8xf32>
    %101 = arith.addf %97, %100 : vector<16x8xf32>
    %102 = arith.truncf %87 : vector<16x8xf32> to vector<16x8xbf16>
    %103 = arith.truncf %94 : vector<16x8xf32> to vector<16x8xbf16>
    %cst_78 = arith.constant dense<0.000000e+00> : vector<16x16xf32>
    %104 = tpu.matmul %102, %103, %cst_78 {dimension_numbers = #tpu.dot_dimension_numbers<[1], [1], [0], [0], [0, 0, 1, 0], [], []>} : vector<16x8xbf16>, vector<16x8xbf16>, vector<16x16xf32> -> vector<16x16xf32>
    %cst_79 = arith.constant -1.000000e+09 : f32
    %105 = vector.broadcast %cst_79 : f32 to vector<16x16xf32>
    %106 = arith.select %31, %104, %105 : vector<16x16xi1>, vector<16x16xf32>
    %cst_80 = arith.constant dense<0xFF800000> : vector<16xf32>
    %107 = vector.multi_reduction <maximumf>, %106, %cst_80 [1] : vector<16x16xf32> to vector<16xf32>
    %108 = vector.shape_cast %107 : vector<16xf32> to vector<16x1xf32>
    %109 = vector.broadcast %108 : vector<16x1xf32> to vector<16x16xf32>
    %110 = arith.subf %106, %109 : vector<16x16xf32>
    %111 = math.exp %110 : vector<16x16xf32>
    %cst_81 = arith.constant dense<0.000000e+00> : vector<16xf32>
    %112 = vector.multi_reduction <add>, %111, %cst_81 [1] : vector<16x16xf32> to vector<16xf32>
    %113 = vector.shape_cast %112 : vector<16xf32> to vector<16x1xf32>
    %114 = tpu.reciprocal %113 {approx = true} : vector<16x1xf32> -> vector<16x1xf32>
    %115 = vector.broadcast %114 : vector<16x1xf32> to vector<16x16xf32>
    %116 = arith.mulf %111, %115 : vector<16x16xf32>
    %117 = arith.truncf %116 : vector<16x16xf32> to vector<16x16xbf16>
    %118 = arith.truncf %101 : vector<16x8xf32> to vector<16x8xbf16>
    %cst_82 = arith.constant dense<0.000000e+00> : vector<16x8xf32>
    %119 = tpu.matmul %117, %118, %cst_82 {dimension_numbers = #tpu.dot_dimension_numbers<[1], [0], [0], [1], [0, 0, 1, 1], [], []>} : vector<16x16xbf16>, vector<16x8xbf16>, vector<16x8xf32> -> vector<16x8xf32>
    %120 = arith.truncf %119 : vector<16x8xf32> to vector<16x8xbf16>
    %c0_83 = arith.constant 0 : index
    %c1_84 = arith.constant 1 : index
    %c0_85 = arith.constant 0 : index
    %c0_86 = arith.constant 0 : index
    %121 = vector.load %arg12[%c0_83, %c1_84, %c0_85, %c0_86] : memref<1x4x8x32xbf16, #tpu.memory_space<vmem>>, vector<1x1x8x32xbf16>
    %122 = vector.shape_cast %121 : vector<1x1x8x32xbf16> to vector<8x32xbf16>
    %cst_87 = arith.constant dense<0.000000e+00> : vector<16x32xf32>
    %123 = tpu.matmul %120, %122, %cst_87 {dimension_numbers = #tpu.dot_dimension_numbers<[1], [0], [0], [1], [0, 0, 1, 1], [], []>} : vector<16x8xbf16>, vector<8x32xbf16>, vector<16x32xf32> -> vector<16x32xf32>
    %124 = arith.addf %78, %123 : vector<16x32xf32>
    %c0_88 = arith.constant 0 : index
    %c2 = arith.constant 2 : index
    %c0_89 = arith.constant 0 : index
    %c0_90 = arith.constant 0 : index
    %125 = vector.load %arg6[%c0_88, %c2, %c0_89, %c0_90] : memref<1x4x32x8xbf16, #tpu.memory_space<vmem>>, vector<1x1x32x8xbf16>
    %126 = vector.shape_cast %125 : vector<1x1x32x8xbf16> to vector<32x8xbf16>
    %cst_91 = arith.constant dense<0.000000e+00> : vector<16x8xf32>
    %127 = tpu.matmul %28, %126, %cst_91 {dimension_numbers = #tpu.dot_dimension_numbers<[1], [0], [0], [1], [0, 0, 1, 1], [], []>} : vector<16x32xbf16>, vector<32x8xbf16>, vector<16x8xf32> -> vector<16x8xf32>
    %c0_92 = arith.constant 0 : index
    %c2_93 = arith.constant 2 : index
    %c0_94 = arith.constant 0 : index
    %c0_95 = arith.constant 0 : index
    %128 = vector.load %arg7[%c0_92, %c2_93, %c0_94, %c0_95] : memref<1x4x1x8xf32, #tpu.memory_space<vmem>>, vector<1x1x1x8xf32>
    %129 = vector.shape_cast %128 : vector<1x1x1x8xf32> to vector<1x8xf32>
    %130 = vector.broadcast %129 : vector<1x8xf32> to vector<16x8xf32>
    %131 = arith.addf %127, %130 : vector<16x8xf32>
    %cst_96 = arith.constant 0.353553385 : f32
    %132 = vector.broadcast %cst_96 : f32 to vector<16x8xf32>
    %133 = arith.mulf %131, %132 : vector<16x8xf32>
    %c0_97 = arith.constant 0 : index
    %c2_98 = arith.constant 2 : index
    %c0_99 = arith.constant 0 : index
    %c0_100 = arith.constant 0 : index
    %134 = vector.load %arg8[%c0_97, %c2_98, %c0_99, %c0_100] : memref<1x4x32x8xbf16, #tpu.memory_space<vmem>>, vector<1x1x32x8xbf16>
    %135 = vector.shape_cast %134 : vector<1x1x32x8xbf16> to vector<32x8xbf16>
    %cst_101 = arith.constant dense<0.000000e+00> : vector<16x8xf32>
    %136 = tpu.matmul %28, %135, %cst_101 {dimension_numbers = #tpu.dot_dimension_numbers<[1], [0], [0], [1], [0, 0, 1, 1], [], []>} : vector<16x32xbf16>, vector<32x8xbf16>, vector<16x8xf32> -> vector<16x8xf32>
    %c0_102 = arith.constant 0 : index
    %c2_103 = arith.constant 2 : index
    %c0_104 = arith.constant 0 : index
    %c0_105 = arith.constant 0 : index
    %137 = vector.load %arg9[%c0_102, %c2_103, %c0_104, %c0_105] : memref<1x4x1x8xf32, #tpu.memory_space<vmem>>, vector<1x1x1x8xf32>
    %138 = vector.shape_cast %137 : vector<1x1x1x8xf32> to vector<1x8xf32>
    %139 = vector.broadcast %138 : vector<1x8xf32> to vector<16x8xf32>
    %140 = arith.addf %136, %139 : vector<16x8xf32>
    %c0_106 = arith.constant 0 : index
    %c2_107 = arith.constant 2 : index
    %c0_108 = arith.constant 0 : index
    %c0_109 = arith.constant 0 : index
    %141 = vector.load %arg10[%c0_106, %c2_107, %c0_108, %c0_109] : memref<1x4x32x8xbf16, #tpu.memory_space<vmem>>, vector<1x1x32x8xbf16>
    %142 = vector.shape_cast %141 : vector<1x1x32x8xbf16> to vector<32x8xbf16>
    %cst_110 = arith.constant dense<0.000000e+00> : vector<16x8xf32>
    %143 = tpu.matmul %28, %142, %cst_110 {dimension_numbers = #tpu.dot_dimension_numbers<[1], [0], [0], [1], [0, 0, 1, 1], [], []>} : vector<16x32xbf16>, vector<32x8xbf16>, vector<16x8xf32> -> vector<16x8xf32>
    %c0_111 = arith.constant 0 : index
    %c2_112 = arith.constant 2 : index
    %c0_113 = arith.constant 0 : index
    %c0_114 = arith.constant 0 : index
    %144 = vector.load %arg11[%c0_111, %c2_112, %c0_113, %c0_114] : memref<1x4x1x8xf32, #tpu.memory_space<vmem>>, vector<1x1x1x8xf32>
    %145 = vector.shape_cast %144 : vector<1x1x1x8xf32> to vector<1x8xf32>
    %146 = vector.broadcast %145 : vector<1x8xf32> to vector<16x8xf32>
    %147 = arith.addf %143, %146 : vector<16x8xf32>
    %148 = arith.truncf %133 : vector<16x8xf32> to vector<16x8xbf16>
    %149 = arith.truncf %140 : vector<16x8xf32> to vector<16x8xbf16>
    %cst_115 = arith.constant dense<0.000000e+00> : vector<16x16xf32>
    %150 = tpu.matmul %148, %149, %cst_115 {dimension_numbers = #tpu.dot_dimension_numbers<[1], [1], [0], [0], [0, 0, 1, 0], [], []>} : vector<16x8xbf16>, vector<16x8xbf16>, vector<16x16xf32> -> vector<16x16xf32>
    %cst_116 = arith.constant -1.000000e+09 : f32
    %151 = vector.broadcast %cst_116 : f32 to vector<16x16xf32>
    %152 = arith.select %31, %150, %151 : vector<16x16xi1>, vector<16x16xf32>
    %cst_117 = arith.constant dense<0xFF800000> : vector<16xf32>
    %153 = vector.multi_reduction <maximumf>, %152, %cst_117 [1] : vector<16x16xf32> to vector<16xf32>
    %154 = vector.shape_cast %153 : vector<16xf32> to vector<16x1xf32>
    %155 = vector.broadcast %154 : vector<16x1xf32> to vector<16x16xf32>
    %156 = arith.subf %152, %155 : vector<16x16xf32>
    %157 = math.exp %156 : vector<16x16xf32>
    %cst_118 = arith.constant dense<0.000000e+00> : vector<16xf32>
    %158 = vector.multi_reduction <add>, %157, %cst_118 [1] : vector<16x16xf32> to vector<16xf32>
    %159 = vector.shape_cast %158 : vector<16xf32> to vector<16x1xf32>
    %160 = tpu.reciprocal %159 {approx = true} : vector<16x1xf32> -> vector<16x1xf32>
    %161 = vector.broadcast %160 : vector<16x1xf32> to vector<16x16xf32>
    %162 = arith.mulf %157, %161 : vector<16x16xf32>
    %163 = arith.truncf %162 : vector<16x16xf32> to vector<16x16xbf16>
    %164 = arith.truncf %147 : vector<16x8xf32> to vector<16x8xbf16>
    %cst_119 = arith.constant dense<0.000000e+00> : vector<16x8xf32>
    %165 = tpu.matmul %163, %164, %cst_119 {dimension_numbers = #tpu.dot_dimension_numbers<[1], [0], [0], [1], [0, 0, 1, 1], [], []>} : vector<16x16xbf16>, vector<16x8xbf16>, vector<16x8xf32> -> vector<16x8xf32>
    %166 = arith.truncf %165 : vector<16x8xf32> to vector<16x8xbf16>
    %c0_120 = arith.constant 0 : index
    %c2_121 = arith.constant 2 : index
    %c0_122 = arith.constant 0 : index
    %c0_123 = arith.constant 0 : index
    %167 = vector.load %arg12[%c0_120, %c2_121, %c0_122, %c0_123] : memref<1x4x8x32xbf16, #tpu.memory_space<vmem>>, vector<1x1x8x32xbf16>
    %168 = vector.shape_cast %167 : vector<1x1x8x32xbf16> to vector<8x32xbf16>
    %cst_124 = arith.constant dense<0.000000e+00> : vector<16x32xf32>
    %169 = tpu.matmul %166, %168, %cst_124 {dimension_numbers = #tpu.dot_dimension_numbers<[1], [0], [0], [1], [0, 0, 1, 1], [], []>} : vector<16x8xbf16>, vector<8x32xbf16>, vector<16x32xf32> -> vector<16x32xf32>
    %170 = arith.addf %124, %169 : vector<16x32xf32>
    %c0_125 = arith.constant 0 : index
    %c3 = arith.constant 3 : index
    %c0_126 = arith.constant 0 : index
    %c0_127 = arith.constant 0 : index
    %171 = vector.load %arg6[%c0_125, %c3, %c0_126, %c0_127] : memref<1x4x32x8xbf16, #tpu.memory_space<vmem>>, vector<1x1x32x8xbf16>
    %172 = vector.shape_cast %171 : vector<1x1x32x8xbf16> to vector<32x8xbf16>
    %cst_128 = arith.constant dense<0.000000e+00> : vector<16x8xf32>
    %173 = tpu.matmul %28, %172, %cst_128 {dimension_numbers = #tpu.dot_dimension_numbers<[1], [0], [0], [1], [0, 0, 1, 1], [], []>} : vector<16x32xbf16>, vector<32x8xbf16>, vector<16x8xf32> -> vector<16x8xf32>
    %c0_129 = arith.constant 0 : index
    %c3_130 = arith.constant 3 : index
    %c0_131 = arith.constant 0 : index
    %c0_132 = arith.constant 0 : index
    %174 = vector.load %arg7[%c0_129, %c3_130, %c0_131, %c0_132] : memref<1x4x1x8xf32, #tpu.memory_space<vmem>>, vector<1x1x1x8xf32>
    %175 = vector.shape_cast %174 : vector<1x1x1x8xf32> to vector<1x8xf32>
    %176 = vector.broadcast %175 : vector<1x8xf32> to vector<16x8xf32>
    %177 = arith.addf %173, %176 : vector<16x8xf32>
    %cst_133 = arith.constant 0.353553385 : f32
    %178 = vector.broadcast %cst_133 : f32 to vector<16x8xf32>
    %179 = arith.mulf %177, %178 : vector<16x8xf32>
    %c0_134 = arith.constant 0 : index
    %c3_135 = arith.constant 3 : index
    %c0_136 = arith.constant 0 : index
    %c0_137 = arith.constant 0 : index
    %180 = vector.load %arg8[%c0_134, %c3_135, %c0_136, %c0_137] : memref<1x4x32x8xbf16, #tpu.memory_space<vmem>>, vector<1x1x32x8xbf16>
    %181 = vector.shape_cast %180 : vector<1x1x32x8xbf16> to vector<32x8xbf16>
    %cst_138 = arith.constant dense<0.000000e+00> : vector<16x8xf32>
    %182 = tpu.matmul %28, %181, %cst_138 {dimension_numbers = #tpu.dot_dimension_numbers<[1], [0], [0], [1], [0, 0, 1, 1], [], []>} : vector<16x32xbf16>, vector<32x8xbf16>, vector<16x8xf32> -> vector<16x8xf32>
    %c0_139 = arith.constant 0 : index
    %c3_140 = arith.constant 3 : index
    %c0_141 = arith.constant 0 : index
    %c0_142 = arith.constant 0 : index
    %183 = vector.load %arg9[%c0_139, %c3_140, %c0_141, %c0_142] : memref<1x4x1x8xf32, #tpu.memory_space<vmem>>, vector<1x1x1x8xf32>
    %184 = vector.shape_cast %183 : vector<1x1x1x8xf32> to vector<1x8xf32>
    %185 = vector.broadcast %184 : vector<1x8xf32> to vector<16x8xf32>
    %186 = arith.addf %182, %185 : vector<16x8xf32>
    %c0_143 = arith.constant 0 : index
    %c3_144 = arith.constant 3 : index
    %c0_145 = arith.constant 0 : index
    %c0_146 = arith.constant 0 : index
    %187 = vector.load %arg10[%c0_143, %c3_144, %c0_145, %c0_146] : memref<1x4x32x8xbf16, #tpu.memory_space<vmem>>, vector<1x1x32x8xbf16>
    %188 = vector.shape_cast %187 : vector<1x1x32x8xbf16> to vector<32x8xbf16>
    %cst_147 = arith.constant dense<0.000000e+00> : vector<16x8xf32>
    %189 = tpu.matmul %28, %188, %cst_147 {dimension_numbers = #tpu.dot_dimension_numbers<[1], [0], [0], [1], [0, 0, 1, 1], [], []>} : vector<16x32xbf16>, vector<32x8xbf16>, vector<16x8xf32> -> vector<16x8xf32>
    %c0_148 = arith.constant 0 : index
    %c3_149 = arith.constant 3 : index
    %c0_150 = arith.constant 0 : index
    %c0_151 = arith.constant 0 : index
    %190 = vector.load %arg11[%c0_148, %c3_149, %c0_150, %c0_151] : memref<1x4x1x8xf32, #tpu.memory_space<vmem>>, vector<1x1x1x8xf32>
    %191 = vector.shape_cast %190 : vector<1x1x1x8xf32> to vector<1x8xf32>
    %192 = vector.broadcast %191 : vector<1x8xf32> to vector<16x8xf32>
    %193 = arith.addf %189, %192 : vector<16x8xf32>
    %194 = arith.truncf %179 : vector<16x8xf32> to vector<16x8xbf16>
    %195 = arith.truncf %186 : vector<16x8xf32> to vector<16x8xbf16>
    %cst_152 = arith.constant dense<0.000000e+00> : vector<16x16xf32>
    %196 = tpu.matmul %194, %195, %cst_152 {dimension_numbers = #tpu.dot_dimension_numbers<[1], [1], [0], [0], [0, 0, 1, 0], [], []>} : vector<16x8xbf16>, vector<16x8xbf16>, vector<16x16xf32> -> vector<16x16xf32>
    %cst_153 = arith.constant -1.000000e+09 : f32
    %197 = vector.broadcast %cst_153 : f32 to vector<16x16xf32>
    %198 = arith.select %31, %196, %197 : vector<16x16xi1>, vector<16x16xf32>
    %cst_154 = arith.constant dense<0xFF800000> : vector<16xf32>
    %199 = vector.multi_reduction <maximumf>, %198, %cst_154 [1] : vector<16x16xf32> to vector<16xf32>
    %200 = vector.shape_cast %199 : vector<16xf32> to vector<16x1xf32>
    %201 = vector.broadcast %200 : vector<16x1xf32> to vector<16x16xf32>
    %202 = arith.subf %198, %201 : vector<16x16xf32>
    %203 = math.exp %202 : vector<16x16xf32>
    %cst_155 = arith.constant dense<0.000000e+00> : vector<16xf32>
    %204 = vector.multi_reduction <add>, %203, %cst_155 [1] : vector<16x16xf32> to vector<16xf32>
    %205 = vector.shape_cast %204 : vector<16xf32> to vector<16x1xf32>
    %206 = tpu.reciprocal %205 {approx = true} : vector<16x1xf32> -> vector<16x1xf32>
    %207 = vector.broadcast %206 : vector<16x1xf32> to vector<16x16xf32>
    %208 = arith.mulf %203, %207 : vector<16x16xf32>
    %209 = arith.truncf %208 : vector<16x16xf32> to vector<16x16xbf16>
    %210 = arith.truncf %193 : vector<16x8xf32> to vector<16x8xbf16>
    %cst_156 = arith.constant dense<0.000000e+00> : vector<16x8xf32>
    %211 = tpu.matmul %209, %210, %cst_156 {dimension_numbers = #tpu.dot_dimension_numbers<[1], [0], [0], [1], [0, 0, 1, 1], [], []>} : vector<16x16xbf16>, vector<16x8xbf16>, vector<16x8xf32> -> vector<16x8xf32>
    %212 = arith.truncf %211 : vector<16x8xf32> to vector<16x8xbf16>
    %c0_157 = arith.constant 0 : index
    %c3_158 = arith.constant 3 : index
    %c0_159 = arith.constant 0 : index
    %c0_160 = arith.constant 0 : index
    %213 = vector.load %arg12[%c0_157, %c3_158, %c0_159, %c0_160] : memref<1x4x8x32xbf16, #tpu.memory_space<vmem>>, vector<1x1x8x32xbf16>
    %214 = vector.shape_cast %213 : vector<1x1x8x32xbf16> to vector<8x32xbf16>
    %cst_161 = arith.constant dense<0.000000e+00> : vector<16x32xf32>
    %215 = tpu.matmul %212, %214, %cst_161 {dimension_numbers = #tpu.dot_dimension_numbers<[1], [0], [0], [1], [0, 0, 1, 1], [], []>} : vector<16x8xbf16>, vector<8x32xbf16>, vector<16x32xf32> -> vector<16x32xf32>
    %216 = arith.addf %170, %215 : vector<16x32xf32>
    %217 = arith.addf %3, %216 : vector<16x32xf32>
    %c0_162 = arith.constant 0 : index
    %c0_163 = arith.constant 0 : index
    %c0_164 = arith.constant 0 : index
    %218 = vector.load %arg13[%c0_162, %c0_163, %c0_164] : memref<1x1x32xf32, #tpu.memory_space<vmem>>, vector<1x1x32xf32>
    %219 = vector.shape_cast %218 : vector<1x1x32xf32> to vector<1x32xf32>
    %220 = vector.broadcast %219 : vector<1x32xf32> to vector<16x32xf32>
    %221 = arith.addf %217, %220 : vector<16x32xf32>
    %c0_165 = arith.constant 0 : index
    %c0_166 = arith.constant 0 : index
    %c0_167 = arith.constant 0 : index
    %222 = vector.load %arg14[%c0_165, %c0_166, %c0_167] : memref<1x1x32xf32, #tpu.memory_space<vmem>>, vector<1x1x32xf32>
    %223 = vector.shape_cast %222 : vector<1x1x32xf32> to vector<1x32xf32>
    %c0_168 = arith.constant 0 : index
    %c0_169 = arith.constant 0 : index
    %c0_170 = arith.constant 0 : index
    %224 = vector.load %arg15[%c0_168, %c0_169, %c0_170] : memref<1x1x32xf32, #tpu.memory_space<vmem>>, vector<1x1x32xf32>
    %225 = vector.shape_cast %224 : vector<1x1x32xf32> to vector<1x32xf32>
    %cst_171 = arith.constant dense<0.000000e+00> : vector<16xf32>
    %226 = vector.multi_reduction <add>, %221, %cst_171 [1] : vector<16x32xf32> to vector<16xf32>
    %227 = vector.shape_cast %226 : vector<16xf32> to vector<16x1xf32>
    %cst_172 = arith.constant 3.200000e+01 : f32
    %228 = vector.broadcast %cst_172 : f32 to vector<16x1xf32>
    %229 = arith.divf %227, %228 : vector<16x1xf32>
    %230 = vector.broadcast %229 : vector<16x1xf32> to vector<16x32xf32>
    %231 = arith.subf %221, %230 : vector<16x32xf32>
    %232 = arith.mulf %231, %231 : vector<16x32xf32>
    %cst_173 = arith.constant dense<0.000000e+00> : vector<16xf32>
    %233 = vector.multi_reduction <add>, %232, %cst_173 [1] : vector<16x32xf32> to vector<16xf32>
    %234 = vector.shape_cast %233 : vector<16xf32> to vector<16x1xf32>
    %cst_174 = arith.constant 3.200000e+01 : f32
    %235 = vector.broadcast %cst_174 : f32 to vector<16x1xf32>
    %236 = arith.divf %234, %235 : vector<16x1xf32>
    %cst_175 = arith.constant 9.99999974E-6 : f32
    %237 = vector.broadcast %cst_175 : f32 to vector<16x1xf32>
    %238 = arith.addf %236, %237 : vector<16x1xf32>
    %239 = math.rsqrt %238 : vector<16x1xf32>
    %240 = vector.broadcast %239 : vector<16x1xf32> to vector<16x32xf32>
    %241 = arith.mulf %231, %240 : vector<16x32xf32>
    %242 = vector.broadcast %223 : vector<1x32xf32> to vector<16x32xf32>
    %243 = arith.mulf %241, %242 : vector<16x32xf32>
    %244 = vector.broadcast %225 : vector<1x32xf32> to vector<16x32xf32>
    %245 = arith.addf %243, %244 : vector<16x32xf32>
    %246 = arith.truncf %245 : vector<16x32xf32> to vector<16x32xbf16>
    %c0_176 = arith.constant 0 : index
    %c0_177 = arith.constant 0 : index
    %c0_178 = arith.constant 0 : index
    %247 = vector.load %arg16[%c0_176, %c0_177, %c0_178] : memref<1x32x128xbf16, #tpu.memory_space<vmem>>, vector<1x32x128xbf16>
    %248 = vector.shape_cast %247 : vector<1x32x128xbf16> to vector<32x128xbf16>
    %cst_179 = arith.constant dense<0.000000e+00> : vector<16x128xf32>
    %249 = tpu.matmul %246, %248, %cst_179 {dimension_numbers = #tpu.dot_dimension_numbers<[1], [0], [0], [1], [0, 0, 1, 1], [], []>} : vector<16x32xbf16>, vector<32x128xbf16>, vector<16x128xf32> -> vector<16x128xf32>
    %c0_180 = arith.constant 0 : index
    %c0_181 = arith.constant 0 : index
    %c0_182 = arith.constant 0 : index
    %250 = vector.load %arg17[%c0_180, %c0_181, %c0_182] : memref<1x1x128xf32, #tpu.memory_space<vmem>>, vector<1x1x128xf32>
    %251 = vector.shape_cast %250 : vector<1x1x128xf32> to vector<1x128xf32>
    %252 = vector.broadcast %251 : vector<1x128xf32> to vector<16x128xf32>
    %253 = arith.addf %249, %252 : vector<16x128xf32>
    %cst_183 = arith.constant 1.702000e+00 : f32
    %254 = vector.broadcast %cst_183 : f32 to vector<16x128xf32>
    %255 = arith.mulf %254, %253 : vector<16x128xf32>
    %256 = arith.negf %255 : vector<16x128xf32>
    %257 = math.exp %256 : vector<16x128xf32>
    %cst_184 = arith.constant 1.000000e+00 : f32
    %258 = vector.broadcast %cst_184 : f32 to vector<16x128xf32>
    %259 = arith.addf %258, %257 : vector<16x128xf32>
    %260 = arith.divf %258, %259 : vector<16x128xf32>
    %261 = arith.mulf %253, %260 : vector<16x128xf32>
    %262 = arith.truncf %261 : vector<16x128xf32> to vector<16x128xbf16>
    %c0_185 = arith.constant 0 : index
    %c0_186 = arith.constant 0 : index
    %c0_187 = arith.constant 0 : index
    %263 = vector.load %arg18[%c0_185, %c0_186, %c0_187] : memref<1x128x32xbf16, #tpu.memory_space<vmem>>, vector<1x128x32xbf16>
    %264 = vector.shape_cast %263 : vector<1x128x32xbf16> to vector<128x32xbf16>
    %cst_188 = arith.constant dense<0.000000e+00> : vector<16x32xf32>
    %265 = tpu.matmul %262, %264, %cst_188 {dimension_numbers = #tpu.dot_dimension_numbers<[1], [0], [0], [1], [0, 0, 1, 1], [], []>} : vector<16x128xbf16>, vector<128x32xbf16>, vector<16x32xf32> -> vector<16x32xf32>
    %c0_189 = arith.constant 0 : index
    %c0_190 = arith.constant 0 : index
    %c0_191 = arith.constant 0 : index
    %266 = vector.load %arg19[%c0_189, %c0_190, %c0_191] : memref<1x1x32xf32, #tpu.memory_space<vmem>>, vector<1x1x32xf32>
    %267 = vector.shape_cast %266 : vector<1x1x32xf32> to vector<1x32xf32>
    %268 = vector.broadcast %267 : vector<1x32xf32> to vector<16x32xf32>
    %269 = arith.addf %265, %268 : vector<16x32xf32>
    %270 = arith.addf %221, %269 : vector<16x32xf32>
    %c0_192 = arith.constant 0 : index
    %c0_193 = arith.constant 0 : index
    %271 = vector.load %arg24[%c0_192, %c0_193] : memref<16x32xf32, #tpu.memory_space<vmem>>, vector<16x32xf32>
    tpu.vector_store %arg24[%c0_192, %c0_193], %270 {strides = array<i32>} : memref<16x32xf32, #tpu.memory_space<vmem>>, vector<16x32xf32>,
    %c1_i32 = arith.constant 1 : i32
    %272 = arith.cmpi eq, %arg1, %c1_i32 : i32
    %273 = arith.extui %272 : i1 to i32
    %c0_i32_194 = arith.constant 0 : i32
    %274 = arith.cmpi ne, %273, %c0_i32_194 : i32
    scf.if %274 {
      %c0_195 = arith.constant 0 : index
      %c0_196 = arith.constant 0 : index
      %275 = vector.load %arg20[%c0_195, %c0_196] : memref<1x32xf32, #tpu.memory_space<vmem>>, vector<1x32xf32>
      %c0_197 = arith.constant 0 : index
      %c0_198 = arith.constant 0 : index
      %276 = vector.load %arg21[%c0_197, %c0_198] : memref<1x32xf32, #tpu.memory_space<vmem>>, vector<1x32xf32>
      %cst_199 = arith.constant dense<0.000000e+00> : vector<16xf32>
      %277 = vector.multi_reduction <add>, %270, %cst_199 [1] : vector<16x32xf32> to vector<16xf32>
      %278 = vector.shape_cast %277 : vector<16xf32> to vector<16x1xf32>
      %cst_200 = arith.constant 3.200000e+01 : f32
      %279 = vector.broadcast %cst_200 : f32 to vector<16x1xf32>
      %280 = arith.divf %278, %279 : vector<16x1xf32>
      %281 = vector.broadcast %280 : vector<16x1xf32> to vector<16x32xf32>
      %282 = arith.subf %270, %281 : vector<16x32xf32>
      %283 = arith.mulf %282, %282 : vector<16x32xf32>
      %cst_201 = arith.constant dense<0.000000e+00> : vector<16xf32>
      %284 = vector.multi_reduction <add>, %283, %cst_201 [1] : vector<16x32xf32> to vector<16xf32>
      %285 = vector.shape_cast %284 : vector<16xf32> to vector<16x1xf32>
      %cst_202 = arith.constant 3.200000e+01 : f32
      %286 = vector.broadcast %cst_202 : f32 to vector<16x1xf32>
      %287 = arith.divf %285, %286 : vector<16x1xf32>
      %cst_203 = arith.constant 9.99999974E-6 : f32
      %288 = vector.broadcast %cst_203 : f32 to vector<16x1xf32>
      %289 = arith.addf %287, %288 : vector<16x1xf32>
      %290 = math.rsqrt %289 : vector<16x1xf32>
      %291 = vector.broadcast %290 : vector<16x1xf32> to vector<16x32xf32>
      %292 = arith.mulf %282, %291 : vector<16x32xf32>
      %293 = vector.broadcast %275 : vector<1x32xf32> to vector<16x32xf32>
      %294 = arith.mulf %292, %293 : vector<16x32xf32>
      %295 = vector.broadcast %276 : vector<1x32xf32> to vector<16x32xf32>
      %296 = arith.addf %294, %295 : vector<16x32xf32>
      %297 = arith.index_cast %arg0 : i32 to index
      %298 = memref.load %arg2[%297] : memref<2xi32, #tpu.memory_space<smem>>
      %299 = tpu.iota {dimensions = array<i32: 0>} : vector<16x1xi32>
      %300 = vector.broadcast %298 : i32 to vector<16x1xi32>
      %301 = arith.cmpi eq, %299, %300 : vector<16x1xi32>
      %cst_204 = arith.constant 0.000000e+00 : f32
      %302 = vector.shape_cast %301 : vector<16x1xi1> to vector<16x1xi1>
      %303 = vector.broadcast %302 : vector<16x1xi1> to vector<16x32xi1>
      %304 = vector.broadcast %cst_204 : f32 to vector<16x32xf32>
      %305 = arith.select %303, %296, %304 : vector<16x32xi1>, vector<16x32xf32>
      %cst_205 = arith.constant dense<0.000000e+00> : vector<32xf32>
      %306 = vector.multi_reduction <add>, %305, %cst_205 [0] : vector<16x32xf32> to vector<32xf32>
      %307 = vector.shape_cast %306 : vector<32xf32> to vector<1x32xf32>
      %308 = arith.truncf %307 : vector<1x32xf32> to vector<1x32xbf16>
      %c0_206 = arith.constant 0 : index
      %c0_207 = arith.constant 0 : index
      %309 = vector.load %arg22[%c0_206, %c0_207] : memref<32x32xbf16, #tpu.memory_space<vmem>>, vector<32x32xbf16>
      %cst_208 = arith.constant dense<0.000000e+00> : vector<1x32xf32>
      %310 = tpu.matmul %308, %309, %cst_208 {dimension_numbers = #tpu.dot_dimension_numbers<[1], [0], [0], [1], [0, 0, 1, 1], [], []>} : vector<1x32xbf16>, vector<32x32xbf16>, vector<1x32xf32> -> vector<1x32xf32>
      %c0_209 = arith.constant 0 : index
      %c0_210 = arith.constant 0 : index
      %c0_211 = arith.constant 0 : index
      %311 = vector.load %arg23[%c0_209, %c0_210, %c0_211] : memref<1x1x32xf32, #tpu.memory_space<vmem>>, vector<1x1x32xf32>
      %312 = vector.shape_cast %311 : vector<1x1x32xf32> to vector<1x32xf32>
      %313 = vector.shape_cast %310 : vector<1x32xf32> to vector<1x1x32xf32>
      tpu.vector_store %arg23[%c0_209, %c0_210, %c0_211], %313 {strides = array<i32>} : memref<1x1x32xf32, #tpu.memory_space<vmem>>, vector<1x1x32xf32>,
    } else {
    }
    return
  }
  func.func @transform_0(%arg0: i32, %arg1: i32, %arg2: memref<2xi32, #tpu.memory_space<smem>>) -> (i32, i32, i32) {
    %c0_i32 = arith.constant 0 : i32
    %c0_i32_0 = arith.constant 0 : i32
    %c0_i32_1 = arith.constant 0 : i32
    return %arg0, %c0_i32, %c0_i32_0 : i32, i32, i32
  }
  func.func @transform_1(%arg0: i32, %arg1: i32, %arg2: memref<2xi32, #tpu.memory_space<smem>>) -> (i32, i32, i32) {
    %c0_i32 = arith.constant 0 : i32
    %c0_i32_0 = arith.constant 0 : i32
    %c0_i32_1 = arith.constant 0 : i32
    return %arg1, %c0_i32, %c0_i32_0 : i32, i32, i32
  }
  func.func @transform_2(%arg0: i32, %arg1: i32, %arg2: memref<2xi32, #tpu.memory_space<smem>>) -> (i32, i32, i32) {
    %c0_i32 = arith.constant 0 : i32
    %c0_i32_0 = arith.constant 0 : i32
    %c0_i32_1 = arith.constant 0 : i32
    return %arg1, %c0_i32, %c0_i32_0 : i32, i32, i32
  }
  func.func @transform_3(%arg0: i32, %arg1: i32, %arg2: memref<2xi32, #tpu.memory_space<smem>>) -> (i32, i32, i32, i32) {
    %c0_i32 = arith.constant 0 : i32
    %c0_i32_0 = arith.constant 0 : i32
    %c0_i32_1 = arith.constant 0 : i32
    %c0_i32_2 = arith.constant 0 : i32
    return %arg1, %c0_i32, %c0_i32_0, %c0_i32_1 : i32, i32, i32, i32
  }
  func.func @transform_4(%arg0: i32, %arg1: i32, %arg2: memref<2xi32, #tpu.memory_space<smem>>) -> (i32, i32, i32, i32) {
    %c0_i32 = arith.constant 0 : i32
    %c0_i32_0 = arith.constant 0 : i32
    %c0_i32_1 = arith.constant 0 : i32
    %c0_i32_2 = arith.constant 0 : i32
    return %arg1, %c0_i32, %c0_i32_0, %c0_i32_1 : i32, i32, i32, i32
  }
  func.func @transform_5(%arg0: i32, %arg1: i32, %arg2: memref<2xi32, #tpu.memory_space<smem>>) -> (i32, i32, i32, i32) {
    %c0_i32 = arith.constant 0 : i32
    %c0_i32_0 = arith.constant 0 : i32
    %c0_i32_1 = arith.constant 0 : i32
    %c0_i32_2 = arith.constant 0 : i32
    return %arg1, %c0_i32, %c0_i32_0, %c0_i32_1 : i32, i32, i32, i32
  }
  func.func @transform_6(%arg0: i32, %arg1: i32, %arg2: memref<2xi32, #tpu.memory_space<smem>>) -> (i32, i32, i32, i32) {
    %c0_i32 = arith.constant 0 : i32
    %c0_i32_0 = arith.constant 0 : i32
    %c0_i32_1 = arith.constant 0 : i32
    %c0_i32_2 = arith.constant 0 : i32
    return %arg1, %c0_i32, %c0_i32_0, %c0_i32_1 : i32, i32, i32, i32
  }
  func.func @transform_7(%arg0: i32, %arg1: i32, %arg2: memref<2xi32, #tpu.memory_space<smem>>) -> (i32, i32, i32, i32) {
    %c0_i32 = arith.constant 0 : i32
    %c0_i32_0 = arith.constant 0 : i32
    %c0_i32_1 = arith.constant 0 : i32
    %c0_i32_2 = arith.constant 0 : i32
    return %arg1, %c0_i32, %c0_i32_0, %c0_i32_1 : i32, i32, i32, i32
  }
  func.func @transform_8(%arg0: i32, %arg1: i32, %arg2: memref<2xi32, #tpu.memory_space<smem>>) -> (i32, i32, i32, i32) {
    %c0_i32 = arith.constant 0 : i32
    %c0_i32_0 = arith.constant 0 : i32
    %c0_i32_1 = arith.constant 0 : i32
    %c0_i32_2 = arith.constant 0 : i32
    return %arg1, %c0_i32, %c0_i32_0, %c0_i32_1 : i32, i32, i32, i32
  }
  func.func @transform_9(%arg0: i32, %arg1: i32, %arg2: memref<2xi32, #tpu.memory_space<smem>>) -> (i32, i32, i32, i32) {
    %c0_i32 = arith.constant 0 : i32
    %c0_i32_0 = arith.constant 0 : i32
    %c0_i32_1 = arith.constant 0 : i32
    %c0_i32_2 = arith.constant 0 : i32
    return %arg1, %c0_i32, %c0_i32_0, %c0_i32_1 : i32, i32, i32, i32
  }
  func.func @transform_10(%arg0: i32, %arg1: i32, %arg2: memref<2xi32, #tpu.memory_space<smem>>) -> (i32, i32, i32) {
    %c0_i32 = arith.constant 0 : i32
    %c0_i32_0 = arith.constant 0 : i32
    %c0_i32_1 = arith.constant 0 : i32
    return %arg1, %c0_i32, %c0_i32_0 : i32, i32, i32
  }
  func.func @transform_11(%arg0: i32, %arg1: i32, %arg2: memref<2xi32, #tpu.memory_space<smem>>) -> (i32, i32, i32) {
    %c0_i32 = arith.constant 0 : i32
    %c0_i32_0 = arith.constant 0 : i32
    %c0_i32_1 = arith.constant 0 : i32
    return %arg1, %c0_i32, %c0_i32_0 : i32, i32, i32
  }
  func.func @transform_12(%arg0: i32, %arg1: i32, %arg2: memref<2xi32, #tpu.memory_space<smem>>) -> (i32, i32, i32) {
    %c0_i32 = arith.constant 0 : i32
    %c0_i32_0 = arith.constant 0 : i32
    %c0_i32_1 = arith.constant 0 : i32
    return %arg1, %c0_i32, %c0_i32_0 : i32, i32, i32
  }
  func.func @transform_13(%arg0: i32, %arg1: i32, %arg2: memref<2xi32, #tpu.memory_space<smem>>) -> (i32, i32, i32) {
    %c0_i32 = arith.constant 0 : i32
    %c0_i32_0 = arith.constant 0 : i32
    %c0_i32_1 = arith.constant 0 : i32
    return %arg1, %c0_i32, %c0_i32_0 : i32, i32, i32
  }
  func.func @transform_14(%arg0: i32, %arg1: i32, %arg2: memref<2xi32, #tpu.memory_space<smem>>) -> (i32, i32, i32) {
    %c0_i32 = arith.constant 0 : i32
    %c0_i32_0 = arith.constant 0 : i32
    %c0_i32_1 = arith.constant 0 : i32
    return %arg1, %c0_i32, %c0_i32_0 : i32, i32, i32
  }
  func.func @transform_15(%arg0: i32, %arg1: i32, %arg2: memref<2xi32, #tpu.memory_space<smem>>) -> (i32, i32, i32) {
    %c0_i32 = arith.constant 0 : i32
    %c0_i32_0 = arith.constant 0 : i32
    %c0_i32_1 = arith.constant 0 : i32
    return %arg1, %c0_i32, %c0_i32_0 : i32, i32, i32
  }
  func.func @transform_16(%arg0: i32, %arg1: i32, %arg2: memref<2xi32, #tpu.memory_space<smem>>) -> (i32, i32, i32) {
    %c0_i32 = arith.constant 0 : i32
    %c0_i32_0 = arith.constant 0 : i32
    %c0_i32_1 = arith.constant 0 : i32
    return %arg1, %c0_i32, %c0_i32_0 : i32, i32, i32
  }
  func.func @transform_17(%arg0: i32, %arg1: i32, %arg2: memref<2xi32, #tpu.memory_space<smem>>) -> (i32, i32) {
    %c0_i32 = arith.constant 0 : i32
    %c0_i32_0 = arith.constant 0 : i32
    %c0_i32_1 = arith.constant 0 : i32
    return %c0_i32, %c0_i32_0 : i32, i32
  }
  func.func @transform_18(%arg0: i32, %arg1: i32, %arg2: memref<2xi32, #tpu.memory_space<smem>>) -> (i32, i32) {
    %c0_i32 = arith.constant 0 : i32
    %c0_i32_0 = arith.constant 0 : i32
    %c0_i32_1 = arith.constant 0 : i32
    return %c0_i32, %c0_i32_0 : i32, i32
  }
  func.func @transform_19(%arg0: i32, %arg1: i32, %arg2: memref<2xi32, #tpu.memory_space<smem>>) -> (i32, i32) {
    %c0_i32 = arith.constant 0 : i32
    %c0_i32_0 = arith.constant 0 : i32
    %c0_i32_1 = arith.constant 0 : i32
    return %c0_i32, %c0_i32_0 : i32, i32
  }
  func.func @transform_20(%arg0: i32, %arg1: i32, %arg2: memref<2xi32, #tpu.memory_space<smem>>) -> (i32, i32, i32) {
    %c0_i32 = arith.constant 0 : i32
    %c0_i32_0 = arith.constant 0 : i32
    %c0_i32_1 = arith.constant 0 : i32
    return %arg0, %c0_i32, %c0_i32_0 : i32, i32, i32
  }
}

</mosaic_0001>

<llo_original>
// kernel: tile.7
$region0: #{tile.7}
  %s0 = inlined_call_operand.vmem [shape: f32[2,2,32], index: 0, kind: input, shape index: {}]
  %s1 = inlined_call_operand.hbm [shape: f32[2,64], index: 1, kind: output, shape index: {}]
  $region1: #{tile.7} parent=0
    #allocation0 [shape = 'u8[1024]{0}', space=vmem, size = 0x400, scoped, tag = 'operand span for operand 1']
    #allocation1 [shape = 's32[1]{0}', space=sflag, size = 0x4, scoped, tag = 'scoped memory for tile.7']
    #allocation2 [shape = 'u8[4096]{0}', space=vmem, size = 0x1000, scoped, tag = 'scoped mem for output reshape']
    #allocation3 [shape = 'u8[8192]{0}', space=vmem, size = 0x2000, scoped, tag = 'scoped mem for input reshape']
    %2 = vsyncpa [#allocation1], 0
    %s4 = sshllo.u32 0, 2
    %s5 = scalar_lea.vmem %s0, 2
    %v6 = vld [vmem:[%s5] sm:%s4]
    %s7 = scalar_lea.vmem [#allocation3], 8
    %8 = vst [vmem:[%s7] sm:%s4] %v6
    %v9 = vld [vmem:[%s0] sm:%s4]
    %10 = vst [vmem:[#allocation3] sm:%s4] %v9
    %s11 = smov 3
    %v12 = vld [vmem:[#allocation3] ss:$8 sm:%s11]
    %vm13 = vcmask 261120
    %14 = vst.msk [vmem:[#allocation2] sm:$0x3] %vm13, %v12
    %s15 = scalar_lea.vmem [#allocation3], 1
    %s16 = smov 3
    %v17 = vld [vmem:[%s15] ss:$8 sm:%s16]
    %18 = vrot.lane.b32.xlu0 %v17, 32
    %v19 = vpop.permute.xlu0 %18
    %vm20 = vcmask 523520
    %21 = vst.msk [vmem:[#allocation2] sm:$0x3] %vm20, %v19
    %s23 = sshllo.u32 0, 2
    %v25 = vld [vmem:[#allocation2] sm:%s23]
    %s26 = sshllo.u32 0, 2
    %27 = vst [vmem:[#allocation0] sm:%s26] %v25
    %s29 = ssub.s32 32, 32
    %30 = vsyncadd [#allocation1], %s29
    %s32 = sshll.u32 [#allocation0], 4
    %s33 = int_to_ptr.vmem [resolvable:$true] %s32
    %35 = dma.vmem_to_hbm [thread:$0]  %s33, 32, %s1, [#allocation1]
    %36 = dma.done [#allocation1], 32
    %37 = vsyncpa [#allocation1], 1

// kernel: textual_encoder_forward.1
$region0: #{textual_encoder_forward.1}
  #allocation0 [shape = 'u32[]', space=smem, size = 0x4, offset = 0x4, fixed_abs, tag = 'smem constant byte address 0x4 - core index']
  #allocation1 [shape = 'u32[144,128]{1,0:T(1,128)}', space=vmem, size = 0x12000, scoped, tag = 'internal scratch']
  #allocation2 [shape = 'f32[16,32]{1,0:T(8,128)}', space=vmem, size = 0x2000, scoped, tag = 'scratch operand']
  #allocation3 [shape = 's32[1]{0}', space=sflag, size = 0x4, scoped, tag = 'scoped memory for textual_encoder_forward.1']
  #allocation4 [shape = 'u8[512]{0}', space=smem, size = 0x200, scoped, tag = 'prefetched SMEM operand 0']
  %s0 = inlined_call_operand.vmem [shape: s32[2], index: 0, kind: input, shape index: {}]
  %s1 = inlined_call_operand.vmem [shape: f32[2,16,32], index: 1, kind: input, shape index: {}]
  %s2 = inlined_call_operand.vmem [shape: f32[2,1,32], index: 2, kind: input, shape index: {}]
  %s3 = inlined_call_operand.vmem [shape: f32[2,1,32], index: 3, kind: input, shape index: {}]
  %s4 = inlined_call_operand.vmem [shape: bf16[2,4,32,8], index: 4, kind: input, shape index: {}]
  %s5 = inlined_call_operand.vmem [shape: f32[2,4,1,8], index: 5, kind: input, shape index: {}]
  %s6 = inlined_call_operand.vmem [shape: bf16[2,4,32,8], index: 6, kind: input, shape index: {}]
  %s7 = inlined_call_operand.vmem [shape: f32[2,4,1,8], index: 7, kind: input, shape index: {}]
  %s8 = inlined_call_operand.vmem [shape: bf16[2,4,32,8], index: 8, kind: input, shape index: {}]
  %s9 = inlined_call_operand.vmem [shape: f32[2,4,1,8], index: 9, kind: input, shape index: {}]
  %s10 = inlined_call_operand.vmem [shape: bf16[2,4,8,32], index: 10, kind: input, shape index: {}]
  %s11 = inlined_call_operand.vmem [shape: f32[2,1,32], index: 11, kind: input, shape index: {}]
  %s12 = inlined_call_operand.vmem [shape: f32[2,1,32], index: 12, kind: input, shape index: {}]
  %s13 = inlined_call_operand.vmem [shape: f32[2,1,32], index: 13, kind: input, shape index: {}]
  %s14 = inlined_call_operand.vmem [shape: bf16[2,32,128], index: 14, kind: input, shape index: {}]
  %s15 = inlined_call_operand.vmem [shape: f32[2,1,128], index: 15, kind: input, shape index: {}]
  %s16 = inlined_call_operand.vmem [shape: bf16[2,128,32], index: 16, kind: input, shape index: {}]
  %s17 = inlined_call_operand.vmem [shape: f32[2,1,32], index: 17, kind: input, shape index: {}]
  %s18 = inlined_call_operand.vmem [shape: f32[1,32], index: 18, kind: input, shape index: {}]
  %s19 = inlined_call_operand.vmem [shape: f32[1,32], index: 19, kind: input, shape index: {}]
  %s20 = inlined_call_operand.vmem [shape: bf16[32,32], index: 20, kind: input, shape index: {}]
  %s21 = inlined_call_operand.vmem [shape: f32[2,1,32], index: 21, kind: output, shape index: {}]
  %s22 = sld [smem:[#allocation0]]
  $region121: #{textual_encoder_forward.1} parent=0
    _
  %s24 = ssub.s32 1, %s22
  %s25 = scalar_select 0, %s24, %s22
  %s26 = sshll.u32 %s0, 4
  %s27 = int_to_ptr.vmem [resolvable:$true] %s26
  %29 = dma.vmem_to_smem %s27, 16, [#allocation4], [#allocation3]
  %30 = dma.done [#allocation3], 16
  %31 = sfence
  loop: start=0, step=1, limit=6
  $region2: #{textual_encoder_forward.1} parent=0 // loop_pre_header
    _
  $region3: #{textual_encoder_forward.1} parent=0 // loop_header
    %s33 = sphi 0, %s37
    %p34 = scmp.ge.s32.totalorder %s33, 6
    %s40 = sphi 0, %s52
    %s41 = sphi 0, %s48
    %s42 = sphi 0, %s40
    %s43 = sphi 0, %s41
    %s44 = sphi 0, %s42
    %s45 = sphi 0, %s43
    %s55 = sphi 0, %s57
    %s58 = sphi 0, %s55
    %s59 = sphi 0, %s58
    %s75 = sphi 0, %s59
    %s81 = sphi 0, %s83
    %s84 = sphi 0, %s81
    %s85 = sphi 0, %s84
    %s101 = sphi 0, %s85
    %s107 = sphi 0, %s109
    %s110 = sphi 0, %s107
    %s111 = sphi 0, %s110
    %s127 = sphi 0, %s111
    %s133 = sphi 0, %s135
    %s136 = sphi 0, %s133
    %s137 = sphi 0, %s136
    %s153 = sphi 0, %s137
    %s159 = sphi 0, %s161
    %s162 = sphi 0, %s159
    %s163 = sphi 0, %s162
    %s179 = sphi 0, %s163
    %s185 = sphi 0, %s187
    %s188 = sphi 0, %s185
    %s189 = sphi 0, %s188
    %s205 = sphi 0, %s189
    %s211 = sphi 0, %s213
    %s214 = sphi 0, %s211
    %s215 = sphi 0, %s214
    %s231 = sphi 0, %s215
    %s237 = sphi 0, %s239
    %s240 = sphi 0, %s237
    %s241 = sphi 0, %s240
    %s257 = sphi 0, %s241
    %s263 = sphi 0, %s265
    %s266 = sphi 0, %s263
    %s267 = sphi 0, %s266
    %s283 = sphi 0, %s267
    %s289 = sphi 0, %s291
    %s292 = sphi 0, %s289
    %s293 = sphi 0, %s292
    %s309 = sphi 0, %s293
    %s315 = sphi 0, %s317
    %s318 = sphi 0, %s315
    %s319 = sphi 0, %s318
    %s335 = sphi 0, %s319
    %s341 = sphi 0, %s343
    %s344 = sphi 0, %s341
    %s345 = sphi 0, %s344
    %s361 = sphi 0, %s345
    %s367 = sphi 0, %s369
    %s370 = sphi 0, %s367
    %s371 = sphi 0, %s370
    %s387 = sphi 0, %s371
    %s393 = sphi 0, %s395
    %s396 = sphi 0, %s393
    %s397 = sphi 0, %s396
    %s413 = sphi 0, %s397
    %s419 = sphi 0, %s421
    %s422 = sphi 0, %s419
    %s423 = sphi 0, %s422
    %s439 = sphi 0, %s423
    %s445 = sphi 0, %s447
    %s448 = sphi 0, %s445
    %s449 = sphi 0, %s448
    %s465 = sphi 0, %s449
    %s471 = sphi 0, %s473
    %s474 = sphi 0, %s471
    %s475 = sphi 0, %s474
    %s491 = sphi 0, %s475
    %s495 = sphi 0, %s495
    %s497 = sphi 0, %s495
    %s498 = sphi 0, %s497
    %s512 = sphi 0, %s498
    %s516 = sphi 0, %s516
    %s518 = sphi 0, %s516
    %s519 = sphi 0, %s518
    %s533 = sphi 0, %s519
    %s537 = sphi 0, %s537
    %s539 = sphi 0, %s537
    %s540 = sphi 0, %s539
    %s554 = sphi 0, %s540
    %s560 = sphi 0, %s562
    %s563 = sphi 0, %s560
    %s564 = sphi 0, %s563
    %s580 = sphi 0, %s564
  $region4: #{textual_encoder_forward.1} parent=0 // loop_header_branch
    %36 = sbr.rel (%p34) target = $region8
  $region5: #{textual_encoder_forward.1} parent=0 // loop_body
    %s38 = ssub.s32 %s33, 1
    %s39 = ssub.s32 %s33, 2
    %s46 = sadd.s32 1, %s41
    %p47 = scmp.ge.s32.totalorder %s46, 2
    %s48 = scalar_select %p47, 0, %s46
    %s49 = sadd.s32 1, %s40
    %s50 = scalar_select %p47, %s49, %s40
    %p51 = scmp.ge.s32.totalorder %s50, 2
    %s52 = scalar_select %p51, 0, %s50
    %s53 = ssub.s32 %s40, %s52
    %p54 = scmp.eq.s32.totalorder %s53, 0
    %s56 = sadd.s32 %s55, 1
    %s57 = scalar_select %p54, %s55, %s56
    %p60 = pneg %p54
    %p61 = scmp.eq.s32.totalorder %s33, 3
    %p62 = por %p60, %p61
    %p63 = scmp.ne.s32.totalorder %s55, %s58
    %p64 = scmp.eq.s32.totalorder %s33, 0
    %p65 = por %p63, %p64
    %p66 = scmp.ne.s32.totalorder %s55, %s58
    %p67 = scmp.eq.s32.totalorder %s38, 3
    %p68 = por %p66, %p67
    %p69 = scmp.ne.s32.totalorder %s58, %s59
    %p70 = scmp.eq.s32.totalorder %s38, 0
    %p71 = por %p69, %p70
    %p72 = scmp.ne.s32.totalorder %s58, %s59
    %p73 = scmp.eq.s32.totalorder %s39, 3
    %p74 = por %p72, %p73
    %p76 = scmp.ne.s32.totalorder %s59, %s75
    %p77 = scmp.eq.s32.totalorder %s39, 0
    %p78 = por %p76, %p77
    %s79 = ssub.s32 %s41, %s48
    %p80 = scmp.eq.s32.totalorder %s79, 0
    %s82 = sadd.s32 %s81, 1
    %s83 = scalar_select %p80, %s81, %s82
    %p86 = pneg %p80
    %p87 = scmp.eq.s32.totalorder %s33, 3
    %p88 = por %p86, %p87
    %p89 = scmp.ne.s32.totalorder %s81, %s84
    %p90 = scmp.eq.s32.totalorder %s33, 0
    %p91 = por %p89, %p90
    %p92 = scmp.ne.s32.totalorder %s81, %s84
    %p93 = scmp.eq.s32.totalorder %s38, 3
    %p94 = por %p92, %p93
    %p95 = scmp.ne.s32.totalorder %s84, %s85
    %p96 = scmp.eq.s32.totalorder %s38, 0
    %p97 = por %p95, %p96
    %p98 = scmp.ne.s32.totalorder %s84, %s85
    %p99 = scmp.eq.s32.totalorder %s39, 3
    %p100 = por %p98, %p99
    %p102 = scmp.ne.s32.totalorder %s85, %s101
    %p103 = scmp.eq.s32.totalorder %s39, 0
    %p104 = por %p102, %p103
    %s105 = ssub.s32 %s41, %s48
    %p106 = scmp.eq.s32.totalorder %s105, 0
    %s108 = sadd.s32 %s107, 1
    %s109 = scalar_select %p106, %s107, %s108
    %p112 = pneg %p106
    %p113 = scmp.eq.s32.totalorder %s33, 3
    %p114 = por %p112, %p113
    %p115 = scmp.ne.s32.totalorder %s107, %s110
    %p116 = scmp.eq.s32.totalorder %s33, 0
    %p117 = por %p115, %p116
    %p118 = scmp.ne.s32.totalorder %s107, %s110
    %p119 = scmp.eq.s32.totalorder %s38, 3
    %p120 = por %p118, %p119
    %p121 = scmp.ne.s32.totalorder %s110, %s111
    %p122 = scmp.eq.s32.totalorder %s38, 0
    %p123 = por %p121, %p122
    %p124 = scmp.ne.s32.totalorder %s110, %s111
    %p125 = scmp.eq.s32.totalorder %s39, 3
    %p126 = por %p124, %p125
    %p128 = scmp.ne.s32.totalorder %s111, %s127
    %p129 = scmp.eq.s32.totalorder %s39, 0
    %p130 = por %p128, %p129
    %s131 = ssub.s32 %s41, %s48
    %p132 = scmp.eq.s32.totalorder %s131, 0
    %s134 = sadd.s32 %s133, 1
    %s135 = scalar_select %p132, %s133, %s134
    %p138 = pneg %p132
    %p139 = scmp.eq.s32.totalorder %s33, 3
    %p140 = por %p138, %p139
    %p141 = scmp.ne.s32.totalorder %s133, %s136
    %p142 = scmp.eq.s32.totalorder %s33, 0
    %p143 = por %p141, %p142
    %p144 = scmp.ne.s32.totalorder %s133, %s136
    %p145 = scmp.eq.s32.totalorder %s38, 3
    %p146 = por %p144, %p145
    %p147 = scmp.ne.s32.totalorder %s136, %s137
    %p148 = scmp.eq.s32.totalorder %s38, 0
    %p149 = por %p147, %p148
    %p150 = scmp.ne.s32.totalorder %s136, %s137
    %p151 = scmp.eq.s32.totalorder %s39, 3
    %p152 = por %p150, %p151
    %p154 = scmp.ne.s32.totalorder %s137, %s153
    %p155 = scmp.eq.s32.totalorder %s39, 0
    %p156 = por %p154, %p155
    %s157 = ssub.s32 %s41, %s48
    %p158 = scmp.eq.s32.totalorder %s157, 0
    %s160 = sadd.s32 %s159, 1
    %s161 = scalar_select %p158, %s159, %s160
    %p164 = pneg %p158
    %p165 = scmp.eq.s32.totalorder %s33, 3
    %p166 = por %p164, %p165
    %p167 = scmp.ne.s32.totalorder %s159, %s162
    %p168 = scmp.eq.s32.totalorder %s33, 0
    %p169 = por %p167, %p168
    %p170 = scmp.ne.s32.totalorder %s159, %s162
    %p171 = scmp.eq.s32.totalorder %s38, 3
    %p172 = por %p170, %p171
    %p173 = scmp.ne.s32.totalorder %s162, %s163
    %p174 = scmp.eq.s32.totalorder %s38, 0
    %p175 = por %p173, %p174
    %p176 = scmp.ne.s32.totalorder %s162, %s163
    %p177 = scmp.eq.s32.totalorder %s39, 3
    %p178 = por %p176, %p177
    %p180 = scmp.ne.s32.totalorder %s163, %s179
    %p181 = scmp.eq.s32.totalorder %s39, 0
    %p182 = por %p180, %p181
    %s183 = ssub.s32 %s41, %s48
    %p184 = scmp.eq.s32.totalorder %s183, 0
    %s186 = sadd.s32 %s185, 1
    %s187 = scalar_select %p184, %s185, %s186
    %p190 = pneg %p184
    %p191 = scmp.eq.s32.totalorder %s33, 3
    %p192 = por %p190, %p191
    %p193 = scmp.ne.s32.totalorder %s185, %s188
    %p194 = scmp.eq.s32.totalorder %s33, 0
    %p195 = por %p193, %p194
    %p196 = scmp.ne.s32.totalorder %s185, %s188
    %p197 = scmp.eq.s32.totalorder %s38, 3
    %p198 = por %p196, %p197
    %p199 = scmp.ne.s32.totalorder %s188, %s189
    %p200 = scmp.eq.s32.totalorder %s38, 0
    %p201 = por %p199, %p200
    %p202 = scmp.ne.s32.totalorder %s188, %s189
    %p203 = scmp.eq.s32.totalorder %s39, 3
    %p204 = por %p202, %p203
    %p206 = scmp.ne.s32.totalorder %s189, %s205
    %p207 = scmp.eq.s32.totalorder %s39, 0
    %p208 = por %p206, %p207
    %s209 = ssub.s32 %s41, %s48
    %p210 = scmp.eq.s32.totalorder %s209, 0
    %s212 = sadd.s32 %s211, 1
    %s213 = scalar_select %p210, %s211, %s212
    %p216 = pneg %p210
    %p217 = scmp.eq.s32.totalorder %s33, 3
    %p218 = por %p216, %p217
    %p219 = scmp.ne.s32.totalorder %s211, %s214
    %p220 = scmp.eq.s32.totalorder %s33, 0
    %p221 = por %p219, %p220
    %p222 = scmp.ne.s32.totalorder %s211, %s214
    %p223 = scmp.eq.s32.totalorder %s38, 3
    %p224 = por %p222, %p223
    %p225 = scmp.ne.s32.totalorder %s214, %s215
    %p226 = scmp.eq.s32.totalorder %s38, 0
    %p227 = por %p225, %p226
    %p228 = scmp.ne.s32.totalorder %s214, %s215
    %p229 = scmp.eq.s32.totalorder %s39, 3
    %p230 = por %p228, %p229
    %p232 = scmp.ne.s32.totalorder %s215, %s231
    %p233 = scmp.eq.s32.totalorder %s39, 0
    %p234 = por %p232, %p233
    %s235 = ssub.s32 %s41, %s48
    %p236 = scmp.eq.s32.totalorder %s235, 0
    %s238 = sadd.s32 %s237, 1
    %s239 = scalar_select %p236, %s237, %s238
    %p242 = pneg %p236
    %p243 = scmp.eq.s32.totalorder %s33, 3
    %p244 = por %p242, %p243
    %p245 = scmp.ne.s32.totalorder %s237, %s240
    %p246 = scmp.eq.s32.totalorder %s33, 0
    %p247 = por %p245, %p246
    %p248 = scmp.ne.s32.totalorder %s237, %s240
    %p249 = scmp.eq.s32.totalorder %s38, 3
    %p250 = por %p248, %p249
    %p251 = scmp.ne.s32.totalorder %s240, %s241
    %p252 = scmp.eq.s32.totalorder %s38, 0
    %p253 = por %p251, %p252
    %p254 = scmp.ne.s32.totalorder %s240, %s241
    %p255 = scmp.eq.s32.totalorder %s39, 3
    %p256 = por %p254, %p255
    %p258 = scmp.ne.s32.totalorder %s241, %s257
    %p259 = scmp.eq.s32.totalorder %s39, 0
    %p260 = por %p258, %p259
    %s261 = ssub.s32 %s41, %s48
    %p262 = scmp.eq.s32.totalorder %s261, 0
    %s264 = sadd.s32 %s263, 1
    %s265 = scalar_select %p262, %s263, %s264
    %p268 = pneg %p262
    %p269 = scmp.eq.s32.totalorder %s33, 3
    %p270 = por %p268, %p269
    %p271 = scmp.ne.s32.totalorder %s263, %s266
    %p272 = scmp.eq.s32.totalorder %s33, 0
    %p273 = por %p271, %p272
    %p274 = scmp.ne.s32.totalorder %s263, %s266
    %p275 = scmp.eq.s32.totalorder %s38, 3
    %p276 = por %p274, %p275
    %p277 = scmp.ne.s32.totalorder %s266, %s267
    %p278 = scmp.eq.s32.totalorder %s38, 0
    %p279 = por %p277, %p278
    %p280 = scmp.ne.s32.totalorder %s266, %s267
    %p281 = scmp.eq.s32.totalorder %s39, 3
    %p282 = por %p280, %p281
    %p284 = scmp.ne.s32.totalorder %s267, %s283
    %p285 = scmp.eq.s32.totalorder %s39, 0
    %p286 = por %p284, %p285
    %s287 = ssub.s32 %s41, %s48
    %p288 = scmp.eq.s32.totalorder %s287, 0
    %s290 = sadd.s32 %s289, 1
    %s291 = scalar_select %p288, %s289, %s290
    %p294 = pneg %p288
    %p295 = scmp.eq.s32.totalorder %s33, 3
    %p296 = por %p294, %p295
    %p297 = scmp.ne.s32.totalorder %s289, %s292
    %p298 = scmp.eq.s32.totalorder %s33, 0
    %p299 = por %p297, %p298
    %p300 = scmp.ne.s32.totalorder %s289, %s292
    %p301 = scmp.eq.s32.totalorder %s38, 3
    %p302 = por %p300, %p301
    %p303 = scmp.ne.s32.totalorder %s292, %s293
    %p304 = scmp.eq.s32.totalorder %s38, 0
    %p305 = por %p303, %p304
    %p306 = scmp.ne.s32.totalorder %s292, %s293
    %p307 = scmp.eq.s32.totalorder %s39, 3
    %p308 = por %p306, %p307
    %p310 = scmp.ne.s32.totalorder %s293, %s309
    %p311 = scmp.eq.s32.totalorder %s39, 0
    %p312 = por %p310, %p311
    %s313 = ssub.s32 %s41, %s48
    %p314 = scmp.eq.s32.totalorder %s313, 0
    %s316 = sadd.s32 %s315, 1
    %s317 = scalar_select %p314, %s315, %s316
    %p320 = pneg %p314
    %p321 = scmp.eq.s32.totalorder %s33, 3
    %p322 = por %p320, %p321
    %p323 = scmp.ne.s32.totalorder %s315, %s318
    %p324 = scmp.eq.s32.totalorder %s33, 0
    %p325 = por %p323, %p324
    %p326 = scmp.ne.s32.totalorder %s315, %s318
    %p327 = scmp.eq.s32.totalorder %s38, 3
    %p328 = por %p326, %p327
    %p329 = scmp.ne.s32.totalorder %s318, %s319
    %p330 = scmp.eq.s32.totalorder %s38, 0
    %p331 = por %p329, %p330
    %p332 = scmp.ne.s32.totalorder %s318, %s319
    %p333 = scmp.eq.s32.totalorder %s39, 3
    %p334 = por %p332, %p333
    %p336 = scmp.ne.s32.totalorder %s319, %s335
    %p337 = scmp.eq.s32.totalorder %s39, 0
    %p338 = por %p336, %p337
    %s339 = ssub.s32 %s41, %s48
    %p340 = scmp.eq.s32.totalorder %s339, 0
    %s342 = sadd.s32 %s341, 1
    %s343 = scalar_select %p340, %s341, %s342
    %p346 = pneg %p340
    %p347 = scmp.eq.s32.totalorder %s33, 3
    %p348 = por %p346, %p347
    %p349 = scmp.ne.s32.totalorder %s341, %s344
    %p350 = scmp.eq.s32.totalorder %s33, 0
    %p351 = por %p349, %p350
    %p352 = scmp.ne.s32.totalorder %s341, %s344
    %p353 = scmp.eq.s32.totalorder %s38, 3
    %p354 = por %p352, %p353
    %p355 = scmp.ne.s32.totalorder %s344, %s345
    %p356 = scmp.eq.s32.totalorder %s38, 0
    %p357 = por %p355, %p356
    %p358 = scmp.ne.s32.totalorder %s344, %s345
    %p359 = scmp.eq.s32.totalorder %s39, 3
    %p360 = por %p358, %p359
    %p362 = scmp.ne.s32.totalorder %s345, %s361
    %p363 = scmp.eq.s32.totalorder %s39, 0
    %p364 = por %p362, %p363
    %s365 = ssub.s32 %s41, %s48
    %p366 = scmp.eq.s32.totalorder %s365, 0
    %s368 = sadd.s32 %s367, 1
    %s369 = scalar_select %p366, %s367, %s368
    %p372 = pneg %p366
    %p373 = scmp.eq.s32.totalorder %s33, 3
    %p374 = por %p372, %p373
    %p375 = scmp.ne.s32.totalorder %s367, %s370
    %p376 = scmp.eq.s32.totalorder %s33, 0
    %p377 = por %p375, %p376
    %p378 = scmp.ne.s32.totalorder %s367, %s370
    %p379 = scmp.eq.s32.totalorder %s38, 3
    %p380 = por %p378, %p379
    %p381 = scmp.ne.s32.totalorder %s370, %s371
    %p382 = scmp.eq.s32.totalorder %s38, 0
    %p383 = por %p381, %p382
    %p384 = scmp.ne.s32.totalorder %s370, %s371
    %p385 = scmp.eq.s32.totalorder %s39, 3
    %p386 = por %p384, %p385
    %p388 = scmp.ne.s32.totalorder %s371, %s387
    %p389 = scmp.eq.s32.totalorder %s39, 0
    %p390 = por %p388, %p389
    %s391 = ssub.s32 %s41, %s48
    %p392 = scmp.eq.s32.totalorder %s391, 0
    %s394 = sadd.s32 %s393, 1
    %s395 = scalar_select %p392, %s393, %s394
    %p398 = pneg %p392
    %p399 = scmp.eq.s32.totalorder %s33, 3
    %p400 = por %p398, %p399
    %p401 = scmp.ne.s32.totalorder %s393, %s396
    %p402 = scmp.eq.s32.totalorder %s33, 0
    %p403 = por %p401, %p402
    %p404 = scmp.ne.s32.totalorder %s393, %s396
    %p405 = scmp.eq.s32.totalorder %s38, 3
    %p406 = por %p404, %p405
    %p407 = scmp.ne.s32.totalorder %s396, %s397
    %p408 = scmp.eq.s32.totalorder %s38, 0
    %p409 = por %p407, %p408
    %p410 = scmp.ne.s32.totalorder %s396, %s397
    %p411 = scmp.eq.s32.totalorder %s39, 3
    %p412 = por %p410, %p411
    %p414 = scmp.ne.s32.totalorder %s397, %s413
    %p415 = scmp.eq.s32.totalorder %s39, 0
    %p416 = por %p414, %p415
    %s417 = ssub.s32 %s41, %s48
    %p418 = scmp.eq.s32.totalorder %s417, 0
    %s420 = sadd.s32 %s419, 1
    %s421 = scalar_select %p418, %s419, %s420
    %p424 = pneg %p418
    %p425 = scmp.eq.s32.totalorder %s33, 3
    %p426 = por %p424, %p425
    %p427 = scmp.ne.s32.totalorder %s419, %s422
    %p428 = scmp.eq.s32.totalorder %s33, 0
    %p429 = por %p427, %p428
    %p430 = scmp.ne.s32.totalorder %s419, %s422
    %p431 = scmp.eq.s32.totalorder %s38, 3
    %p432 = por %p430, %p431
    %p433 = scmp.ne.s32.totalorder %s422, %s423
    %p434 = scmp.eq.s32.totalorder %s38, 0
    %p435 = por %p433, %p434
    %p436 = scmp.ne.s32.totalorder %s422, %s423
    %p437 = scmp.eq.s32.totalorder %s39, 3
    %p438 = por %p436, %p437
    %p440 = scmp.ne.s32.totalorder %s423, %s439
    %p441 = scmp.eq.s32.totalorder %s39, 0
    %p442 = por %p440, %p441
    %s443 = ssub.s32 %s41, %s48
    %p444 = scmp.eq.s32.totalorder %s443, 0
    %s446 = sadd.s32 %s445, 1
    %s447 = scalar_select %p444, %s445, %s446
    %p450 = pneg %p444
    %p451 = scmp.eq.s32.totalorder %s33, 3
    %p452 = por %p450, %p451
    %p453 = scmp.ne.s32.totalorder %s445, %s448
    %p454 = scmp.eq.s32.totalorder %s33, 0
    %p455 = por %p453, %p454
    %p456 = scmp.ne.s32.totalorder %s445, %s448
    %p457 = scmp.eq.s32.totalorder %s38, 3
    %p458 = por %p456, %p457
    %p459 = scmp.ne.s32.totalorder %s448, %s449
    %p460 = scmp.eq.s32.totalorder %s38, 0
    %p461 = por %p459, %p460
    %p462 = scmp.ne.s32.totalorder %s448, %s449
    %p463 = scmp.eq.s32.totalorder %s39, 3
    %p464 = por %p462, %p463
    %p466 = scmp.ne.s32.totalorder %s449, %s465
    %p467 = scmp.eq.s32.totalorder %s39, 0
    %p468 = por %p466, %p467
    %s469 = ssub.s32 %s41, %s48
    %p470 = scmp.eq.s32.totalorder %s469, 0
    %s472 = sadd.s32 %s471, 1
    %s473 = scalar_select %p470, %s471, %s472
    %p476 = pneg %p470
    %p477 = scmp.eq.s32.totalorder %s33, 3
    %p478 = por %p476, %p477
    %p479 = scmp.ne.s32.totalorder %s471, %s474
    %p480 = scmp.eq.s32.totalorder %s33, 0
    %p481 = por %p479, %p480
    %p482 = scmp.ne.s32.totalorder %s471, %s474
    %p483 = scmp.eq.s32.totalorder %s38, 3
    %p484 = por %p482, %p483
    %p485 = scmp.ne.s32.totalorder %s474, %s475
    %p486 = scmp.eq.s32.totalorder %s38, 0
    %p487 = por %p485, %p486
    %p488 = scmp.ne.s32.totalorder %s474, %s475
    %p489 = scmp.eq.s32.totalorder %s39, 3
    %p490 = por %p488, %p489
    %p492 = scmp.ne.s32.totalorder %s475, %s491
    %p493 = scmp.eq.s32.totalorder %s39, 0
    %p494 = por %p492, %p493
    %s496 = sadd.s32 %s495, 1
    %p499 = scmp.eq.s32.totalorder %s33, 3
    %p500 = scmp.ne.s32.totalorder %s495, %s497
    %p501 = scmp.eq.s32.totalorder %s33, 0
    %p502 = por %p500, %p501
    %p503 = scmp.ne.s32.totalorder %s495, %s497
    %p504 = scmp.eq.s32.totalorder %s38, 3
    %p505 = por %p503, %p504
    %p506 = scmp.ne.s32.totalorder %s497, %s498
    %p507 = scmp.eq.s32.totalorder %s38, 0
    %p508 = por %p506, %p507
    %p509 = scmp.ne.s32.totalorder %s497, %s498
    %p510 = scmp.eq.s32.totalorder %s39, 3
    %p511 = por %p509, %p510
    %p513 = scmp.ne.s32.totalorder %s498, %s512
    %p514 = scmp.eq.s32.totalorder %s39, 0
    %p515 = por %p513, %p514
    %s517 = sadd.s32 %s516, 1
    %p520 = scmp.eq.s32.totalorder %s33, 3
    %p521 = scmp.ne.s32.totalorder %s516, %s518
    %p522 = scmp.eq.s32.totalorder %s33, 0
    %p523 = por %p521, %p522
    %p524 = scmp.ne.s32.totalorder %s516, %s518
    %p525 = scmp.eq.s32.totalorder %s38, 3
    %p526 = por %p524, %p525
    %p527 = scmp.ne.s32.totalorder %s518, %s519
    %p528 = scmp.eq.s32.totalorder %s38, 0
    %p529 = por %p527, %p528
    %p530 = scmp.ne.s32.totalorder %s518, %s519
    %p531 = scmp.eq.s32.totalorder %s39, 3
    %p532 = por %p530, %p531
    %p534 = scmp.ne.s32.totalorder %s519, %s533
    %p535 = scmp.eq.s32.totalorder %s39, 0
    %p536 = por %p534, %p535
    %s538 = sadd.s32 %s537, 1
    %p541 = scmp.eq.s32.totalorder %s33, 3
    %p542 = scmp.ne.s32.totalorder %s537, %s539
    %p543 = scmp.eq.s32.totalorder %s33, 0
    %p544 = por %p542, %p543
    %p545 = scmp.ne.s32.totalorder %s537, %s539
    %p546 = scmp.eq.s32.totalorder %s38, 3
    %p547 = por %p545, %p546
    %p548 = scmp.ne.s32.totalorder %s539, %s540
    %p549 = scmp.eq.s32.totalorder %s38, 0
    %p550 = por %p548, %p549
    %p551 = scmp.ne.s32.totalorder %s539, %s540
    %p552 = scmp.eq.s32.totalorder %s39, 3
    %p553 = por %p551, %p552
    %p555 = scmp.ne.s32.totalorder %s540, %s554
    %p556 = scmp.eq.s32.totalorder %s39, 0
    %p557 = por %p555, %p556
    %s558 = ssub.s32 %s40, %s52
    %p559 = scmp.eq.s32.totalorder %s558, 0
    %s561 = sadd.s32 %s560, 1
    %s562 = scalar_select %p559, %s560, %s561
    %p565 = pneg %p559
    %p566 = scmp.eq.s32.totalorder %s33, 3
    %p567 = por %p565, %p566
    %p568 = scmp.ne.s32.totalorder %s560, %s563
    %p569 = scmp.eq.s32.totalorder %s33, 0
    %p570 = por %p568, %p569
    %p571 = scmp.ne.s32.totalorder %s560, %s563
    %p572 = scmp.eq.s32.totalorder %s38, 3
    %p573 = por %p571, %p572
    %p574 = scmp.ne.s32.totalorder %s563, %s564
    %p575 = scmp.eq.s32.totalorder %s38, 0
    %p576 = por %p574, %p575
    %p577 = scmp.ne.s32.totalorder %s563, %s564
    %p578 = scmp.eq.s32.totalorder %s39, 3
    %p579 = por %p577, %p578
    %p581 = scmp.ne.s32.totalorder %s564, %s580
    %p582 = scmp.eq.s32.totalorder %s39, 0
    %p583 = por %p581, %p582
    %p584 = scmp.le.s32.totalorder 1, %s33
    %p585 = scmp.lt.s32.totalorder %s33, 5
    %p586 = pnand %p584, %p585
    %p587 = pneg %p586
    // Predicated region
    $region9: #{textual_encoder_forward.1} parent=5 // pred_check
      _
    $region10: #{textual_encoder_forward.1} parent=5 // pred_check_branch
      %589 = sbr.rel (%p586) target = $region12
    $region11: #{textual_encoder_forward.1} parent=5 // pred_region
      %s590 = ssub.s32 %s33, 1
      // Predicated region
      $region13: #{textual_encoder_forward.1} parent=11 // pred_check
        %p591 = pneg %p508
      $region14: #{textual_encoder_forward.1} parent=11 // pred_check_branch
        %593 = sbr.rel (%p591) target = $region16
      $region15: #{textual_encoder_forward.1} parent=11 // pred_region
        _
      $region16: #{textual_encoder_forward.1} parent=11 // pred_fallthru
        _
      // Predicated region
      $region17: #{textual_encoder_forward.1} parent=11 // pred_check
        %p594 = pneg %p529
      $region18: #{textual_encoder_forward.1} parent=11 // pred_check_branch
        %596 = sbr.rel (%p594) target = $region20
      $region19: #{textual_encoder_forward.1} parent=11 // pred_region
        _
      $region20: #{textual_encoder_forward.1} parent=11 // pred_fallthru
        _
      // Predicated region
      $region21: #{textual_encoder_forward.1} parent=11 // pred_check
        %p597 = pneg %p550
      $region22: #{textual_encoder_forward.1} parent=11 // pred_check_branch
        %599 = sbr.rel (%p597) target = $region24
      $region23: #{textual_encoder_forward.1} parent=11 // pred_region
        _
      $region24: #{textual_encoder_forward.1} parent=11 // pred_fallthru
        _
    $region12: #{textual_encoder_forward.1} parent=5 // pred_fallthru
      _
    %p600 = scmp.lt.s32.totalorder %s33, 4
    // Predicated region
    $region25: #{textual_encoder_forward.1} parent=5 // pred_check
      %p601 = pneg %p600
    $region26: #{textual_encoder_forward.1} parent=5 // pred_check_branch
      %603 = sbr.rel (%p601) target = $region28
    $region27: #{textual_encoder_forward.1} parent=5 // pred_region
      // Predicated region
      $region29: #{textual_encoder_forward.1} parent=27 // pred_check
        %p604 = pneg %p65
      $region30: #{textual_encoder_forward.1} parent=27 // pred_check_branch
        %606 = sbr.rel (%p604) target = $region32
      $region31: #{textual_encoder_forward.1} parent=27 // pred_region
        %p607 = scmp.lt.s32.totalorder %s40, 1
        %s608 = scalar_select %p607, %s40, 1
        %s609 = smul.addr %s608, 2
        %s610 = smul.addr %s609, 8
        %s611 = scalar_lea.vmem %s1, %s610
      $region32: #{textual_encoder_forward.1} parent=27 // pred_fallthru
        _
      // Predicated region
      $region33: #{textual_encoder_forward.1} parent=27 // pred_check
        %p612 = pneg %p91
      $region34: #{textual_encoder_forward.1} parent=27 // pred_check_branch
        %614 = sbr.rel (%p612) target = $region36
      $region35: #{textual_encoder_forward.1} parent=27 // pred_region
        %p615 = scmp.lt.s32.totalorder %s41, 1
        %s616 = scalar_select %p615, %s41, 1
        %s617 = scalar_lea.vmem %s2, %s616
      $region36: #{textual_encoder_forward.1} parent=27 // pred_fallthru
        _
      // Predicated region
      $region37: #{textual_encoder_forward.1} parent=27 // pred_check
        %p618 = pneg %p117
      $region38: #{textual_encoder_forward.1} parent=27 // pred_check_branch
        %620 = sbr.rel (%p618) target = $region40
      $region39: #{textual_encoder_forward.1} parent=27 // pred_region
        %p621 = scmp.lt.s32.totalorder %s41, 1
        %s622 = scalar_select %p621, %s41, 1
        %s623 = scalar_lea.vmem %s3, %s622
      $region40: #{textual_encoder_forward.1} parent=27 // pred_fallthru
        _
      // Predicated region
      $region41: #{textual_encoder_forward.1} parent=27 // pred_check
        %p624 = pneg %p143
      $region42: #{textual_encoder_forward.1} parent=27 // pred_check_branch
        %626 = sbr.rel (%p624) target = $region44
      $region43: #{textual_encoder_forward.1} parent=27 // pred_region
        %p627 = scmp.lt.s32.totalorder %s41, 1
        %s628 = scalar_select %p627, %s41, 1
        %s629 = smul.addr %s628, 16
        %s630 = smul.addr %s629, 4
        %s631 = scalar_lea.vmem %s4, %s630
      $region44: #{textual_encoder_forward.1} parent=27 // pred_fallthru
        _
      // Predicated region
      $region45: #{textual_encoder_forward.1} parent=27 // pred_check
        %p632 = pneg %p169
      $region46: #{textual_encoder_forward.1} parent=27 // pred_check_branch
        %634 = sbr.rel (%p632) target = $region48
      $region47: #{textual_encoder_forward.1} parent=27 // pred_region
        %p635 = scmp.lt.s32.totalorder %s41, 1
        %s636 = scalar_select %p635, %s41, 1
        %s637 = smul.addr %s636, 4
        %s638 = scalar_lea.vmem %s5, %s637
      $region48: #{textual_encoder_forward.1} parent=27 // pred_fallthru
        _
      // Predicated region
      $region49: #{textual_encoder_forward.1} parent=27 // pred_check
        %p639 = pneg %p195
      $region50: #{textual_encoder_forward.1} parent=27 // pred_check_branch
        %641 = sbr.rel (%p639) target = $region52
      $region51: #{textual_encoder_forward.1} parent=27 // pred_region
        %p642 = scmp.lt.s32.totalorder %s41, 1
        %s643 = scalar_select %p642, %s41, 1
        %s644 = smul.addr %s643, 16
        %s645 = smul.addr %s644, 4
        %s646 = scalar_lea.vmem %s6, %s645
      $region52: #{textual_encoder_forward.1} parent=27 // pred_fallthru
        _
      // Predicated region
      $region53: #{textual_encoder_forward.1} parent=27 // pred_check
        %p647 = pneg %p221
      $region54: #{textual_encoder_forward.1} parent=27 // pred_check_branch
        %649 = sbr.rel (%p647) target = $region56
      $region55: #{textual_encoder_forward.1} parent=27 // pred_region
        %p650 = scmp.lt.s32.totalorder %s41, 1
        %s651 = scalar_select %p650, %s41, 1
        %s652 = smul.addr %s651, 4
        %s653 = scalar_lea.vmem %s7, %s652
      $region56: #{textual_encoder_forward.1} parent=27 // pred_fallthru
        _
      // Predicated region
      $region57: #{textual_encoder_forward.1} parent=27 // pred_check
        %p654 = pneg %p247
      $region58: #{textual_encoder_forward.1} parent=27 // pred_check_branch
        %656 = sbr.rel (%p654) target = $region60
      $region59: #{textual_encoder_forward.1} parent=27 // pred_region
        %p657 = scmp.lt.s32.totalorder %s41, 1
        %s658 = scalar_select %p657, %s41, 1
        %s659 = smul.addr %s658, 16
        %s660 = smul.addr %s659, 4
        %s661 = scalar_lea.vmem %s8, %s660
      $region60: #{textual_encoder_forward.1} parent=27 // pred_fallthru
        _
      // Predicated region
      $region61: #{textual_encoder_forward.1} parent=27 // pred_check
        %p662 = pneg %p273
      $region62: #{textual_encoder_forward.1} parent=27 // pred_check_branch
        %664 = sbr.rel (%p662) target = $region64
      $region63: #{textual_encoder_forward.1} parent=27 // pred_region
        %p665 = scmp.lt.s32.totalorder %s41, 1
        %s666 = scalar_select %p665, %s41, 1
        %s667 = smul.addr %s666, 4
        %s668 = scalar_lea.vmem %s9, %s667
      $region64: #{textual_encoder_forward.1} parent=27 // pred_fallthru
        _
      // Predicated region
      $region65: #{textual_encoder_forward.1} parent=27 // pred_check
        %p669 = pneg %p299
      $region66: #{textual_encoder_forward.1} parent=27 // pred_check_branch
        %671 = sbr.rel (%p669) target = $region68
      $region67: #{textual_encoder_forward.1} parent=27 // pred_region
        %p672 = scmp.lt.s32.totalorder %s41, 1
        %s673 = scalar_select %p672, %s41, 1
        %s674 = smul.addr %s673, 4
        %s675 = smul.addr %s674, 4
        %s676 = scalar_lea.vmem %s10, %s675
      $region68: #{textual_encoder_forward.1} parent=27 // pred_fallthru
        _
      // Predicated region
      $region69: #{textual_encoder_forward.1} parent=27 // pred_check
        %p677 = pneg %p325
      $region70: #{textual_encoder_forward.1} parent=27 // pred_check_branch
        %679 = sbr.rel (%p677) target = $region72
      $region71: #{textual_encoder_forward.1} parent=27 // pred_region
        %p680 = scmp.lt.s32.totalorder %s41, 1
        %s681 = scalar_select %p680, %s41, 1
        %s682 = scalar_lea.vmem %s11, %s681
      $region72: #{textual_encoder_forward.1} parent=27 // pred_fallthru
        _
      // Predicated region
      $region73: #{textual_encoder_forward.1} parent=27 // pred_check
        %p683 = pneg %p351
      $region74: #{textual_encoder_forward.1} parent=27 // pred_check_branch
        %685 = sbr.rel (%p683) target = $region76
      $region75: #{textual_encoder_forward.1} parent=27 // pred_region
        %p686 = scmp.lt.s32.totalorder %s41, 1
        %s687 = scalar_select %p686, %s41, 1
        %s688 = scalar_lea.vmem %s12, %s687
      $region76: #{textual_encoder_forward.1} parent=27 // pred_fallthru
        _
      // Predicated region
      $region77: #{textual_encoder_forward.1} parent=27 // pred_check
        %p689 = pneg %p377
      $region78: #{textual_encoder_forward.1} parent=27 // pred_check_branch
        %691 = sbr.rel (%p689) target = $region80
      $region79: #{textual_encoder_forward.1} parent=27 // pred_region
        %p692 = scmp.lt.s32.totalorder %s41, 1
        %s693 = scalar_select %p692, %s41, 1
        %s694 = scalar_lea.vmem %s13, %s693
      $region80: #{textual_encoder_forward.1} parent=27 // pred_fallthru
        _
      // Predicated region
      $region81: #{textual_encoder_forward.1} parent=27 // pred_check
        %p695 = pneg %p403
      $region82: #{textual_encoder_forward.1} parent=27 // pred_check_branch
        %697 = sbr.rel (%p695) target = $region84
      $region83: #{textual_encoder_forward.1} parent=27 // pred_region
        %p698 = scmp.lt.s32.totalorder %s41, 1
        %s699 = scalar_select %p698, %s41, 1
        %s700 = smul.addr %s699, 4
        %s701 = smul.addr %s700, 4
        %s702 = scalar_lea.vmem %s14, %s701
      $region84: #{textual_encoder_forward.1} parent=27 // pred_fallthru
        _
      // Predicated region
      $region85: #{textual_encoder_forward.1} parent=27 // pred_check
        %p703 = pneg %p429
      $region86: #{textual_encoder_forward.1} parent=27 // pred_check_branch
        %705 = sbr.rel (%p703) target = $region88
      $region87: #{textual_encoder_forward.1} parent=27 // pred_region
        %p706 = scmp.lt.s32.totalorder %s41, 1
        %s707 = scalar_select %p706, %s41, 1
        %s708 = scalar_lea.vmem %s15, %s707
      $region88: #{textual_encoder_forward.1} parent=27 // pred_fallthru
        _
      // Predicated region
      $region89: #{textual_encoder_forward.1} parent=27 // pred_check
        %p709 = pneg %p455
      $region90: #{textual_encoder_forward.1} parent=27 // pred_check_branch
        %711 = sbr.rel (%p709) target = $region92
      $region91: #{textual_encoder_forward.1} parent=27 // pred_region
        %p712 = scmp.lt.s32.totalorder %s41, 1
        %s713 = scalar_select %p712, %s41, 1
        %s714 = smul.addr %s713, 16
        %s715 = smul.addr %s714, 4
        %s716 = scalar_lea.vmem %s16, %s715
      $region92: #{textual_encoder_forward.1} parent=27 // pred_fallthru
        _
      // Predicated region
      $region93: #{textual_encoder_forward.1} parent=27 // pred_check
        %p717 = pneg %p481
      $region94: #{textual_encoder_forward.1} parent=27 // pred_check_branch
        %719 = sbr.rel (%p717) target = $region96
      $region95: #{textual_encoder_forward.1} parent=27 // pred_region
        %p720 = scmp.lt.s32.totalorder %s41, 1
        %s721 = scalar_select %p720, %s41, 1
        %s722 = scalar_lea.vmem %s17, %s721
      $region96: #{textual_encoder_forward.1} parent=27 // pred_fallthru
        _
    $region28: #{textual_encoder_forward.1} parent=5 // pred_fallthru
      _
    %p723 = scmp.le.s32.totalorder 1, %s33
    %p724 = scmp.lt.s32.totalorder %s33, 5
    %p725 = pnand %p723, %p724
    %p726 = pneg %p725
    // Predicated region
    $region97: #{textual_encoder_forward.1} parent=5 // pred_check
      _
    $region98: #{textual_encoder_forward.1} parent=5 // pred_check_branch
      %728 = sbr.rel (%p725) target = $region100
    $region99: #{textual_encoder_forward.1} parent=5 // pred_region
      %s729 = ssub.s32 %s33, 1
      %p730 = scmp.lt.s32.totalorder %s42, 1
      %s731 = scalar_select %p730, %s42, 1
      %s732 = smul.addr %s731, 2
      %s733 = smul.addr %s732, 8
      %s734 = scalar_lea.vmem %s1, %s733
      %p735 = pneg %p71
      %p736 = pneg %p68
      %p737 = scmp.lt.s32.totalorder %s43, 1
      %s738 = scalar_select %p737, %s43, 1
      %s739 = scalar_lea.vmem %s2, %s738
      %p740 = pneg %p97
      %p741 = pneg %p94
      %p742 = scmp.lt.s32.totalorder %s43, 1
      %s743 = scalar_select %p742, %s43, 1
      %s744 = scalar_lea.vmem %s3, %s743
      %p745 = pneg %p123
      %p746 = pneg %p120
      %p747 = scmp.lt.s32.totalorder %s43, 1
      %s748 = scalar_select %p747, %s43, 1
      %s749 = smul.addr %s748, 16
      %s750 = smul.addr %s749, 4
      %s751 = scalar_lea.vmem %s4, %s750
      %p752 = pneg %p149
      %p753 = pneg %p146
      %p754 = scmp.lt.s32.totalorder %s43, 1
      %s755 = scalar_select %p754, %s43, 1
      %s756 = smul.addr %s755, 4
      %s757 = scalar_lea.vmem %s5, %s756
      %p758 = pneg %p175
      %p759 = pneg %p172
      %p760 = scmp.lt.s32.totalorder %s43, 1
      %s761 = scalar_select %p760, %s43, 1
      %s762 = smul.addr %s761, 16
      %s763 = smul.addr %s762, 4
      %s764 = scalar_lea.vmem %s6, %s763
      %p765 = pneg %p201
      %p766 = pneg %p198
      %p767 = scmp.lt.s32.totalorder %s43, 1
      %s768 = scalar_select %p767, %s43, 1
      %s769 = smul.addr %s768, 4
      %s770 = scalar_lea.vmem %s7, %s769
      %p771 = pneg %p227
      %p772 = pneg %p224
      %p773 = scmp.lt.s32.totalorder %s43, 1
      %s774 = scalar_select %p773, %s43, 1
      %s775 = smul.addr %s774, 16
      %s776 = smul.addr %s775, 4
      %s777 = scalar_lea.vmem %s8, %s776
      %p778 = pneg %p253
      %p779 = pneg %p250
      %p780 = scmp.lt.s32.totalorder %s43, 1
      %s781 = scalar_select %p780, %s43, 1
      %s782 = smul.addr %s781, 4
      %s783 = scalar_lea.vmem %s9, %s782
      %p784 = pneg %p279
      %p785 = pneg %p276
      %p786 = scmp.lt.s32.totalorder %s43, 1
      %s787 = scalar_select %p786, %s43, 1
      %s788 = smul.addr %s787, 4
      %s789 = smul.addr %s788, 4
      %s790 = scalar_lea.vmem %s10, %s789
      %p791 = pneg %p305
      %p792 = pneg %p302
      %p793 = scmp.lt.s32.totalorder %s43, 1
      %s794 = scalar_select %p793, %s43, 1
      %s795 = scalar_lea.vmem %s11, %s794
      %p796 = pneg %p331
      %p797 = pneg %p328
      %p798 = scmp.lt.s32.totalorder %s43, 1
      %s799 = scalar_select %p798, %s43, 1
      %s800 = scalar_lea.vmem %s12, %s799
      %p801 = pneg %p357
      %p802 = pneg %p354
      %p803 = scmp.lt.s32.totalorder %s43, 1
      %s804 = scalar_select %p803, %s43, 1
      %s805 = scalar_lea.vmem %s13, %s804
      %p806 = pneg %p383
      %p807 = pneg %p380
      %p808 = scmp.lt.s32.totalorder %s43, 1
      %s809 = scalar_select %p808, %s43, 1
      %s810 = smul.addr %s809, 4
      %s811 = smul.addr %s810, 4
      %s812 = scalar_lea.vmem %s14, %s811
      %p813 = pneg %p409
      %p814 = pneg %p406
      %p815 = scmp.lt.s32.totalorder %s43, 1
      %s816 = scalar_select %p815, %s43, 1
      %s817 = scalar_lea.vmem %s15, %s816
      %p818 = pneg %p435
      %p819 = pneg %p432
      %p820 = scmp.lt.s32.totalorder %s43, 1
      %s821 = scalar_select %p820, %s43, 1
      %s822 = smul.addr %s821, 16
      %s823 = smul.addr %s822, 4
      %s824 = scalar_lea.vmem %s16, %s823
      %p825 = pneg %p461
      %p826 = pneg %p458
      %p827 = scmp.lt.s32.totalorder %s43, 1
      %s828 = scalar_select %p827, %s43, 1
      %s829 = scalar_lea.vmem %s17, %s828
      %p830 = pneg %p487
      %p831 = pneg %p484
      %p832 = pneg %p508
      %p833 = pneg %p505
      %p834 = pneg %p529
      %p835 = pneg %p526
      %p836 = pneg %p550
      %p837 = pneg %p547
      %p838 = pneg %p576
      %p839 = pneg %p573
      %p840 = scmp.lt.s32.totalorder %s42, 1
      %s841 = scalar_select %p840, %s42, 1
      %s842 = scalar_lea.vmem %s21, %s841
      %p843 = scmp.lt.s32.totalorder %s42, 1
      %s844 = scalar_select %p843, %s42, 1
      %s845 = smul.addr %s844, 2
      %s846 = smul.addr %s845, 8
      %s847 = scalar_lea.vmem %s1, %s846
      %p848 = scmp.lt.s32.totalorder %s43, 1
      %s849 = scalar_select %p848, %s43, 1
      %s850 = scalar_lea.vmem %s2, %s849
      %p851 = scmp.lt.s32.totalorder %s43, 1
      %s852 = scalar_select %p851, %s43, 1
      %s853 = scalar_lea.vmem %s3, %s852
      %p854 = scmp.lt.s32.totalorder %s43, 1
      %s855 = scalar_select %p854, %s43, 1
      %s856 = smul.addr %s855, 16
      %s857 = smul.addr %s856, 4
      %s858 = scalar_lea.vmem %s4, %s857
      %p859 = scmp.lt.s32.totalorder %s43, 1
      %s860 = scalar_select %p859, %s43, 1
      %s861 = smul.addr %s860, 4
      %s862 = scalar_lea.vmem %s5, %s861
      %p863 = scmp.lt.s32.totalorder %s43, 1
      %s864 = scalar_select %p863, %s43, 1
      %s865 = smul.addr %s864, 16
      %s866 = smul.addr %s865, 4
      %s867 = scalar_lea.vmem %s6, %s866
      %p868 = scmp.lt.s32.totalorder %s43, 1
      %s869 = scalar_select %p868, %s43, 1
      %s870 = smul.addr %s869, 4
      %s871 = scalar_lea.vmem %s7, %s870
      %p872 = scmp.lt.s32.totalorder %s43, 1
      %s873 = scalar_select %p872, %s43, 1
      %s874 = smul.addr %s873, 16
      %s875 = smul.addr %s874, 4
      %s876 = scalar_lea.vmem %s8, %s875
      %p877 = scmp.lt.s32.totalorder %s43, 1
      %s878 = scalar_select %p877, %s43, 1
      %s879 = smul.addr %s878, 4
      %s880 = scalar_lea.vmem %s9, %s879
      %p881 = scmp.lt.s32.totalorder %s43, 1
      %s882 = scalar_select %p881, %s43, 1
      %s883 = smul.addr %s882, 4
      %s884 = smul.addr %s883, 4
      %s885 = scalar_lea.vmem %s10, %s884
      %p886 = scmp.lt.s32.totalorder %s43, 1
      %s887 = scalar_select %p886, %s43, 1
      %s888 = scalar_lea.vmem %s11, %s887
      %p889 = scmp.lt.s32.totalorder %s43, 1
      %s890 = scalar_select %p889, %s43, 1
      %s891 = scalar_lea.vmem %s12, %s890
      %p892 = scmp.lt.s32.totalorder %s43, 1
      %s893 = scalar_select %p892, %s43, 1
      %s894 = scalar_lea.vmem %s13, %s893
      %p895 = scmp.lt.s32.totalorder %s43, 1
      %s896 = scalar_select %p895, %s43, 1
      %s897 = smul.addr %s896, 4
      %s898 = smul.addr %s897, 4
      %s899 = scalar_lea.vmem %s14, %s898
      %p900 = scmp.lt.s32.totalorder %s43, 1
      %s901 = scalar_select %p900, %s43, 1
      %s902 = scalar_lea.vmem %s15, %s901
      %p903 = scmp.lt.s32.totalorder %s43, 1
      %s904 = scalar_select %p903, %s43, 1
      %s905 = smul.addr %s904, 16
      %s906 = smul.addr %s905, 4
      %s907 = scalar_lea.vmem %s16, %s906
      %p908 = scmp.lt.s32.totalorder %s43, 1
      %s909 = scalar_select %p908, %s43, 1
      %s910 = scalar_lea.vmem %s17, %s909
      %p911 = scmp.lt.s32.totalorder %s42, 1
      %s912 = scalar_select %p911, %s42, 1
      %s913 = scalar_lea.vmem %s21, %s912
      %p915 = scmp.eq.s32.totalorder %s43, 0
      // Predicated region
      $region101: #{textual_encoder_forward.1} parent=99 // pred_check
        %p916 = pneg %p915
      $region102: #{textual_encoder_forward.1} parent=99 // pred_check_branch
        %918 = sbr.rel (%p916) target = $region104
      $region103: #{textual_encoder_forward.1} parent=99 // pred_region
        %v919 = vld [vmem:[%s847] sm:$0xff]
        %v920 = vld [vmem:[%s847 + $0x8] sm:$0xff]
        %vm921 = vcmask 261120
        %922 = vst.msk [vmem:[#allocation2] sm:$0xff] %vm921, %v919
        %923 = vst.msk [vmem:[#allocation2 + $0x8] sm:$0xff] %vm921, %v920
      $region104: #{textual_encoder_forward.1} parent=99 // pred_fallthru
        _
      %v924 = vld [vmem:[#allocation2] sm:$0xff]
      %v925 = vld [vmem:[#allocation2 + $0x8] sm:$0xff]
      %v926 = vld [vmem:[%s850] sm:$0x1]
      %v927 = vld [vmem:[%s853] sm:$0x1]
      %vm928 = vcmask 261120
      %v929 = vsel %vm928, %v924, 0.0
      %930 = vadd.xlane.f32.xlu0 %v929
      %v931 = vpop.xlane.xlu0 %930
      %v932 = vsel %vm928, %v925, 0.0
      %933 = vadd.xlane.f32.xlu0 %v932
      %v934 = vpop.xlane.xlu0 %933
      %v935 = vrcp.pop 32.0
      %v936 = vmul.f32 %v931, %v935
      %v937 = vmul.f32 %v934, %v935
      %v938 = vsub.f32 %v924, %v936
      %v939 = vsub.f32 %v925, %v937
      %v940 = vmul.f32 %v938, %v938
      %v941 = vmul.f32 %v939, %v939
      %v942 = vsel %vm928, %v940, 0.0
      %943 = vadd.xlane.f32.xlu0 %v942
      %v944 = vpop.xlane.xlu0 %943
      %v945 = vsel %vm928, %v941, 0.0
      %946 = vadd.xlane.f32.xlu0 %v945
      %v947 = vpop.xlane.xlu0 %946
      %v948 = vmul.f32 %v944, %v935
      %v949 = vmul.f32 %v947, %v935
      %v950 = vadd.f32 %v948, 1e-05
      %v951 = vadd.f32 %v949, 1e-05
      %v952 = vrsqrt.pop %v950
      %v953 = vrsqrt.pop %v951
      %v954 = vmul.f32 %v938, %v952
      %v955 = vmul.f32 %v939, %v953
      %v957 = vlaneseq
      %v958 = vshrl.u32 %v957, 7
      %v959 = vsub.s32 0, %v958
      %v960 = vrot.slane %v926, %v959
      %v962 = vmul.f32 %v954, %v960
      %v963 = vmul.f32 %v955, %v960
      %v965 = vlaneseq
      %v966 = vshrl.u32 %v965, 7
      %v967 = vsub.s32 0, %v966
      %v968 = vrot.slane %v927, %v967
      %v970 = vadd.f32 %v962, %v968
      %v971 = vadd.f32 %v963, %v968
      %v972 = vpack.c.bf16 %v971, %v970
      %v973 = vlaneseq
      %v974 = vshrl.u32 %v973, 7
      %v975 = vadd.s32 %v974, 8
      %v976 = vlaneseq
      %v977 = vand.u32 %v976, 127
      %vm978 = vcmp.le.s32.totalorder %v977, %v974
      %vm979 = vcmp.le.s32.totalorder %v977, %v975
      %v980 = vld [vmem:[%s858] sm:$0xf]
      %v981 = vld [vmem:[%s858 + $0x4] sm:$0xf]
      %v982 = vld [vmem:[%s858 + $0x8] sm:$0xf]
      %v983 = vld [vmem:[%s858 + $0xc] sm:$0xf]
      %v984 = vld [vmem:[%s862] sm:$0x1]
      %v986 = vlaneseq
      %v987 = vshrl.u32 %v986, 7
      %v988 = vsub.s32 0, %v987
      %v989 = vrot.slane %v984, %v988
      %v995 = vunpack.c.l.b16 %v980
      %v996 = vunpack.c.l.b16 %v981
      %v997 = vunpack.c.l.b16 %v982
      %v998 = vunpack.c.l.b16 %v983
      %v999 = vpack.c.b16 %v996, %v995
      %v1000 = vpack.c.b16 %v998, %v997
      %v1004 = vsel %vm928, %v972, 0
      %1006 = vmatprep.subr.bf16.mxu0 0
      %1007 = vmatpush1.bf16.msra.mxu0 %v999
      %1008 = vmatprep.subr.bf16.mxu0 0
      %1009 = vmatpush1.bf16.msra.mxu0 %v1000
      %1010 = vmatprep.subr.bf16.mxu0 0
      %1011 = vmatpush1.bf16.msra.mxu0 0
      %1012 = vmatprep.subr.bf16.mxu0 0
      %1013 = vmatpush1.bf16.msra.mxu0 0
      %1014 = vmatprep.subr.bf16.mxu0 0
      %1015 = vmatpush1.bf16.msra.mxu0 0
      %1016 = vmatprep.subr.bf16.mxu0 0
      %1017 = vmatpush1.bf16.msra.mxu0 0
      %1018 = vmatprep.subr.bf16.mxu0 0
      %1019 = vmatpush1.bf16.msra.mxu0 0
      %1020 = vmatprep.subr.bf16.mxu0 0
      %1021 = vmatpush1.bf16.msra.mxu0 0
      %1022 = vmatprep.subr.bf16.mxu0 0
      %1023 = vmatpush1.bf16.msra.mxu0 0
      %1024 = vmatprep.subr.bf16.mxu0 0
      %1025 = vmatpush1.bf16.msra.mxu0 0
      %1026 = vmatprep.subr.bf16.mxu0 0
      %1027 = vmatpush1.bf16.msra.mxu0 0
      %1028 = vmatprep.subr.bf16.mxu0 0
      %1029 = vmatpush1.bf16.msra.mxu0 0
      %1030 = vmatprep.subr.bf16.mxu0 0
      %1031 = vmatpush1.bf16.msra.mxu0 0
      %1032 = vmatprep.subr.bf16.mxu0 0
      %1033 = vmatpush1.bf16.msra.mxu0 0
      %1034 = vmatprep.subr.bf16.mxu0 0
      %1035 = vmatpush1.bf16.msra.mxu0 0
      %1036 = vmatprep.subr.bf16.mxu0 0
      %1037 = vmatpush1.bf16.msra.mxu0 0
      %1038 = vmatprep.mubr.bf16.mxu0 0
      %1039 = vmatmul.mubr.bf16.gmra.mrb[0].mxu0 %v1004
      %v1040 = vpop.f32.mrb[0].mxu0
      %v1041 = vadd.f32 %v989, %v1040
      %v1042 = vpop.f32.mrb[0].mxu0
      %v1043 = vpop.f32.mrb[0].mxu0
      %v1044 = vadd.f32 %v989, %v1043
      %v1045 = vpop.f32.mrb[0].mxu0
      %1046 = vdwg.mxu0
      %v1047 = vmul.f32 %v1041, 0.35355338
      %v1048 = vmul.f32 %v1044, 0.35355338
      %v1049 = vld [vmem:[%s867] sm:$0xf]
      %v1050 = vld [vmem:[%s867 + $0x4] sm:$0xf]
      %v1051 = vld [vmem:[%s867 + $0x8] sm:$0xf]
      %v1052 = vld [vmem:[%s867 + $0xc] sm:$0xf]
      %v1053 = vld [vmem:[%s871] sm:$0x1]
      %v1055 = vlaneseq
      %v1056 = vshrl.u32 %v1055, 7
      %v1057 = vsub.s32 0, %v1056
      %v1058 = vrot.slane %v1053, %v1057
      %v1064 = vunpack.c.l.b16 %v1049
      %v1065 = vunpack.c.l.b16 %v1050
      %v1066 = vunpack.c.l.b16 %v1051
      %v1067 = vunpack.c.l.b16 %v1052
      %v1068 = vpack.c.b16 %v1065, %v1064
      %v1069 = vpack.c.b16 %v1067, %v1066
      %1072 = vmatprep.subr.bf16.mxu0 0
      %1073 = vmatpush1.bf16.msra.mxu0 %v1068
      %1074 = vmatprep.subr.bf16.mxu0 0
      %1075 = vmatpush1.bf16.msra.mxu0 %v1069
      %1076 = vmatprep.subr.bf16.mxu0 0
      %1077 = vmatpush1.bf16.msra.mxu0 0
      %1078 = vmatprep.subr.bf16.mxu0 0
      %1079 = vmatpush1.bf16.msra.mxu0 0
      %1080 = vmatprep.subr.bf16.mxu0 0
      %1081 = vmatpush1.bf16.msra.mxu0 0
      %1082 = vmatprep.subr.bf16.mxu0 0
      %1083 = vmatpush1.bf16.msra.mxu0 0
      %1084 = vmatprep.subr.bf16.mxu0 0
      %1085 = vmatpush1.bf16.msra.mxu0 0
      %1086 = vmatprep.subr.bf16.mxu0 0
      %1087 = vmatpush1.bf16.msra.mxu0 0
      %1088 = vmatprep.subr.bf16.mxu0 0
      %1089 = vmatpush1.bf16.msra.mxu0 0
      %1090 = vmatprep.subr.bf16.mxu0 0
      %1091 = vmatpush1.bf16.msra.mxu0 0
      %1092 = vmatprep.subr.bf16.mxu0 0
      %1093 = vmatpush1.bf16.msra.mxu0 0
      %1094 = vmatprep.subr.bf16.mxu0 0
      %1095 = vmatpush1.bf16.msra.mxu0 0
      %1096 = vmatprep.subr.bf16.mxu0 0
      %1097 = vmatpush1.bf16.msra.mxu0 0
      %1098 = vmatprep.subr.bf16.mxu0 0
      %1099 = vmatpush1.bf16.msra.mxu0 0
      %1100 = vmatprep.subr.bf16.mxu0 0
      %1101 = vmatpush1.bf16.msra.mxu0 0
      %1102 = vmatprep.subr.bf16.mxu0 0
      %1103 = vmatpush1.bf16.msra.mxu0 0
      %1104 = vmatprep.mubr.bf16.mxu0 0
      %1105 = vmatmul.mubr.bf16.gmra.mrb[0].mxu0 %v1004
      %v1106 = vpop.f32.mrb[0].mxu0
      %v1107 = vadd.f32 %v1058, %v1106
      %v1108 = vpop.f32.mrb[0].mxu0
      %v1109 = vpop.f32.mrb[0].mxu0
      %v1110 = vadd.f32 %v1058, %v1109
      %v1111 = vpop.f32.mrb[0].mxu0
      %1112 = vdwg.mxu0
      %v1113 = vld [vmem:[%s876] sm:$0xf]
      %v1114 = vld [vmem:[%s876 + $0x4] sm:$0xf]
      %v1115 = vld [vmem:[%s876 + $0x8] sm:$0xf]
      %v1116 = vld [vmem:[%s876 + $0xc] sm:$0xf]
      %v1117 = vld [vmem:[%s880] sm:$0x1]
      %v1119 = vlaneseq
      %v1120 = vshrl.u32 %v1119, 7
      %v1121 = vsub.s32 0, %v1120
      %v1122 = vrot.slane %v1117, %v1121
      %v1128 = vunpack.c.l.b16 %v1113
      %v1129 = vunpack.c.l.b16 %v1114
      %v1130 = vunpack.c.l.b16 %v1115
      %v1131 = vunpack.c.l.b16 %v1116
      %v1132 = vpack.c.b16 %v1129, %v1128
      %v1133 = vpack.c.b16 %v1131, %v1130
      %1136 = vmatprep.subr.bf16.mxu0 0
      %1137 = vmatpush1.bf16.msra.mxu0 %v1132
      %1138 = vmatprep.subr.bf16.mxu0 0
      %1139 = vmatpush1.bf16.msra.mxu0 %v1133
      %1140 = vmatprep.subr.bf16.mxu0 0
      %1141 = vmatpush1.bf16.msra.mxu0 0
      %1142 = vmatprep.subr.bf16.mxu0 0
      %1143 = vmatpush1.bf16.msra.mxu0 0
      %1144 = vmatprep.subr.bf16.mxu0 0
      %1145 = vmatpush1.bf16.msra.mxu0 0
      %1146 = vmatprep.subr.bf16.mxu0 0
      %1147 = vmatpush1.bf16.msra.mxu0 0
      %1148 = vmatprep.subr.bf16.mxu0 0
      %1149 = vmatpush1.bf16.msra.mxu0 0
      %1150 = vmatprep.subr.bf16.mxu0 0
      %1151 = vmatpush1.bf16.msra.mxu0 0
      %1152 = vmatprep.subr.bf16.mxu0 0
      %1153 = vmatpush1.bf16.msra.mxu0 0
      %1154 = vmatprep.subr.bf16.mxu0 0
      %1155 = vmatpush1.bf16.msra.mxu0 0
      %1156 = vmatprep.subr.bf16.mxu0 0
      %1157 = vmatpush1.bf16.msra.mxu0 0
      %1158 = vmatprep.subr.bf16.mxu0 0
      %1159 = vmatpush1.bf16.msra.mxu0 0
      %1160 = vmatprep.subr.bf16.mxu0 0
      %1161 = vmatpush1.bf16.msra.mxu0 0
      %1162 = vmatprep.subr.bf16.mxu0 0
      %1163 = vmatpush1.bf16.msra.mxu0 0
      %1164 = vmatprep.subr.bf16.mxu0 0
      %1165 = vmatpush1.bf16.msra.mxu0 0
      %1166 = vmatprep.subr.bf16.mxu0 0
      %1167 = vmatpush1.bf16.msra.mxu0 0
      %1168 = vmatprep.mubr.bf16.mxu0 0
      %1169 = vmatmul.mubr.bf16.gmra.mrb[0].mxu0 %v1004
      %v1170 = vpop.f32.mrb[0].mxu0
      %v1171 = vadd.f32 %v1122, %v1170
      %v1172 = vpop.f32.mrb[0].mxu0
      %v1173 = vpop.f32.mrb[0].mxu0
      %v1174 = vadd.f32 %v1122, %v1173
      %v1175 = vpop.f32.mrb[0].mxu0
      %1176 = vdwg.mxu0
      %v1177 = vpack.c.bf16 %v1048, %v1047
      %v1178 = vpack.c.bf16 %v1110, %v1107
      %vm1179 = vcmask 64512
      %v1181 = vsel %vm1179, %v1177, 0
      %v1184 = vsel %vm1179, %v1178, 0
      %1186 = vmatprep.subr.bf16.mxu0 0
      %1187 = vmatpush1.bf16.xpose.msra.mxu0 %v1184
      %1188 = vmatprep.subr.bf16.mxu0 0
      %1189 = vmatpush1.bf16.xpose.msra.mxu0 0
      %1190 = vmatprep.subr.bf16.mxu0 0
      %1191 = vmatpush1.bf16.xpose.msra.mxu0 0
      %1192 = vmatprep.subr.bf16.mxu0 0
      %1193 = vmatpush1.bf16.xpose.msra.mxu0 0
      %1194 = vmatprep.subr.bf16.mxu0 0
      %1195 = vmatpush1.bf16.xpose.msra.mxu0 0
      %1196 = vmatprep.subr.bf16.mxu0 0
      %1197 = vmatpush1.bf16.xpose.msra.mxu0 0
      %1198 = vmatprep.subr.bf16.mxu0 0
      %1199 = vmatpush1.bf16.xpose.msra.mxu0 0
      %1200 = vmatprep.subr.bf16.mxu0 0
      %1201 = vmatpush1.bf16.xpose.msra.mxu0 0
      %1202 = vmatprep.subr.bf16.mxu0 0
      %1203 = vmatpush1.bf16.xpose.msra.mxu0 0
      %1204 = vmatprep.subr.bf16.mxu0 0
      %1205 = vmatpush1.bf16.xpose.msra.mxu0 0
      %1206 = vmatprep.subr.bf16.mxu0 0
      %1207 = vmatpush1.bf16.xpose.msra.mxu0 0
      %1208 = vmatprep.subr.bf16.mxu0 0
      %1209 = vmatpush1.bf16.xpose.msra.mxu0 0
      %1210 = vmatprep.subr.bf16.mxu0 0
      %1211 = vmatpush1.bf16.xpose.msra.mxu0 0
      %1212 = vmatprep.subr.bf16.mxu0 0
      %1213 = vmatpush1.bf16.xpose.msra.mxu0 0
      %1214 = vmatprep.subr.bf16.mxu0 0
      %1215 = vmatpush1.bf16.xpose.msra.mxu0 0
      %1216 = vmatprep.subr.bf16.mxu0 0
      %1217 = vmatpush1.bf16.xpose.msra.mxu0 0
      %1218 = vmatprep.mubr.bf16.mxu0 0
      %1219 = vmatmul.mubr.bf16.gmra.mrb[0].mxu0 %v1181
      %v1220 = vpop.f32.mrb[0].mxu0
      %v1221 = vadd.f32 0.0, %v1220
      %v1222 = vpop.f32.mrb[0].mxu0
      %v1223 = vpop.f32.mrb[0].mxu0
      %v1224 = vadd.f32 0.0, %v1223
      %v1225 = vpop.f32.mrb[0].mxu0
      %1226 = vdwg.mxu0
      %v1227 = vsel %vm978, %v1221, -1e+09
      %v1228 = vsel %vm979, %v1224, -1e+09
      %vm1229 = vcmask 130048
      %v1230 = vsel %vm1229, %v1227, -inf
      %1231 = vmax.xlane.f32.xlu0 %v1230
      %v1232 = vpop.xlane.xlu0 %1231
      %v1233 = vsel %vm1229, %v1228, -inf
      %1234 = vmax.xlane.f32.xlu0 %v1233
      %v1235 = vpop.xlane.xlu0 %1234
      %v1236 = vsub.f32 %v1227, %v1232
      %v1237 = vsub.f32 %v1228, %v1235
      %v1238 = vmul.f32 %v1236, 1.442695
      %v1239 = vpow.pop %v1238
      %v1240 = vmul.f32 %v1237, 1.442695
      %v1241 = vpow.pop %v1240
      %v1242 = vsel %vm1229, %v1239, 0.0
      %1243 = vadd.xlane.f32.xlu0 %v1242
      %v1244 = vpop.xlane.xlu0 %1243
      %v1245 = vsel %vm1229, %v1241, 0.0
      %1246 = vadd.xlane.f32.xlu0 %v1245
      %v1247 = vpop.xlane.xlu0 %1246
      %v1248 = vrcp.pop %v1244
      %v1249 = vrcp.pop %v1247
      %v1250 = vmul.f32 %v1239, %v1248
      %v1251 = vmul.f32 %v1241, %v1249
      %v1252 = vpack.c.bf16 %v1251, %v1250
      %v1253 = vpack.c.bf16 %v1174, %v1171
      %v1255 = vsel %vm1229, %v1252, 0
      %1257 = vmatprep.subr.bf16.mxu0 0
      %1258 = vmatpush1.bf16.msra.mxu0 %v1253
      %1259 = vmatprep.subr.bf16.mxu0 0
      %1260 = vmatpush1.bf16.msra.mxu0 0
      %1261 = vmatprep.subr.bf16.mxu0 0
      %1262 = vmatpush1.bf16.msra.mxu0 0
      %1263 = vmatprep.subr.bf16.mxu0 0
      %1264 = vmatpush1.bf16.msra.mxu0 0
      %1265 = vmatprep.subr.bf16.mxu0 0
      %1266 = vmatpush1.bf16.msra.mxu0 0
      %1267 = vmatprep.subr.bf16.mxu0 0
      %1268 = vmatpush1.bf16.msra.mxu0 0
      %1269 = vmatprep.subr.bf16.mxu0 0
      %1270 = vmatpush1.bf16.msra.mxu0 0
      %1271 = vmatprep.subr.bf16.mxu0 0
      %1272 = vmatpush1.bf16.msra.mxu0 0
      %1273 = vmatprep.subr.bf16.mxu0 0
      %1274 = vmatpush1.bf16.msra.mxu0 0
      %1275 = vmatprep.subr.bf16.mxu0 0
      %1276 = vmatpush1.bf16.msra.mxu0 0
      %1277 = vmatprep.subr.bf16.mxu0 0
      %1278 = vmatpush1.bf16.msra.mxu0 0
      %1279 = vmatprep.subr.bf16.mxu0 0
      %1280 = vmatpush1.bf16.msra.mxu0 0
      %1281 = vmatprep.subr.bf16.mxu0 0
      %1282 = vmatpush1.bf16.msra.mxu0 0
      %1283 = vmatprep.subr.bf16.mxu0 0
      %1284 = vmatpush1.bf16.msra.mxu0 0
      %1285 = vmatprep.subr.bf16.mxu0 0
      %1286 = vmatpush1.bf16.msra.mxu0 0
      %1287 = vmatprep.subr.bf16.mxu0 0
      %1288 = vmatpush1.bf16.msra.mxu0 0
      %1289 = vmatprep.mubr.bf16.mxu0 0
      %1290 = vmatmul.mubr.bf16.gmra.mrb[0].mxu0 %v1255
      %v1291 = vpop.f32.mrb[0].mxu0
      %v1292 = vadd.f32 0.0, %v1291
      %v1293 = vpop.f32.mrb[0].mxu0
      %v1294 = vpop.f32.mrb[0].mxu0
      %v1295 = vadd.f32 0.0, %v1294
      %v1296 = vpop.f32.mrb[0].mxu0
      %1297 = vdwg.mxu0
      %v1298 = vpack.c.bf16 %v1295, %v1292
      %v1299 = vld [vmem:[%s885] sm:$0xf]
      %s1300 = scalar_lea.vmem %s858, 16
      %v1301 = vld [vmem:[%s1300] sm:$0xf]
      %v1302 = vld [vmem:[%s1300 + $0x4] sm:$0xf]
      %v1303 = vld [vmem:[%s1300 + $0x8] sm:$0xf]
      %v1304 = vld [vmem:[%s1300 + $0xc] sm:$0xf]
      %s1305 = scalar_lea.vmem %s862, 1
      %v1306 = vld [vmem:[%s1305] sm:$0x1]
      %v1308 = vlaneseq
      %v1309 = vshrl.u32 %v1308, 7
      %v1310 = vsub.s32 0, %v1309
      %v1311 = vrot.slane %v1306, %v1310
      %v1317 = vunpack.c.l.b16 %v1301
      %v1318 = vunpack.c.l.b16 %v1302
      %v1319 = vunpack.c.l.b16 %v1303
      %v1320 = vunpack.c.l.b16 %v1304
      %v1321 = vpack.c.b16 %v1318, %v1317
      %v1322 = vpack.c.b16 %v1320, %v1319
      %1325 = vmatprep.subr.bf16.mxu0 0
      %1326 = vmatpush1.bf16.msra.mxu0 %v1321
      %1327 = vmatprep.subr.bf16.mxu0 0
      %1328 = vmatpush1.bf16.msra.mxu0 %v1322
      %1329 = vmatprep.subr.bf16.mxu0 0
      %1330 = vmatpush1.bf16.msra.mxu0 0
      %1331 = vmatprep.subr.bf16.mxu0 0
      %1332 = vmatpush1.bf16.msra.mxu0 0
      %1333 = vmatprep.subr.bf16.mxu0 0
      %1334 = vmatpush1.bf16.msra.mxu0 0
      %1335 = vmatprep.subr.bf16.mxu0 0
      %1336 = vmatpush1.bf16.msra.mxu0 0
      %1337 = vmatprep.subr.bf16.mxu0 0
      %1338 = vmatpush1.bf16.msra.mxu0 0
      %1339 = vmatprep.subr.bf16.mxu0 0
      %1340 = vmatpush1.bf16.msra.mxu0 0
      %1341 = vmatprep.subr.bf16.mxu0 0
      %1342 = vmatpush1.bf16.msra.mxu0 0
      %1343 = vmatprep.subr.bf16.mxu0 0
      %1344 = vmatpush1.bf16.msra.mxu0 0
      %1345 = vmatprep.subr.bf16.mxu0 0
      %1346 = vmatpush1.bf16.msra.mxu0 0
      %1347 = vmatprep.subr.bf16.mxu0 0
      %1348 = vmatpush1.bf16.msra.mxu0 0
      %1349 = vmatprep.subr.bf16.mxu0 0
      %1350 = vmatpush1.bf16.msra.mxu0 0
      %1351 = vmatprep.subr.bf16.mxu0 0
      %1352 = vmatpush1.bf16.msra.mxu0 0
      %1353 = vmatprep.subr.bf16.mxu0 0
      %1354 = vmatpush1.bf16.msra.mxu0 0
      %1355 = vmatprep.subr.bf16.mxu0 0
      %1356 = vmatpush1.bf16.msra.mxu0 0
      %1357 = vmatprep.mubr.bf16.mxu0 0
      %1358 = vmatmul.mubr.bf16.gmra.mrb[0].mxu0 %v1004
      %v1359 = vpop.f32.mrb[0].mxu0
      %v1360 = vadd.f32 %v1311, %v1359
      %v1361 = vpop.f32.mrb[0].mxu0
      %v1362 = vpop.f32.mrb[0].mxu0
      %v1363 = vadd.f32 %v1311, %v1362
      %v1364 = vpop.f32.mrb[0].mxu0
      %1365 = vdwg.mxu0
      %v1366 = vmul.f32 %v1360, 0.35355338
      %v1367 = vmul.f32 %v1363, 0.35355338
      %s1368 = scalar_lea.vmem %s867, 16
      %v1369 = vld [vmem:[%s1368] sm:$0xf]
      %v1370 = vld [vmem:[%s1368 + $0x4] sm:$0xf]
      %v1371 = vld [vmem:[%s1368 + $0x8] sm:$0xf]
      %v1372 = vld [vmem:[%s1368 + $0xc] sm:$0xf]
      %s1373 = scalar_lea.vmem %s871, 1
      %v1374 = vld [vmem:[%s1373] sm:$0x1]
      %v1376 = vlaneseq
      %v1377 = vshrl.u32 %v1376, 7
      %v1378 = vsub.s32 0, %v1377
      %v1379 = vrot.slane %v1374, %v1378
      %v1385 = vunpack.c.l.b16 %v1369
      %v1386 = vunpack.c.l.b16 %v1370
      %v1387 = vunpack.c.l.b16 %v1371
      %v1388 = vunpack.c.l.b16 %v1372
      %v1389 = vpack.c.b16 %v1386, %v1385
      %v1390 = vpack.c.b16 %v1388, %v1387
      %1393 = vmatprep.subr.bf16.mxu0 0
      %1394 = vmatpush1.bf16.msra.mxu0 %v1389
      %1395 = vmatprep.subr.bf16.mxu0 0
      %1396 = vmatpush1.bf16.msra.mxu0 %v1390
      %1397 = vmatprep.subr.bf16.mxu0 0
      %1398 = vmatpush1.bf16.msra.mxu0 0
      %1399 = vmatprep.subr.bf16.mxu0 0
      %1400 = vmatpush1.bf16.msra.mxu0 0
      %1401 = vmatprep.subr.bf16.mxu0 0
      %1402 = vmatpush1.bf16.msra.mxu0 0
      %1403 = vmatprep.subr.bf16.mxu0 0
      %1404 = vmatpush1.bf16.msra.mxu0 0
      %1405 = vmatprep.subr.bf16.mxu0 0
      %1406 = vmatpush1.bf16.msra.mxu0 0
      %1407 = vmatprep.subr.bf16.mxu0 0
      %1408 = vmatpush1.bf16.msra.mxu0 0
      %1409 = vmatprep.subr.bf16.mxu0 0
      %1410 = vmatpush1.bf16.msra.mxu0 0
      %1411 = vmatprep.subr.bf16.mxu0 0
      %1412 = vmatpush1.bf16.msra.mxu0 0
      %1413 = vmatprep.subr.bf16.mxu0 0
      %1414 = vmatpush1.bf16.msra.mxu0 0
      %1415 = vmatprep.subr.bf16.mxu0 0
      %1416 = vmatpush1.bf16.msra.mxu0 0
      %1417 = vmatprep.subr.bf16.mxu0 0
      %1418 = vmatpush1.bf16.msra.mxu0 0
      %1419 = vmatprep.subr.bf16.mxu0 0
      %1420 = vmatpush1.bf16.msra.mxu0 0
      %1421 = vmatprep.subr.bf16.mxu0 0
      %1422 = vmatpush1.bf16.msra.mxu0 0
      %1423 = vmatprep.subr.bf16.mxu0 0
      %1424 = vmatpush1.bf16.msra.mxu0 0
      %1425 = vmatprep.mubr.bf16.mxu0 0
      %1426 = vmatmul.mubr.bf16.gmra.mrb[0].mxu0 %v1004
      %v1427 = vpop.f32.mrb[0].mxu0
      %v1428 = vadd.f32 %v1379, %v1427
      %v1429 = vpop.f32.mrb[0].mxu0
      %v1430 = vpop.f32.mrb[0].mxu0
      %v1431 = vadd.f32 %v1379, %v1430
      %v1432 = vpop.f32.mrb[0].mxu0
      %1433 = vdwg.mxu0
      %s1434 = scalar_lea.vmem %s876, 16
      %v1435 = vld [vmem:[%s1434] sm:$0xf]
      %v1436 = vld [vmem:[%s1434 + $0x4] sm:$0xf]
      %v1437 = vld [vmem:[%s1434 + $0x8] sm:$0xf]
      %v1438 = vld [vmem:[%s1434 + $0xc] sm:$0xf]
      %s1439 = scalar_lea.vmem %s880, 1
      %v1440 = vld [vmem:[%s1439] sm:$0x1]
      %v1442 = vlaneseq
      %v1443 = vshrl.u32 %v1442, 7
      %v1444 = vsub.s32 0, %v1443
      %v1445 = vrot.slane %v1440, %v1444
      %v1451 = vunpack.c.l.b16 %v1435
      %v1452 = vunpack.c.l.b16 %v1436
      %v1453 = vunpack.c.l.b16 %v1437
      %v1454 = vunpack.c.l.b16 %v1438
      %v1455 = vpack.c.b16 %v1452, %v1451
      %v1456 = vpack.c.b16 %v1454, %v1453
      %1459 = vmatprep.subr.bf16.mxu0 0
      %1460 = vmatpush1.bf16.msra.mxu0 %v1455
      %1461 = vmatprep.subr.bf16.mxu0 0
      %1462 = vmatpush1.bf16.msra.mxu0 %v1456
      %1463 = vmatprep.subr.bf16.mxu0 0
      %1464 = vmatpush1.bf16.msra.mxu0 0
      %1465 = vmatprep.subr.bf16.mxu0 0
      %1466 = vmatpush1.bf16.msra.mxu0 0
      %1467 = vmatprep.subr.bf16.mxu0 0
      %1468 = vmatpush1.bf16.msra.mxu0 0
      %1469 = vmatprep.subr.bf16.mxu0 0
      %1470 = vmatpush1.bf16.msra.mxu0 0
      %1471 = vmatprep.subr.bf16.mxu0 0
      %1472 = vmatpush1.bf16.msra.mxu0 0
      %1473 = vmatprep.subr.bf16.mxu0 0
      %1474 = vmatpush1.bf16.msra.mxu0 0
      %1475 = vmatprep.subr.bf16.mxu0 0
      %1476 = vmatpush1.bf16.msra.mxu0 0
      %1477 = vmatprep.subr.bf16.mxu0 0
      %1478 = vmatpush1.bf16.msra.mxu0 0
      %1479 = vmatprep.subr.bf16.mxu0 0
      %1480 = vmatpush1.bf16.msra.mxu0 0
      %1481 = vmatprep.subr.bf16.mxu0 0
      %1482 = vmatpush1.bf16.msra.mxu0 0
      %1483 = vmatprep.subr.bf16.mxu0 0
      %1484 = vmatpush1.bf16.msra.mxu0 0
      %1485 = vmatprep.subr.bf16.mxu0 0
      %1486 = vmatpush1.bf16.msra.mxu0 0
      %1487 = vmatprep.subr.bf16.mxu0 0
      %1488 = vmatpush1.bf16.msra.mxu0 0
      %1489 = vmatprep.subr.bf16.mxu0 0
      %1490 = vmatpush1.bf16.msra.mxu0 0
      %1491 = vmatprep.mubr.bf16.mxu0 0
      %1492 = vmatmul.mubr.bf16.gmra.mrb[0].mxu0 %v1004
      %v1493 = vpop.f32.mrb[0].mxu0
      %v1494 = vadd.f32 %v1445, %v1493
      %v1495 = vpop.f32.mrb[0].mxu0
      %v1496 = vpop.f32.mrb[0].mxu0
      %v1497 = vadd.f32 %v1445, %v1496
      %v1498 = vpop.f32.mrb[0].mxu0
      %1499 = vdwg.mxu0
      %v1500 = vpack.c.bf16 %v1367, %v1366
      %v1501 = vpack.c.bf16 %v1431, %v1428
      %v1503 = vsel %vm1179, %v1500, 0
      %v1506 = vsel %vm1179, %v1501, 0
      %1508 = vmatprep.subr.bf16.mxu0 0
      %1509 = vmatpush1.bf16.xpose.msra.mxu0 %v1506
      %1510 = vmatprep.subr.bf16.mxu0 0
      %1511 = vmatpush1.bf16.xpose.msra.mxu0 0
      %1512 = vmatprep.subr.bf16.mxu0 0
      %1513 = vmatpush1.bf16.xpose.msra.mxu0 0
      %1514 = vmatprep.subr.bf16.mxu0 0
      %1515 = vmatpush1.bf16.xpose.msra.mxu0 0
      %1516 = vmatprep.subr.bf16.mxu0 0
      %1517 = vmatpush1.bf16.xpose.msra.mxu0 0
      %1518 = vmatprep.subr.bf16.mxu0 0
      %1519 = vmatpush1.bf16.xpose.msra.mxu0 0
      %1520 = vmatprep.subr.bf16.mxu0 0
      %1521 = vmatpush1.bf16.xpose.msra.mxu0 0
      %1522 = vmatprep.subr.bf16.mxu0 0
      %1523 = vmatpush1.bf16.xpose.msra.mxu0 0
      %1524 = vmatprep.subr.bf16.mxu0 0
      %1525 = vmatpush1.bf16.xpose.msra.mxu0 0
      %1526 = vmatprep.subr.bf16.mxu0 0
      %1527 = vmatpush1.bf16.xpose.msra.mxu0 0
      %1528 = vmatprep.subr.bf16.mxu0 0
      %1529 = vmatpush1.bf16.xpose.msra.mxu0 0
      %1530 = vmatprep.subr.bf16.mxu0 0
      %1531 = vmatpush1.bf16.xpose.msra.mxu0 0
      %1532 = vmatprep.subr.bf16.mxu0 0
      %1533 = vmatpush1.bf16.xpose.msra.mxu0 0
      %1534 = vmatprep.subr.bf16.mxu0 0
      %1535 = vmatpush1.bf16.xpose.msra.mxu0 0
      %1536 = vmatprep.subr.bf16.mxu0 0
      %1537 = vmatpush1.bf16.xpose.msra.mxu0 0
      %1538 = vmatprep.subr.bf16.mxu0 0
      %1539 = vmatpush1.bf16.xpose.msra.mxu0 0
      %1540 = vmatprep.mubr.bf16.mxu0 0
      %1541 = vmatmul.mubr.bf16.gmra.mrb[0].mxu0 %v1503
      %v1542 = vpop.f32.mrb[0].mxu0
      %v1543 = vadd.f32 0.0, %v1542
      %v1544 = vpop.f32.mrb[0].mxu0
      %v1545 = vpop.f32.mrb[0].mxu0
      %v1546 = vadd.f32 0.0, %v1545
      %v1547 = vpop.f32.mrb[0].mxu0
      %1548 = vdwg.mxu0
      %v1549 = vsel %vm978, %v1543, -1e+09
      %v1550 = vsel %vm979, %v1546, -1e+09
      %v1551 = vsel %vm1229, %v1549, -inf
      %1552 = vmax.xlane.f32.xlu0 %v1551
      %v1553 = vpop.xlane.xlu0 %1552
      %v1554 = vsel %vm1229, %v1550, -inf
      %1555 = vmax.xlane.f32.xlu0 %v1554
      %v1556 = vpop.xlane.xlu0 %1555
      %v1557 = vsub.f32 %v1549, %v1553
      %v1558 = vsub.f32 %v1550, %v1556
      %v1559 = vmul.f32 %v1557, 1.442695
      %v1560 = vpow.pop %v1559
      %v1561 = vmul.f32 %v1558, 1.442695
      %v1562 = vpow.pop %v1561
      %v1563 = vsel %vm1229, %v1560, 0.0
      %1564 = vadd.xlane.f32.xlu0 %v1563
      %v1565 = vpop.xlane.xlu0 %1564
      %v1566 = vsel %vm1229, %v1562, 0.0
      %1567 = vadd.xlane.f32.xlu0 %v1566
      %v1568 = vpop.xlane.xlu0 %1567
      %v1569 = vrcp.pop %v1565
      %v1570 = vrcp.pop %v1568
      %v1571 = vmul.f32 %v1560, %v1569
      %v1572 = vmul.f32 %v1562, %v1570
      %v1573 = vpack.c.bf16 %v1572, %v1571
      %v1574 = vpack.c.bf16 %v1497, %v1494
      %v1576 = vsel %vm1229, %v1573, 0
      %1578 = vmatprep.subr.bf16.mxu0 0
      %1579 = vmatpush1.bf16.msra.mxu0 %v1574
      %1580 = vmatprep.subr.bf16.mxu0 0
      %1581 = vmatpush1.bf16.msra.mxu0 0
      %1582 = vmatprep.subr.bf16.mxu0 0
      %1583 = vmatpush1.bf16.msra.mxu0 0
      %1584 = vmatprep.subr.bf16.mxu0 0
      %1585 = vmatpush1.bf16.msra.mxu0 0
      %1586 = vmatprep.subr.bf16.mxu0 0
      %1587 = vmatpush1.bf16.msra.mxu0 0
      %1588 = vmatprep.subr.bf16.mxu0 0
      %1589 = vmatpush1.bf16.msra.mxu0 0
      %1590 = vmatprep.subr.bf16.mxu0 0
      %1591 = vmatpush1.bf16.msra.mxu0 0
      %1592 = vmatprep.subr.bf16.mxu0 0
      %1593 = vmatpush1.bf16.msra.mxu0 0
      %1594 = vmatprep.subr.bf16.mxu0 0
      %1595 = vmatpush1.bf16.msra.mxu0 0
      %1596 = vmatprep.subr.bf16.mxu0 0
      %1597 = vmatpush1.bf16.msra.mxu0 0
      %1598 = vmatprep.subr.bf16.mxu0 0
      %1599 = vmatpush1.bf16.msra.mxu0 0
      %1600 = vmatprep.subr.bf16.mxu0 0
      %1601 = vmatpush1.bf16.msra.mxu0 0
      %1602 = vmatprep.subr.bf16.mxu0 0
      %1603 = vmatpush1.bf16.msra.mxu0 0
      %1604 = vmatprep.subr.bf16.mxu0 0
      %1605 = vmatpush1.bf16.msra.mxu0 0
      %1606 = vmatprep.subr.bf16.mxu0 0
      %1607 = vmatpush1.bf16.msra.mxu0 0
      %1608 = vmatprep.subr.bf16.mxu0 0
      %1609 = vmatpush1.bf16.msra.mxu0 0
      %1610 = vmatprep.mubr.bf16.mxu0 0
      %1611 = vmatmul.mubr.bf16.gmra.mrb[0].mxu0 %v1576
      %v1612 = vpop.f32.mrb[0].mxu0
      %v1613 = vadd.f32 0.0, %v1612
      %v1614 = vpop.f32.mrb[0].mxu0
      %v1615 = vpop.f32.mrb[0].mxu0
      %v1616 = vadd.f32 0.0, %v1615
      %v1617 = vpop.f32.mrb[0].mxu0
      %1618 = vdwg.mxu0
      %v1619 = vpack.c.bf16 %v1616, %v1613
      %s1620 = scalar_lea.vmem %s885, 4
      %v1621 = vld [vmem:[%s1620] sm:$0xf]
      %v1623 = vsel %vm1179, %v1619, 0
      %vm1625 = vcmask 1043456
      %v1627 = vsel %vm1625, %v1621, 0
      %1629 = vmatprep.subr.bf16.mxu0 0
      %1630 = vmatpush1.bf16.msra.mxu0 %v1627
      %1631 = vmatprep.subr.bf16.mxu0 0
      %1632 = vmatpush1.bf16.msra.mxu0 0
      %1633 = vmatprep.subr.bf16.mxu0 0
      %1634 = vmatpush1.bf16.msra.mxu0 0
      %1635 = vmatprep.subr.bf16.mxu0 0
      %1636 = vmatpush1.bf16.msra.mxu0 0
      %1637 = vmatprep.subr.bf16.mxu0 0
      %1638 = vmatpush1.bf16.msra.mxu0 0
      %1639 = vmatprep.subr.bf16.mxu0 0
      %1640 = vmatpush1.bf16.msra.mxu0 0
      %1641 = vmatprep.subr.bf16.mxu0 0
      %1642 = vmatpush1.bf16.msra.mxu0 0
      %1643 = vmatprep.subr.bf16.mxu0 0
      %1644 = vmatpush1.bf16.msra.mxu0 0
      %1645 = vmatprep.subr.bf16.mxu0 0
      %1646 = vmatpush1.bf16.msra.mxu0 0
      %1647 = vmatprep.subr.bf16.mxu0 0
      %1648 = vmatpush1.bf16.msra.mxu0 0
      %1649 = vmatprep.subr.bf16.mxu0 0
      %1650 = vmatpush1.bf16.msra.mxu0 0
      %1651 = vmatprep.subr.bf16.mxu0 0
      %1652 = vmatpush1.bf16.msra.mxu0 0
      %1653 = vmatprep.subr.bf16.mxu0 0
      %1654 = vmatpush1.bf16.msra.mxu0 0
      %1655 = vmatprep.subr.bf16.mxu0 0
      %1656 = vmatpush1.bf16.msra.mxu0 0
      %1657 = vmatprep.subr.bf16.mxu0 0
      %1658 = vmatpush1.bf16.msra.mxu0 0
      %1659 = vmatprep.subr.bf16.mxu0 0
      %1660 = vmatpush1.bf16.msra.mxu0 0
      %1661 = vmatprep.mubr.bf16.mxu0 0
      %1662 = vmatmul.mubr.bf16.gmra.mrb[0].mxu0 %v1623
      %v1663 = vpop.f32.mrb[0].mxu0
      %v1664 = vadd.f32 0.0, %v1663
      %v1665 = vpop.f32.mrb[0].mxu0
      %v1666 = vpop.f32.mrb[0].mxu0
      %v1667 = vadd.f32 0.0, %v1666
      %v1668 = vpop.f32.mrb[0].mxu0
      %1669 = vdwg.mxu0
      %v1671 = vsel %vm1179, %v1298, 0
      %v1674 = vsel %vm1625, %v1299, 0
      %1676 = vmatprep.subr.bf16.mxu0 0
      %1677 = vmatpush1.bf16.msra.mxu0 %v1674
      %1678 = vmatprep.subr.bf16.mxu0 0
      %1679 = vmatpush1.bf16.msra.mxu0 0
      %1680 = vmatprep.subr.bf16.mxu0 0
      %1681 = vmatpush1.bf16.msra.mxu0 0
      %1682 = vmatprep.subr.bf16.mxu0 0
      %1683 = vmatpush1.bf16.msra.mxu0 0
      %1684 = vmatprep.subr.bf16.mxu0 0
      %1685 = vmatpush1.bf16.msra.mxu0 0
      %1686 = vmatprep.subr.bf16.mxu0 0
      %1687 = vmatpush1.bf16.msra.mxu0 0
      %1688 = vmatprep.subr.bf16.mxu0 0
      %1689 = vmatpush1.bf16.msra.mxu0 0
      %1690 = vmatprep.subr.bf16.mxu0 0
      %1691 = vmatpush1.bf16.msra.mxu0 0
      %1692 = vmatprep.subr.bf16.mxu0 0
      %1693 = vmatpush1.bf16.msra.mxu0 0
      %1694 = vmatprep.subr.bf16.mxu0 0
      %1695 = vmatpush1.bf16.msra.mxu0 0
      %1696 = vmatprep.subr.bf16.mxu0 0
      %1697 = vmatpush1.bf16.msra.mxu0 0
      %1698 = vmatprep.subr.bf16.mxu0 0
      %1699 = vmatpush1.bf16.msra.mxu0 0
      %1700 = vmatprep.subr.bf16.mxu0 0
      %1701 = vmatpush1.bf16.msra.mxu0 0
      %1702 = vmatprep.subr.bf16.mxu0 0
      %1703 = vmatpush1.bf16.msra.mxu0 0
      %1704 = vmatprep.subr.bf16.mxu0 0
      %1705 = vmatpush1.bf16.msra.mxu0 0
      %1706 = vmatprep.subr.bf16.mxu0 0
      %1707 = vmatpush1.bf16.msra.mxu0 0
      %1708 = vmatprep.mubr.bf16.mxu0 0
      %1709 = vmatmul.mubr.bf16.gmra.mrb[0].mxu0 %v1671
      %v1710 = vpop.f32.mrb[0].mxu0
      %v1711 = vadd.f32 %v1664, %v1710
      %v1712 = vpop.f32.mrb[0].mxu0
      %v1713 = vpop.f32.mrb[0].mxu0
      %v1714 = vadd.f32 %v1667, %v1713
      %v1715 = vpop.f32.mrb[0].mxu0
      %1716 = vdwg.mxu0
      %s1717 = scalar_lea.vmem %s858, 32
      %v1718 = vld [vmem:[%s1717] sm:$0xf]
      %v1719 = vld [vmem:[%s1717 + $0x4] sm:$0xf]
      %v1720 = vld [vmem:[%s1717 + $0x8] sm:$0xf]
      %v1721 = vld [vmem:[%s1717 + $0xc] sm:$0xf]
      %s1722 = scalar_lea.vmem %s862, 2
      %v1723 = vld [vmem:[%s1722] sm:$0x1]
      %v1725 = vlaneseq
      %v1726 = vshrl.u32 %v1725, 7
      %v1727 = vsub.s32 0, %v1726
      %v1728 = vrot.slane %v1723, %v1727
      %v1734 = vunpack.c.l.b16 %v1718
      %v1735 = vunpack.c.l.b16 %v1719
      %v1736 = vunpack.c.l.b16 %v1720
      %v1737 = vunpack.c.l.b16 %v1721
      %v1738 = vpack.c.b16 %v1735, %v1734
      %v1739 = vpack.c.b16 %v1737, %v1736
      %1742 = vmatprep.subr.bf16.mxu0 0
      %1743 = vmatpush1.bf16.msra.mxu0 %v1738
      %1744 = vmatprep.subr.bf16.mxu0 0
      %1745 = vmatpush1.bf16.msra.mxu0 %v1739
      %1746 = vmatprep.subr.bf16.mxu0 0
      %1747 = vmatpush1.bf16.msra.mxu0 0
      %1748 = vmatprep.subr.bf16.mxu0 0
      %1749 = vmatpush1.bf16.msra.mxu0 0
      %1750 = vmatprep.subr.bf16.mxu0 0
      %1751 = vmatpush1.bf16.msra.mxu0 0
      %1752 = vmatprep.subr.bf16.mxu0 0
      %1753 = vmatpush1.bf16.msra.mxu0 0
      %1754 = vmatprep.subr.bf16.mxu0 0
      %1755 = vmatpush1.bf16.msra.mxu0 0
      %1756 = vmatprep.subr.bf16.mxu0 0
      %1757 = vmatpush1.bf16.msra.mxu0 0
      %1758 = vmatprep.subr.bf16.mxu0 0
      %1759 = vmatpush1.bf16.msra.mxu0 0
      %1760 = vmatprep.subr.bf16.mxu0 0
      %1761 = vmatpush1.bf16.msra.mxu0 0
      %1762 = vmatprep.subr.bf16.mxu0 0
      %1763 = vmatpush1.bf16.msra.mxu0 0
      %1764 = vmatprep.subr.bf16.mxu0 0
      %1765 = vmatpush1.bf16.msra.mxu0 0
      %1766 = vmatprep.subr.bf16.mxu0 0
      %1767 = vmatpush1.bf16.msra.mxu0 0
      %1768 = vmatprep.subr.bf16.mxu0 0
      %1769 = vmatpush1.bf16.msra.mxu0 0
      %1770 = vmatprep.subr.bf16.mxu0 0
      %1771 = vmatpush1.bf16.msra.mxu0 0
      %1772 = vmatprep.subr.bf16.mxu0 0
      %1773 = vmatpush1.bf16.msra.mxu0 0
      %1774 = vmatprep.mubr.bf16.mxu0 0
      %1775 = vmatmul.mubr.bf16.gmra.mrb[0].mxu0 %v1004
      %v1776 = vpop.f32.mrb[0].mxu0
      %v1777 = vadd.f32 %v1728, %v1776
      %v1778 = vpop.f32.mrb[0].mxu0
      %v1779 = vpop.f32.mrb[0].mxu0
      %v1780 = vadd.f32 %v1728, %v1779
      %v1781 = vpop.f32.mrb[0].mxu0
      %1782 = vdwg.mxu0
      %v1783 = vmul.f32 %v1777, 0.35355338
      %v1784 = vmul.f32 %v1780, 0.35355338
      %s1785 = scalar_lea.vmem %s867, 32
      %v1786 = vld [vmem:[%s1785] sm:$0xf]
      %v1787 = vld [vmem:[%s1785 + $0x4] sm:$0xf]
      %v1788 = vld [vmem:[%s1785 + $0x8] sm:$0xf]
      %v1789 = vld [vmem:[%s1785 + $0xc] sm:$0xf]
      %s1790 = scalar_lea.vmem %s871, 2
      %v1791 = vld [vmem:[%s1790] sm:$0x1]
      %v1793 = vlaneseq
      %v1794 = vshrl.u32 %v1793, 7
      %v1795 = vsub.s32 0, %v1794
      %v1796 = vrot.slane %v1791, %v1795
      %v1802 = vunpack.c.l.b16 %v1786
      %v1803 = vunpack.c.l.b16 %v1787
      %v1804 = vunpack.c.l.b16 %v1788
      %v1805 = vunpack.c.l.b16 %v1789
      %v1806 = vpack.c.b16 %v1803, %v1802
      %v1807 = vpack.c.b16 %v1805, %v1804
      %1810 = vmatprep.subr.bf16.mxu0 0
      %1811 = vmatpush1.bf16.msra.mxu0 %v1806
      %1812 = vmatprep.subr.bf16.mxu0 0
      %1813 = vmatpush1.bf16.msra.mxu0 %v1807
      %1814 = vmatprep.subr.bf16.mxu0 0
      %1815 = vmatpush1.bf16.msra.mxu0 0
      %1816 = vmatprep.subr.bf16.mxu0 0
      %1817 = vmatpush1.bf16.msra.mxu0 0
      %1818 = vmatprep.subr.bf16.mxu0 0
      %1819 = vmatpush1.bf16.msra.mxu0 0
      %1820 = vmatprep.subr.bf16.mxu0 0
      %1821 = vmatpush1.bf16.msra.mxu0 0
      %1822 = vmatprep.subr.bf16.mxu0 0
      %1823 = vmatpush1.bf16.msra.mxu0 0
      %1824 = vmatprep.subr.bf16.mxu0 0
      %1825 = vmatpush1.bf16.msra.mxu0 0
      %1826 = vmatprep.subr.bf16.mxu0 0
      %1827 = vmatpush1.bf16.msra.mxu0 0
      %1828 = vmatprep.subr.bf16.mxu0 0
      %1829 = vmatpush1.bf16.msra.mxu0 0
      %1830 = vmatprep.subr.bf16.mxu0 0
      %1831 = vmatpush1.bf16.msra.mxu0 0
      %1832 = vmatprep.subr.bf16.mxu0 0
      %1833 = vmatpush1.bf16.msra.mxu0 0
      %1834 = vmatprep.subr.bf16.mxu0 0
      %1835 = vmatpush1.bf16.msra.mxu0 0
      %1836 = vmatprep.subr.bf16.mxu0 0
      %1837 = vmatpush1.bf16.msra.mxu0 0
      %1838 = vmatprep.subr.bf16.mxu0 0
      %1839 = vmatpush1.bf16.msra.mxu0 0
      %1840 = vmatprep.subr.bf16.mxu0 0
      %1841 = vmatpush1.bf16.msra.mxu0 0
      %1842 = vmatprep.mubr.bf16.mxu0 0
      %1843 = vmatmul.mubr.bf16.gmra.mrb[0].mxu0 %v1004
      %v1844 = vpop.f32.mrb[0].mxu0
      %v1845 = vadd.f32 %v1796, %v1844
      %v1846 = vpop.f32.mrb[0].mxu0
      %v1847 = vpop.f32.mrb[0].mxu0
      %v1848 = vadd.f32 %v1796, %v1847
      %v1849 = vpop.f32.mrb[0].mxu0
      %1850 = vdwg.mxu0
      %s1851 = scalar_lea.vmem %s876, 32
      %v1852 = vld [vmem:[%s1851] sm:$0xf]
      %v1853 = vld [vmem:[%s1851 + $0x4] sm:$0xf]
      %v1854 = vld [vmem:[%s1851 + $0x8] sm:$0xf]
      %v1855 = vld [vmem:[%s1851 + $0xc] sm:$0xf]
      %s1856 = scalar_lea.vmem %s880, 2
      %v1857 = vld [vmem:[%s1856] sm:$0x1]
      %v1859 = vlaneseq
      %v1860 = vshrl.u32 %v1859, 7
      %v1861 = vsub.s32 0, %v1860
      %v1862 = vrot.slane %v1857, %v1861
      %v1868 = vunpack.c.l.b16 %v1852
      %v1869 = vunpack.c.l.b16 %v1853
      %v1870 = vunpack.c.l.b16 %v1854
      %v1871 = vunpack.c.l.b16 %v1855
      %v1872 = vpack.c.b16 %v1869, %v1868
      %v1873 = vpack.c.b16 %v1871, %v1870
      %1876 = vmatprep.subr.bf16.mxu0 0
      %1877 = vmatpush1.bf16.msra.mxu0 %v1872
      %1878 = vmatprep.subr.bf16.mxu0 0
      %1879 = vmatpush1.bf16.msra.mxu0 %v1873
      %1880 = vmatprep.subr.bf16.mxu0 0
      %1881 = vmatpush1.bf16.msra.mxu0 0
      %1882 = vmatprep.subr.bf16.mxu0 0
      %1883 = vmatpush1.bf16.msra.mxu0 0
      %1884 = vmatprep.subr.bf16.mxu0 0
      %1885 = vmatpush1.bf16.msra.mxu0 0
      %1886 = vmatprep.subr.bf16.mxu0 0
      %1887 = vmatpush1.bf16.msra.mxu0 0
      %1888 = vmatprep.subr.bf16.mxu0 0
      %1889 = vmatpush1.bf16.msra.mxu0 0
      %1890 = vmatprep.subr.bf16.mxu0 0
      %1891 = vmatpush1.bf16.msra.mxu0 0
      %1892 = vmatprep.subr.bf16.mxu0 0
      %1893 = vmatpush1.bf16.msra.mxu0 0
      %1894 = vmatprep.subr.bf16.mxu0 0
      %1895 = vmatpush1.bf16.msra.mxu0 0
      %1896 = vmatprep.subr.bf16.mxu0 0
      %1897 = vmatpush1.bf16.msra.mxu0 0
      %1898 = vmatprep.subr.bf16.mxu0 0
      %1899 = vmatpush1.bf16.msra.mxu0 0
      %1900 = vmatprep.subr.bf16.mxu0 0
      %1901 = vmatpush1.bf16.msra.mxu0 0
      %1902 = vmatprep.subr.bf16.mxu0 0
      %1903 = vmatpush1.bf16.msra.mxu0 0
      %1904 = vmatprep.subr.bf16.mxu0 0
      %1905 = vmatpush1.bf16.msra.mxu0 0
      %1906 = vmatprep.subr.bf16.mxu0 0
      %1907 = vmatpush1.bf16.msra.mxu0 0
      %1908 = vmatprep.mubr.bf16.mxu0 0
      %1909 = vmatmul.mubr.bf16.gmra.mrb[0].mxu0 %v1004
      %v1910 = vpop.f32.mrb[0].mxu0
      %v1911 = vadd.f32 %v1862, %v1910
      %v1912 = vpop.f32.mrb[0].mxu0
      %v1913 = vpop.f32.mrb[0].mxu0
      %v1914 = vadd.f32 %v1862, %v1913
      %v1915 = vpop.f32.mrb[0].mxu0
      %1916 = vdwg.mxu0
      %v1917 = vpack.c.bf16 %v1784, %v1783
      %v1918 = vpack.c.bf16 %v1848, %v1845
      %v1920 = vsel %vm1179, %v1917, 0
      %v1923 = vsel %vm1179, %v1918, 0
      %1925 = vmatprep.subr.bf16.mxu0 0
      %1926 = vmatpush1.bf16.xpose.msra.mxu0 %v1923
      %1927 = vmatprep.subr.bf16.mxu0 0
      %1928 = vmatpush1.bf16.xpose.msra.mxu0 0
      %1929 = vmatprep.subr.bf16.mxu0 0
      %1930 = vmatpush1.bf16.xpose.msra.mxu0 0
      %1931 = vmatprep.subr.bf16.mxu0 0
      %1932 = vmatpush1.bf16.xpose.msra.mxu0 0
      %1933 = vmatprep.subr.bf16.mxu0 0
      %1934 = vmatpush1.bf16.xpose.msra.mxu0 0
      %1935 = vmatprep.subr.bf16.mxu0 0
      %1936 = vmatpush1.bf16.xpose.msra.mxu0 0
      %1937 = vmatprep.subr.bf16.mxu0 0
      %1938 = vmatpush1.bf16.xpose.msra.mxu0 0
      %1939 = vmatprep.subr.bf16.mxu0 0
      %1940 = vmatpush1.bf16.xpose.msra.mxu0 0
      %1941 = vmatprep.subr.bf16.mxu0 0
      %1942 = vmatpush1.bf16.xpose.msra.mxu0 0
      %1943 = vmatprep.subr.bf16.mxu0 0
      %1944 = vmatpush1.bf16.xpose.msra.mxu0 0
      %1945 = vmatprep.subr.bf16.mxu0 0
      %1946 = vmatpush1.bf16.xpose.msra.mxu0 0
      %1947 = vmatprep.subr.bf16.mxu0 0
      %1948 = vmatpush1.bf16.xpose.msra.mxu0 0
      %1949 = vmatprep.subr.bf16.mxu0 0
      %1950 = vmatpush1.bf16.xpose.msra.mxu0 0
      %1951 = vmatprep.subr.bf16.mxu0 0
      %1952 = vmatpush1.bf16.xpose.msra.mxu0 0
      %1953 = vmatprep.subr.bf16.mxu0 0
      %1954 = vmatpush1.bf16.xpose.msra.mxu0 0
      %1955 = vmatprep.subr.bf16.mxu0 0
      %1956 = vmatpush1.bf16.xpose.msra.mxu0 0
      %1957 = vmatprep.mubr.bf16.mxu0 0
      %1958 = vmatmul.mubr.bf16.gmra.mrb[0].mxu0 %v1920
      %v1959 = vpop.f32.mrb[0].mxu0
      %v1960 = vadd.f32 0.0, %v1959
      %v1961 = vpop.f32.mrb[0].mxu0
      %v1962 = vpop.f32.mrb[0].mxu0
      %v1963 = vadd.f32 0.0, %v1962
      %v1964 = vpop.f32.mrb[0].mxu0
      %1965 = vdwg.mxu0
      %v1966 = vsel %vm978, %v1960, -1e+09
      %v1967 = vsel %vm979, %v1963, -1e+09
      %v1968 = vsel %vm1229, %v1966, -inf
      %1969 = vmax.xlane.f32.xlu0 %v1968
      %v1970 = vpop.xlane.xlu0 %1969
      %v1971 = vsel %vm1229, %v1967, -inf
      %1972 = vmax.xlane.f32.xlu0 %v1971
      %v1973 = vpop.xlane.xlu0 %1972
      %v1974 = vsub.f32 %v1966, %v1970
      %v1975 = vsub.f32 %v1967, %v1973
      %v1976 = vmul.f32 %v1974, 1.442695
      %v1977 = vpow.pop %v1976
      %v1978 = vmul.f32 %v1975, 1.442695
      %v1979 = vpow.pop %v1978
      %v1980 = vsel %vm1229, %v1977, 0.0
      %1981 = vadd.xlane.f32.xlu0 %v1980
      %v1982 = vpop.xlane.xlu0 %1981
      %v1983 = vsel %vm1229, %v1979, 0.0
      %1984 = vadd.xlane.f32.xlu0 %v1983
      %v1985 = vpop.xlane.xlu0 %1984
      %v1986 = vrcp.pop %v1982
      %v1987 = vrcp.pop %v1985
      %v1988 = vmul.f32 %v1977, %v1986
      %v1989 = vmul.f32 %v1979, %v1987
      %v1990 = vpack.c.bf16 %v1989, %v1988
      %v1991 = vpack.c.bf16 %v1914, %v1911
      %v1993 = vsel %vm1229, %v1990, 0
      %1995 = vmatprep.subr.bf16.mxu0 0
      %1996 = vmatpush1.bf16.msra.mxu0 %v1991
      %1997 = vmatprep.subr.bf16.mxu0 0
      %1998 = vmatpush1.bf16.msra.mxu0 0
      %1999 = vmatprep.subr.bf16.mxu0 0
      %2000 = vmatpush1.bf16.msra.mxu0 0
      %2001 = vmatprep.subr.bf16.mxu0 0
      %2002 = vmatpush1.bf16.msra.mxu0 0
      %2003 = vmatprep.subr.bf16.mxu0 0
      %2004 = vmatpush1.bf16.msra.mxu0 0
      %2005 = vmatprep.subr.bf16.mxu0 0
      %2006 = vmatpush1.bf16.msra.mxu0 0
      %2007 = vmatprep.subr.bf16.mxu0 0
      %2008 = vmatpush1.bf16.msra.mxu0 0
      %2009 = vmatprep.subr.bf16.mxu0 0
      %2010 = vmatpush1.bf16.msra.mxu0 0
      %2011 = vmatprep.subr.bf16.mxu0 0
      %2012 = vmatpush1.bf16.msra.mxu0 0
      %2013 = vmatprep.subr.bf16.mxu0 0
      %2014 = vmatpush1.bf16.msra.mxu0 0
      %2015 = vmatprep.subr.bf16.mxu0 0
      %2016 = vmatpush1.bf16.msra.mxu0 0
      %2017 = vmatprep.subr.bf16.mxu0 0
      %2018 = vmatpush1.bf16.msra.mxu0 0
      %2019 = vmatprep.subr.bf16.mxu0 0
      %2020 = vmatpush1.bf16.msra.mxu0 0
      %2021 = vmatprep.subr.bf16.mxu0 0
      %2022 = vmatpush1.bf16.msra.mxu0 0
      %2023 = vmatprep.subr.bf16.mxu0 0
      %2024 = vmatpush1.bf16.msra.mxu0 0
      %2025 = vmatprep.subr.bf16.mxu0 0
      %2026 = vmatpush1.bf16.msra.mxu0 0
      %2027 = vmatprep.mubr.bf16.mxu0 0
      %2028 = vmatmul.mubr.bf16.gmra.mrb[0].mxu0 %v1993
      %v2029 = vpop.f32.mrb[0].mxu0
      %v2030 = vadd.f32 0.0, %v2029
      %v2031 = vpop.f32.mrb[0].mxu0
      %v2032 = vpop.f32.mrb[0].mxu0
      %v2033 = vadd.f32 0.0, %v2032
      %v2034 = vpop.f32.mrb[0].mxu0
      %2035 = vdwg.mxu0
      %v2036 = vpack.c.bf16 %v2033, %v2030
      %s2037 = scalar_lea.vmem %s885, 8
      %v2038 = vld [vmem:[%s2037] sm:$0xf]
      %v2040 = vsel %vm1179, %v2036, 0
      %v2043 = vsel %vm1625, %v2038, 0
      %2045 = vmatprep.subr.bf16.mxu0 0
      %2046 = vmatpush1.bf16.msra.mxu0 %v2043
      %2047 = vmatprep.subr.bf16.mxu0 0
      %2048 = vmatpush1.bf16.msra.mxu0 0
      %2049 = vmatprep.subr.bf16.mxu0 0
      %2050 = vmatpush1.bf16.msra.mxu0 0
      %2051 = vmatprep.subr.bf16.mxu0 0
      %2052 = vmatpush1.bf16.msra.mxu0 0
      %2053 = vmatprep.subr.bf16.mxu0 0
      %2054 = vmatpush1.bf16.msra.mxu0 0
      %2055 = vmatprep.subr.bf16.mxu0 0
      %2056 = vmatpush1.bf16.msra.mxu0 0
      %2057 = vmatprep.subr.bf16.mxu0 0
      %2058 = vmatpush1.bf16.msra.mxu0 0
      %2059 = vmatprep.subr.bf16.mxu0 0
      %2060 = vmatpush1.bf16.msra.mxu0 0
      %2061 = vmatprep.subr.bf16.mxu0 0
      %2062 = vmatpush1.bf16.msra.mxu0 0
      %2063 = vmatprep.subr.bf16.mxu0 0
      %2064 = vmatpush1.bf16.msra.mxu0 0
      %2065 = vmatprep.subr.bf16.mxu0 0
      %2066 = vmatpush1.bf16.msra.mxu0 0
      %2067 = vmatprep.subr.bf16.mxu0 0
      %2068 = vmatpush1.bf16.msra.mxu0 0
      %2069 = vmatprep.subr.bf16.mxu0 0
      %2070 = vmatpush1.bf16.msra.mxu0 0
      %2071 = vmatprep.subr.bf16.mxu0 0
      %2072 = vmatpush1.bf16.msra.mxu0 0
      %2073 = vmatprep.subr.bf16.mxu0 0
      %2074 = vmatpush1.bf16.msra.mxu0 0
      %2075 = vmatprep.subr.bf16.mxu0 0
      %2076 = vmatpush1.bf16.msra.mxu0 0
      %2077 = vmatprep.mubr.bf16.mxu0 0
      %2078 = vmatmul.mubr.bf16.gmra.mrb[0].mxu0 %v2040
      %v2079 = vpop.f32.mrb[0].mxu0
      %v2080 = vadd.f32 0.0, %v2079
      %v2081 = vpop.f32.mrb[0].mxu0
      %v2082 = vpop.f32.mrb[0].mxu0
      %v2083 = vadd.f32 0.0, %v2082
      %v2084 = vpop.f32.mrb[0].mxu0
      %2085 = vdwg.mxu0
      %v2086 = vadd.f32 %v1711, %v2080
      %v2087 = vadd.f32 %v1714, %v2083
      %s2088 = scalar_lea.vmem %s858, 48
      %v2089 = vld [vmem:[%s2088] sm:$0xf]
      %v2090 = vld [vmem:[%s2088 + $0x4] sm:$0xf]
      %v2091 = vld [vmem:[%s2088 + $0x8] sm:$0xf]
      %v2092 = vld [vmem:[%s2088 + $0xc] sm:$0xf]
      %s2093 = scalar_lea.vmem %s862, 3
      %v2094 = vld [vmem:[%s2093] sm:$0x1]
      %v2096 = vlaneseq
      %v2097 = vshrl.u32 %v2096, 7
      %v2098 = vsub.s32 0, %v2097
      %v2099 = vrot.slane %v2094, %v2098
      %v2105 = vunpack.c.l.b16 %v2089
      %v2106 = vunpack.c.l.b16 %v2090
      %v2107 = vunpack.c.l.b16 %v2091
      %v2108 = vunpack.c.l.b16 %v2092
      %v2109 = vpack.c.b16 %v2106, %v2105
      %v2110 = vpack.c.b16 %v2108, %v2107
      %2113 = vmatprep.subr.bf16.mxu0 0
      %2114 = vmatpush1.bf16.msra.mxu0 %v2109
      %2115 = vmatprep.subr.bf16.mxu0 0
      %2116 = vmatpush1.bf16.msra.mxu0 %v2110
      %2117 = vmatprep.subr.bf16.mxu0 0
      %2118 = vmatpush1.bf16.msra.mxu0 0
      %2119 = vmatprep.subr.bf16.mxu0 0
      %2120 = vmatpush1.bf16.msra.mxu0 0
      %2121 = vmatprep.subr.bf16.mxu0 0
      %2122 = vmatpush1.bf16.msra.mxu0 0
      %2123 = vmatprep.subr.bf16.mxu0 0
      %2124 = vmatpush1.bf16.msra.mxu0 0
      %2125 = vmatprep.subr.bf16.mxu0 0
      %2126 = vmatpush1.bf16.msra.mxu0 0
      %2127 = vmatprep.subr.bf16.mxu0 0
      %2128 = vmatpush1.bf16.msra.mxu0 0
      %2129 = vmatprep.subr.bf16.mxu0 0
      %2130 = vmatpush1.bf16.msra.mxu0 0
      %2131 = vmatprep.subr.bf16.mxu0 0
      %2132 = vmatpush1.bf16.msra.mxu0 0
      %2133 = vmatprep.subr.bf16.mxu0 0
      %2134 = vmatpush1.bf16.msra.mxu0 0
      %2135 = vmatprep.subr.bf16.mxu0 0
      %2136 = vmatpush1.bf16.msra.mxu0 0
      %2137 = vmatprep.subr.bf16.mxu0 0
      %2138 = vmatpush1.bf16.msra.mxu0 0
      %2139 = vmatprep.subr.bf16.mxu0 0
      %2140 = vmatpush1.bf16.msra.mxu0 0
      %2141 = vmatprep.subr.bf16.mxu0 0
      %2142 = vmatpush1.bf16.msra.mxu0 0
      %2143 = vmatprep.subr.bf16.mxu0 0
      %2144 = vmatpush1.bf16.msra.mxu0 0
      %2145 = vmatprep.mubr.bf16.mxu0 0
      %2146 = vmatmul.mubr.bf16.gmra.mrb[0].mxu0 %v1004
      %v2147 = vpop.f32.mrb[0].mxu0
      %v2148 = vadd.f32 %v2099, %v2147
      %v2149 = vpop.f32.mrb[0].mxu0
      %v2150 = vpop.f32.mrb[0].mxu0
      %v2151 = vadd.f32 %v2099, %v2150
      %v2152 = vpop.f32.mrb[0].mxu0
      %2153 = vdwg.mxu0
      %v2154 = vmul.f32 %v2148, 0.35355338
      %v2155 = vmul.f32 %v2151, 0.35355338
      %s2156 = scalar_lea.vmem %s867, 48
      %v2157 = vld [vmem:[%s2156] sm:$0xf]
      %v2158 = vld [vmem:[%s2156 + $0x4] sm:$0xf]
      %v2159 = vld [vmem:[%s2156 + $0x8] sm:$0xf]
      %v2160 = vld [vmem:[%s2156 + $0xc] sm:$0xf]
      %s2161 = scalar_lea.vmem %s871, 3
      %v2162 = vld [vmem:[%s2161] sm:$0x1]
      %v2164 = vlaneseq
      %v2165 = vshrl.u32 %v2164, 7
      %v2166 = vsub.s32 0, %v2165
      %v2167 = vrot.slane %v2162, %v2166
      %v2173 = vunpack.c.l.b16 %v2157
      %v2174 = vunpack.c.l.b16 %v2158
      %v2175 = vunpack.c.l.b16 %v2159
      %v2176 = vunpack.c.l.b16 %v2160
      %v2177 = vpack.c.b16 %v2174, %v2173
      %v2178 = vpack.c.b16 %v2176, %v2175
      %2181 = vmatprep.subr.bf16.mxu0 0
      %2182 = vmatpush1.bf16.msra.mxu0 %v2177
      %2183 = vmatprep.subr.bf16.mxu0 0
      %2184 = vmatpush1.bf16.msra.mxu0 %v2178
      %2185 = vmatprep.subr.bf16.mxu0 0
      %2186 = vmatpush1.bf16.msra.mxu0 0
      %2187 = vmatprep.subr.bf16.mxu0 0
      %2188 = vmatpush1.bf16.msra.mxu0 0
      %2189 = vmatprep.subr.bf16.mxu0 0
      %2190 = vmatpush1.bf16.msra.mxu0 0
      %2191 = vmatprep.subr.bf16.mxu0 0
      %2192 = vmatpush1.bf16.msra.mxu0 0
      %2193 = vmatprep.subr.bf16.mxu0 0
      %2194 = vmatpush1.bf16.msra.mxu0 0
      %2195 = vmatprep.subr.bf16.mxu0 0
      %2196 = vmatpush1.bf16.msra.mxu0 0
      %2197 = vmatprep.subr.bf16.mxu0 0
      %2198 = vmatpush1.bf16.msra.mxu0 0
      %2199 = vmatprep.subr.bf16.mxu0 0
      %2200 = vmatpush1.bf16.msra.mxu0 0
      %2201 = vmatprep.subr.bf16.mxu0 0
      %2202 = vmatpush1.bf16.msra.mxu0 0
      %2203 = vmatprep.subr.bf16.mxu0 0
      %2204 = vmatpush1.bf16.msra.mxu0 0
      %2205 = vmatprep.subr.bf16.mxu0 0
      %2206 = vmatpush1.bf16.msra.mxu0 0
      %2207 = vmatprep.subr.bf16.mxu0 0
      %2208 = vmatpush1.bf16.msra.mxu0 0
      %2209 = vmatprep.subr.bf16.mxu0 0
      %2210 = vmatpush1.bf16.msra.mxu0 0
      %2211 = vmatprep.subr.bf16.mxu0 0
      %2212 = vmatpush1.bf16.msra.mxu0 0
      %2213 = vmatprep.mubr.bf16.mxu0 0
      %2214 = vmatmul.mubr.bf16.gmra.mrb[0].mxu0 %v1004
      %v2215 = vpop.f32.mrb[0].mxu0
      %v2216 = vadd.f32 %v2167, %v2215
      %v2217 = vpop.f32.mrb[0].mxu0
      %v2218 = vpop.f32.mrb[0].mxu0
      %v2219 = vadd.f32 %v2167, %v2218
      %v2220 = vpop.f32.mrb[0].mxu0
      %2221 = vdwg.mxu0
      %s2222 = scalar_lea.vmem %s876, 48
      %v2223 = vld [vmem:[%s2222] sm:$0xf]
      %v2224 = vld [vmem:[%s2222 + $0x4] sm:$0xf]
      %v2225 = vld [vmem:[%s2222 + $0x8] sm:$0xf]
      %v2226 = vld [vmem:[%s2222 + $0xc] sm:$0xf]
      %s2227 = scalar_lea.vmem %s880, 3
      %v2228 = vld [vmem:[%s2227] sm:$0x1]
      %v2230 = vlaneseq
      %v2231 = vshrl.u32 %v2230, 7
      %v2232 = vsub.s32 0, %v2231
      %v2233 = vrot.slane %v2228, %v2232
      %v2239 = vunpack.c.l.b16 %v2223
      %v2240 = vunpack.c.l.b16 %v2224
      %v2241 = vunpack.c.l.b16 %v2225
      %v2242 = vunpack.c.l.b16 %v2226
      %v2243 = vpack.c.b16 %v2240, %v2239
      %v2244 = vpack.c.b16 %v2242, %v2241
      %2247 = vmatprep.subr.bf16.mxu0 0
      %2248 = vmatpush1.bf16.msra.mxu0 %v2243
      %2249 = vmatprep.subr.bf16.mxu0 0
      %2250 = vmatpush1.bf16.msra.mxu0 %v2244
      %2251 = vmatprep.subr.bf16.mxu0 0
      %2252 = vmatpush1.bf16.msra.mxu0 0
      %2253 = vmatprep.subr.bf16.mxu0 0
      %2254 = vmatpush1.bf16.msra.mxu0 0
      %2255 = vmatprep.subr.bf16.mxu0 0
      %2256 = vmatpush1.bf16.msra.mxu0 0
      %2257 = vmatprep.subr.bf16.mxu0 0
      %2258 = vmatpush1.bf16.msra.mxu0 0
      %2259 = vmatprep.subr.bf16.mxu0 0
      %2260 = vmatpush1.bf16.msra.mxu0 0
      %2261 = vmatprep.subr.bf16.mxu0 0
      %2262 = vmatpush1.bf16.msra.mxu0 0
      %2263 = vmatprep.subr.bf16.mxu0 0
      %2264 = vmatpush1.bf16.msra.mxu0 0
      %2265 = vmatprep.subr.bf16.mxu0 0
      %2266 = vmatpush1.bf16.msra.mxu0 0
      %2267 = vmatprep.subr.bf16.mxu0 0
      %2268 = vmatpush1.bf16.msra.mxu0 0
      %2269 = vmatprep.subr.bf16.mxu0 0
      %2270 = vmatpush1.bf16.msra.mxu0 0
      %2271 = vmatprep.subr.bf16.mxu0 0
      %2272 = vmatpush1.bf16.msra.mxu0 0
      %2273 = vmatprep.subr.bf16.mxu0 0
      %2274 = vmatpush1.bf16.msra.mxu0 0
      %2275 = vmatprep.subr.bf16.mxu0 0
      %2276 = vmatpush1.bf16.msra.mxu0 0
      %2277 = vmatprep.subr.bf16.mxu0 0
      %2278 = vmatpush1.bf16.msra.mxu0 0
      %2279 = vmatprep.mubr.bf16.mxu0 0
      %2280 = vmatmul.mubr.bf16.gmra.mrb[0].mxu0 %v1004
      %v2281 = vpop.f32.mrb[0].mxu0
      %v2282 = vadd.f32 %v2233, %v2281
      %v2283 = vpop.f32.mrb[0].mxu0
      %v2284 = vpop.f32.mrb[0].mxu0
      %v2285 = vadd.f32 %v2233, %v2284
      %v2286 = vpop.f32.mrb[0].mxu0
      %2287 = vdwg.mxu0
      %v2288 = vpack.c.bf16 %v2155, %v2154
      %v2289 = vpack.c.bf16 %v2219, %v2216
      %v2291 = vsel %vm1179, %v2288, 0
      %v2294 = vsel %vm1179, %v2289, 0
      %2296 = vmatprep.subr.bf16.mxu0 0
      %2297 = vmatpush1.bf16.xpose.msra.mxu0 %v2294
      %2298 = vmatprep.subr.bf16.mxu0 0
      %2299 = vmatpush1.bf16.xpose.msra.mxu0 0
      %2300 = vmatprep.subr.bf16.mxu0 0
      %2301 = vmatpush1.bf16.xpose.msra.mxu0 0
      %2302 = vmatprep.subr.bf16.mxu0 0
      %2303 = vmatpush1.bf16.xpose.msra.mxu0 0
      %2304 = vmatprep.subr.bf16.mxu0 0
      %2305 = vmatpush1.bf16.xpose.msra.mxu0 0
      %2306 = vmatprep.subr.bf16.mxu0 0
      %2307 = vmatpush1.bf16.xpose.msra.mxu0 0
      %2308 = vmatprep.subr.bf16.mxu0 0
      %2309 = vmatpush1.bf16.xpose.msra.mxu0 0
      %2310 = vmatprep.subr.bf16.mxu0 0
      %2311 = vmatpush1.bf16.xpose.msra.mxu0 0
      %2312 = vmatprep.subr.bf16.mxu0 0
      %2313 = vmatpush1.bf16.xpose.msra.mxu0 0
      %2314 = vmatprep.subr.bf16.mxu0 0
      %2315 = vmatpush1.bf16.xpose.msra.mxu0 0
      %2316 = vmatprep.subr.bf16.mxu0 0
      %2317 = vmatpush1.bf16.xpose.msra.mxu0 0
      %2318 = vmatprep.subr.bf16.mxu0 0
      %2319 = vmatpush1.bf16.xpose.msra.mxu0 0
      %2320 = vmatprep.subr.bf16.mxu0 0
      %2321 = vmatpush1.bf16.xpose.msra.mxu0 0
      %2322 = vmatprep.subr.bf16.mxu0 0
      %2323 = vmatpush1.bf16.xpose.msra.mxu0 0
      %2324 = vmatprep.subr.bf16.mxu0 0
      %2325 = vmatpush1.bf16.xpose.msra.mxu0 0
      %2326 = vmatprep.subr.bf16.mxu0 0
      %2327 = vmatpush1.bf16.xpose.msra.mxu0 0
      %2328 = vmatprep.mubr.bf16.mxu0 0
      %2329 = vmatmul.mubr.bf16.gmra.mrb[0].mxu0 %v2291
      %v2330 = vpop.f32.mrb[0].mxu0
      %v2331 = vadd.f32 0.0, %v2330
      %v2332 = vpop.f32.mrb[0].mxu0
      %v2333 = vpop.f32.mrb[0].mxu0
      %v2334 = vadd.f32 0.0, %v2333
      %v2335 = vpop.f32.mrb[0].mxu0
      %2336 = vdwg.mxu0
      %v2337 = vsel %vm978, %v2331, -1e+09
      %v2338 = vsel %vm979, %v2334, -1e+09
      %v2339 = vsel %vm1229, %v2337, -inf
      %2340 = vmax.xlane.f32.xlu0 %v2339
      %v2341 = vpop.xlane.xlu0 %2340
      %v2342 = vsel %vm1229, %v2338, -inf
      %2343 = vmax.xlane.f32.xlu0 %v2342
      %v2344 = vpop.xlane.xlu0 %2343
      %v2345 = vsub.f32 %v2337, %v2341
      %v2346 = vsub.f32 %v2338, %v2344
      %v2347 = vmul.f32 %v2345, 1.442695
      %v2348 = vpow.pop %v2347
      %v2349 = vmul.f32 %v2346, 1.442695
      %v2350 = vpow.pop %v2349
      %v2351 = vsel %vm1229, %v2348, 0.0
      %2352 = vadd.xlane.f32.xlu0 %v2351
      %v2353 = vpop.xlane.xlu0 %2352
      %v2354 = vsel %vm1229, %v2350, 0.0
      %2355 = vadd.xlane.f32.xlu0 %v2354
      %v2356 = vpop.xlane.xlu0 %2355
      %v2357 = vrcp.pop %v2353
      %v2358 = vrcp.pop %v2356
      %v2359 = vmul.f32 %v2348, %v2357
      %v2360 = vmul.f32 %v2350, %v2358
      %v2361 = vpack.c.bf16 %v2360, %v2359
      %v2362 = vpack.c.bf16 %v2285, %v2282
      %v2364 = vsel %vm1229, %v2361, 0
      %2366 = vmatprep.subr.bf16.mxu0 0
      %2367 = vmatpush1.bf16.msra.mxu0 %v2362
      %2368 = vmatprep.subr.bf16.mxu0 0
      %2369 = vmatpush1.bf16.msra.mxu0 0
      %2370 = vmatprep.subr.bf16.mxu0 0
      %2371 = vmatpush1.bf16.msra.mxu0 0
      %2372 = vmatprep.subr.bf16.mxu0 0
      %2373 = vmatpush1.bf16.msra.mxu0 0
      %2374 = vmatprep.subr.bf16.mxu0 0
      %2375 = vmatpush1.bf16.msra.mxu0 0
      %2376 = vmatprep.subr.bf16.mxu0 0
      %2377 = vmatpush1.bf16.msra.mxu0 0
      %2378 = vmatprep.subr.bf16.mxu0 0
      %2379 = vmatpush1.bf16.msra.mxu0 0
      %2380 = vmatprep.subr.bf16.mxu0 0
      %2381 = vmatpush1.bf16.msra.mxu0 0
      %2382 = vmatprep.subr.bf16.mxu0 0
      %2383 = vmatpush1.bf16.msra.mxu0 0
      %2384 = vmatprep.subr.bf16.mxu0 0
      %2385 = vmatpush1.bf16.msra.mxu0 0
      %2386 = vmatprep.subr.bf16.mxu0 0
      %2387 = vmatpush1.bf16.msra.mxu0 0
      %2388 = vmatprep.subr.bf16.mxu0 0
      %2389 = vmatpush1.bf16.msra.mxu0 0
      %2390 = vmatprep.subr.bf16.mxu0 0
      %2391 = vmatpush1.bf16.msra.mxu0 0
      %2392 = vmatprep.subr.bf16.mxu0 0
      %2393 = vmatpush1.bf16.msra.mxu0 0
      %2394 = vmatprep.subr.bf16.mxu0 0
      %2395 = vmatpush1.bf16.msra.mxu0 0
      %2396 = vmatprep.subr.bf16.mxu0 0
      %2397 = vmatpush1.bf16.msra.mxu0 0
      %2398 = vmatprep.mubr.bf16.mxu0 0
      %2399 = vmatmul.mubr.bf16.gmra.mrb[0].mxu0 %v2364
      %v2400 = vpop.f32.mrb[0].mxu0
      %v2401 = vadd.f32 0.0, %v2400
      %v2402 = vpop.f32.mrb[0].mxu0
      %v2403 = vpop.f32.mrb[0].mxu0
      %v2404 = vadd.f32 0.0, %v2403
      %v2405 = vpop.f32.mrb[0].mxu0
      %2406 = vdwg.mxu0
      %v2407 = vpack.c.bf16 %v2404, %v2401
      %s2408 = scalar_lea.vmem %s885, 12
      %v2409 = vld [vmem:[%s2408] sm:$0xf]
      %v2411 = vsel %vm1179, %v2407, 0
      %v2414 = vsel %vm1625, %v2409, 0
      %2416 = vmatprep.subr.bf16.mxu0 0
      %2417 = vmatpush1.bf16.msra.mxu0 %v2414
      %2418 = vmatprep.subr.bf16.mxu0 0
      %2419 = vmatpush1.bf16.msra.mxu0 0
      %2420 = vmatprep.subr.bf16.mxu0 0
      %2421 = vmatpush1.bf16.msra.mxu0 0
      %2422 = vmatprep.subr.bf16.mxu0 0
      %2423 = vmatpush1.bf16.msra.mxu0 0
      %2424 = vmatprep.subr.bf16.mxu0 0
      %2425 = vmatpush1.bf16.msra.mxu0 0
      %2426 = vmatprep.subr.bf16.mxu0 0
      %2427 = vmatpush1.bf16.msra.mxu0 0
      %2428 = vmatprep.subr.bf16.mxu0 0
      %2429 = vmatpush1.bf16.msra.mxu0 0
      %2430 = vmatprep.subr.bf16.mxu0 0
      %2431 = vmatpush1.bf16.msra.mxu0 0
      %2432 = vmatprep.subr.bf16.mxu0 0
      %2433 = vmatpush1.bf16.msra.mxu0 0
      %2434 = vmatprep.subr.bf16.mxu0 0
      %2435 = vmatpush1.bf16.msra.mxu0 0
      %2436 = vmatprep.subr.bf16.mxu0 0
      %2437 = vmatpush1.bf16.msra.mxu0 0
      %2438 = vmatprep.subr.bf16.mxu0 0
      %2439 = vmatpush1.bf16.msra.mxu0 0
      %2440 = vmatprep.subr.bf16.mxu0 0
      %2441 = vmatpush1.bf16.msra.mxu0 0
      %2442 = vmatprep.subr.bf16.mxu0 0
      %2443 = vmatpush1.bf16.msra.mxu0 0
      %2444 = vmatprep.subr.bf16.mxu0 0
      %2445 = vmatpush1.bf16.msra.mxu0 0
      %2446 = vmatprep.subr.bf16.mxu0 0
      %2447 = vmatpush1.bf16.msra.mxu0 0
      %2448 = vmatprep.mubr.bf16.mxu0 0
      %2449 = vmatmul.mubr.bf16.gmra.mrb[0].mxu0 %v2411
      %v2450 = vpop.f32.mrb[0].mxu0
      %v2451 = vadd.f32 0.0, %v2450
      %v2452 = vpop.f32.mrb[0].mxu0
      %v2453 = vpop.f32.mrb[0].mxu0
      %v2454 = vadd.f32 0.0, %v2453
      %v2455 = vpop.f32.mrb[0].mxu0
      %2456 = vdwg.mxu0
      %v2457 = vadd.f32 %v2086, %v2451
      %v2458 = vadd.f32 %v2087, %v2454
      %v2459 = vadd.f32 %v924, %v2457
      %v2460 = vadd.f32 %v925, %v2458
      %v2461 = vld [vmem:[%s888] sm:$0x1]
      %v2463 = vlaneseq
      %v2464 = vshrl.u32 %v2463, 7
      %v2465 = vsub.s32 0, %v2464
      %v2466 = vrot.slane %v2461, %v2465
      %v2468 = vadd.f32 %v2459, %v2466
      %v2469 = vadd.f32 %v2460, %v2466
      %v2470 = vld [vmem:[%s891] sm:$0x1]
      %v2471 = vld [vmem:[%s894] sm:$0x1]
      %v2472 = vsel %vm928, %v2468, 0.0
      %2473 = vadd.xlane.f32.xlu0 %v2472
      %v2474 = vpop.xlane.xlu0 %2473
      %v2475 = vsel %vm928, %v2469, 0.0
      %2476 = vadd.xlane.f32.xlu0 %v2475
      %v2477 = vpop.xlane.xlu0 %2476
      %v2478 = vmul.f32 %v2474, %v935
      %v2479 = vmul.f32 %v2477, %v935
      %v2480 = vsub.f32 %v2468, %v2478
      %v2481 = vsub.f32 %v2469, %v2479
      %v2482 = vmul.f32 %v2480, %v2480
      %v2483 = vmul.f32 %v2481, %v2481
      %v2484 = vsel %vm928, %v2482, 0.0
      %2485 = vadd.xlane.f32.xlu0 %v2484
      %v2486 = vpop.xlane.xlu0 %2485
      %v2487 = vsel %vm928, %v2483, 0.0
      %2488 = vadd.xlane.f32.xlu0 %v2487
      %v2489 = vpop.xlane.xlu0 %2488
      %v2490 = vmul.f32 %v2486, %v935
      %v2491 = vmul.f32 %v2489, %v935
      %v2492 = vadd.f32 %v2490, 1e-05
      %v2493 = vadd.f32 %v2491, 1e-05
      %v2494 = vrsqrt.pop %v2492
      %v2495 = vrsqrt.pop %v2493
      %v2496 = vmul.f32 %v2480, %v2494
      %v2497 = vmul.f32 %v2481, %v2495
      %v2499 = vlaneseq
      %v2500 = vshrl.u32 %v2499, 7
      %v2501 = vsub.s32 0, %v2500
      %v2502 = vrot.slane %v2470, %v2501
      %v2504 = vmul.f32 %v2496, %v2502
      %v2505 = vmul.f32 %v2497, %v2502
      %v2507 = vlaneseq
      %v2508 = vshrl.u32 %v2507, 7
      %v2509 = vsub.s32 0, %v2508
      %v2510 = vrot.slane %v2471, %v2509
      %v2512 = vadd.f32 %v2504, %v2510
      %v2513 = vadd.f32 %v2505, %v2510
      %v2514 = vpack.c.bf16 %v2513, %v2512
      %v2515 = vld [vmem:[%s899] sm:$0xf]
      %v2516 = vld [vmem:[%s899 + $0x4] sm:$0xf]
      %v2517 = vld [vmem:[%s899 + $0x8] sm:$0xf]
      %v2518 = vld [vmem:[%s899 + $0xc] sm:$0xf]
      %v2519 = vld [vmem:[%s902] sm:$0x1]
      %v2521 = vlaneseq
      %v2522 = vshrl.u32 %v2521, 7
      %v2523 = vsub.s32 0, %v2522
      %v2524 = vrot.slane %v2519, %v2523
      %v2530 = vunpack.c.l.b16 %v2515
      %v2531 = vunpack.c.l.b16 %v2516
      %v2532 = vunpack.c.l.b16 %v2517
      %v2533 = vunpack.c.l.b16 %v2518
      %v2534 = vpack.c.b16 %v2531, %v2530
      %v2535 = vpack.c.b16 %v2533, %v2532
      %v2539 = vsel %vm928, %v2514, 0
      %2541 = vmatprep.subr.bf16.mxu0 0
      %2542 = vmatpush1.bf16.msra.mxu0 %v2534
      %2543 = vmatprep.subr.bf16.mxu0 0
      %2544 = vmatpush1.bf16.msra.mxu0 %v2535
      %2545 = vmatprep.subr.bf16.mxu0 0
      %2546 = vmatpush1.bf16.msra.mxu0 0
      %2547 = vmatprep.subr.bf16.mxu0 0
      %2548 = vmatpush1.bf16.msra.mxu0 0
      %2549 = vmatprep.subr.bf16.mxu0 0
      %2550 = vmatpush1.bf16.msra.mxu0 0
      %2551 = vmatprep.subr.bf16.mxu0 0
      %2552 = vmatpush1.bf16.msra.mxu0 0
      %2553 = vmatprep.subr.bf16.mxu0 0
      %2554 = vmatpush1.bf16.msra.mxu0 0
      %2555 = vmatprep.subr.bf16.mxu0 0
      %2556 = vmatpush1.bf16.msra.mxu0 0
      %2557 = vmatprep.subr.bf16.mxu0 0
      %2558 = vmatpush1.bf16.msra.mxu0 0
      %2559 = vmatprep.subr.bf16.mxu0 0
      %2560 = vmatpush1.bf16.msra.mxu0 0
      %2561 = vmatprep.subr.bf16.mxu0 0
      %2562 = vmatpush1.bf16.msra.mxu0 0
      %2563 = vmatprep.subr.bf16.mxu0 0
      %2564 = vmatpush1.bf16.msra.mxu0 0
      %2565 = vmatprep.subr.bf16.mxu0 0
      %2566 = vmatpush1.bf16.msra.mxu0 0
      %2567 = vmatprep.subr.bf16.mxu0 0
      %2568 = vmatpush1.bf16.msra.mxu0 0
      %2569 = vmatprep.subr.bf16.mxu0 0
      %2570 = vmatpush1.bf16.msra.mxu0 0
      %2571 = vmatprep.subr.bf16.mxu0 0
      %2572 = vmatpush1.bf16.msra.mxu0 0
      %2573 = vmatprep.mubr.bf16.mxu0 0
      %2574 = vmatmul.mubr.bf16.gmra.mrb[0].mxu0 %v2539
      %v2575 = vpop.f32.mrb[0].mxu0
      %v2576 = vadd.f32 %v2524, %v2575
      %v2577 = vpop.f32.mrb[0].mxu0
      %v2578 = vpop.f32.mrb[0].mxu0
      %v2579 = vadd.f32 %v2524, %v2578
      %v2580 = vpop.f32.mrb[0].mxu0
      %2581 = vdwg.mxu0
      %v2582 = vmul.f32 %v2576, 1.702
      %v2583 = vmul.f32 %v2579, 1.702
      %v2584 = vxor.u32 %v2582, 2147483648
      %v2585 = vxor.u32 %v2583, 2147483648
      %v2586 = vmul.f32 %v2584, 1.442695
      %v2587 = vpow.pop %v2586
      %v2588 = vmul.f32 %v2585, 1.442695
      %v2589 = vpow.pop %v2588
      %v2590 = vadd.f32 %v2587, 1.0
      %v2591 = vadd.f32 %v2589, 1.0
      %v2592 = vrcp.pop %v2590
      %v2593 = vmul.f32 1.0, %v2592
      %v2594 = vrcp.pop %v2591
      %v2595 = vmul.f32 1.0, %v2594
      %v2596 = vmul.f32 %v2576, %v2593
      %v2597 = vmul.f32 %v2579, %v2595
      %v2598 = vpack.c.bf16 %v2597, %v2596
      %v2599 = vld [vmem:[%s907] sm:$0xf]
      %v2600 = vld [vmem:[%s907 + $0x4] sm:$0xf]
      %v2601 = vld [vmem:[%s907 + $0x8] sm:$0xf]
      %v2602 = vld [vmem:[%s907 + $0xc] sm:$0xf]
      %v2603 = vld [vmem:[%s907 + $0x10] sm:$0xf]
      %v2604 = vld [vmem:[%s907 + $0x14] sm:$0xf]
      %v2605 = vld [vmem:[%s907 + $0x18] sm:$0xf]
      %v2606 = vld [vmem:[%s907 + $0x1c] sm:$0xf]
      %v2607 = vld [vmem:[%s907 + $0x20] sm:$0xf]
      %v2608 = vld [vmem:[%s907 + $0x24] sm:$0xf]
      %v2609 = vld [vmem:[%s907 + $0x28] sm:$0xf]
      %v2610 = vld [vmem:[%s907 + $0x2c] sm:$0xf]
      %v2611 = vld [vmem:[%s907 + $0x30] sm:$0xf]
      %v2612 = vld [vmem:[%s907 + $0x34] sm:$0xf]
      %v2613 = vld [vmem:[%s907 + $0x38] sm:$0xf]
      %v2614 = vld [vmem:[%s907 + $0x3c] sm:$0xf]
      %v2615 = vld [vmem:[%s910] sm:$0x1]
      %v2617 = vlaneseq
      %v2618 = vshrl.u32 %v2617, 7
      %v2619 = vsub.s32 0, %v2618
      %v2620 = vrot.slane %v2615, %v2619
      %v2638 = vunpack.c.l.b16 %v2599
      %v2639 = vunpack.c.l.b16 %v2600
      %v2640 = vunpack.c.l.b16 %v2601
      %v2641 = vunpack.c.l.b16 %v2602
      %v2642 = vunpack.c.l.b16 %v2603
      %v2643 = vunpack.c.l.b16 %v2604
      %v2644 = vunpack.c.l.b16 %v2605
      %v2645 = vunpack.c.l.b16 %v2606
      %v2646 = vunpack.c.l.b16 %v2607
      %v2647 = vunpack.c.l.b16 %v2608
      %v2648 = vunpack.c.l.b16 %v2609
      %v2649 = vunpack.c.l.b16 %v2610
      %v2650 = vunpack.c.l.b16 %v2611
      %v2651 = vunpack.c.l.b16 %v2612
      %v2652 = vunpack.c.l.b16 %v2613
      %v2653 = vunpack.c.l.b16 %v2614
      %v2654 = vpack.c.b16 %v2639, %v2638
      %v2655 = vpack.c.b16 %v2641, %v2640
      %v2656 = vpack.c.b16 %v2643, %v2642
      %v2657 = vpack.c.b16 %v2645, %v2644
      %v2658 = vpack.c.b16 %v2647, %v2646
      %v2659 = vpack.c.b16 %v2649, %v2648
      %v2660 = vpack.c.b16 %v2651, %v2650
      %v2661 = vpack.c.b16 %v2653, %v2652
      %2670 = vmatprep.subr.bf16.mxu0 0
      %2671 = vmatpush1.bf16.msra.mxu0 %v2654
      %2672 = vmatprep.subr.bf16.mxu0 0
      %2673 = vmatpush1.bf16.msra.mxu0 %v2655
      %2674 = vmatprep.subr.bf16.mxu0 0
      %2675 = vmatpush1.bf16.msra.mxu0 %v2656
      %2676 = vmatprep.subr.bf16.mxu0 0
      %2677 = vmatpush1.bf16.msra.mxu0 %v2657
      %2678 = vmatprep.subr.bf16.mxu0 0
      %2679 = vmatpush1.bf16.msra.mxu0 %v2658
      %2680 = vmatprep.subr.bf16.mxu0 0
      %2681 = vmatpush1.bf16.msra.mxu0 %v2659
      %2682 = vmatprep.subr.bf16.mxu0 0
      %2683 = vmatpush1.bf16.msra.mxu0 %v2660
      %2684 = vmatprep.subr.bf16.mxu0 0
      %2685 = vmatpush1.bf16.msra.mxu0 %v2661
      %2686 = vmatprep.subr.bf16.mxu0 0
      %2687 = vmatpush1.bf16.msra.mxu0 0
      %2688 = vmatprep.subr.bf16.mxu0 0
      %2689 = vmatpush1.bf16.msra.mxu0 0
      %2690 = vmatprep.subr.bf16.mxu0 0
      %2691 = vmatpush1.bf16.msra.mxu0 0
      %2692 = vmatprep.subr.bf16.mxu0 0
      %2693 = vmatpush1.bf16.msra.mxu0 0
      %2694 = vmatprep.subr.bf16.mxu0 0
      %2695 = vmatpush1.bf16.msra.mxu0 0
      %2696 = vmatprep.subr.bf16.mxu0 0
      %2697 = vmatpush1.bf16.msra.mxu0 0
      %2698 = vmatprep.subr.bf16.mxu0 0
      %2699 = vmatpush1.bf16.msra.mxu0 0
      %2700 = vmatprep.subr.bf16.mxu0 0
      %2701 = vmatpush1.bf16.msra.mxu0 0
      %2702 = vmatprep.mubr.bf16.mxu0 0
      %2703 = vmatmul.mubr.bf16.gmra.mrb[0].mxu0 %v2598
      %v2704 = vpop.f32.mrb[0].mxu0
      %v2705 = vadd.f32 %v2620, %v2704
      %v2706 = vpop.f32.mrb[0].mxu0
      %v2707 = vpop.f32.mrb[0].mxu0
      %v2708 = vadd.f32 %v2620, %v2707
      %v2709 = vpop.f32.mrb[0].mxu0
      %2710 = vdwg.mxu0
      %v2711 = vadd.f32 %v2468, %v2705
      %v2712 = vadd.f32 %v2469, %v2708
      %2713 = vst.msk [vmem:[#allocation2] sm:$0xff] %vm928, %v2711
      %2714 = vst.msk [vmem:[#allocation2 + $0x8] sm:$0xff] %vm928, %v2712
      %p2715 = scmp.eq.s32.totalorder %s43, 1
      // Predicated region
      $region105: #{textual_encoder_forward.1} parent=99 // pred_check
        %p2716 = pneg %p2715
      $region106: #{textual_encoder_forward.1} parent=99 // pred_check_branch
        %2718 = sbr.rel (%p2716) target = $region108
      $region107: #{textual_encoder_forward.1} parent=99 // pred_region
        %v2719 = vld [vmem:[%s18] sm:$0x1]
        %v2720 = vld [vmem:[%s19] sm:$0x1]
        %v2721 = vsel %vm928, %v2711, 0.0
        %2722 = vadd.xlane.f32.xlu0 %v2721
        %v2723 = vpop.xlane.xlu0 %2722
        %v2724 = vsel %vm928, %v2712, 0.0
        %2725 = vadd.xlane.f32.xlu0 %v2724
        %v2726 = vpop.xlane.xlu0 %2725
        %v2727 = vmul.f32 %v2723, %v935
        %v2728 = vmul.f32 %v2726, %v935
        %v2729 = vsub.f32 %v2711, %v2727
        %v2730 = vsub.f32 %v2712, %v2728
        %v2731 = vmul.f32 %v2729, %v2729
        %v2732 = vmul.f32 %v2730, %v2730
        %v2733 = vsel %vm928, %v2731, 0.0
        %2734 = vadd.xlane.f32.xlu0 %v2733
        %v2735 = vpop.xlane.xlu0 %2734
        %v2736 = vsel %vm928, %v2732, 0.0
        %2737 = vadd.xlane.f32.xlu0 %v2736
        %v2738 = vpop.xlane.xlu0 %2737
        %v2739 = vmul.f32 %v2735, %v935
        %v2740 = vmul.f32 %v2738, %v935
        %v2741 = vadd.f32 %v2739, 1e-05
        %v2742 = vadd.f32 %v2740, 1e-05
        %v2743 = vrsqrt.pop %v2741
        %v2744 = vrsqrt.pop %v2742
        %v2745 = vmul.f32 %v2729, %v2743
        %v2746 = vmul.f32 %v2730, %v2744
        %v2748 = vlaneseq
        %v2749 = vshrl.u32 %v2748, 7
        %v2750 = vsub.s32 0, %v2749
        %v2751 = vrot.slane %v2719, %v2750
        %v2753 = vmul.f32 %v2745, %v2751
        %v2754 = vmul.f32 %v2746, %v2751
        %v2756 = vlaneseq
        %v2757 = vshrl.u32 %v2756, 7
        %v2758 = vsub.s32 0, %v2757
        %v2759 = vrot.slane %v2720, %v2758
        %v2761 = vadd.f32 %v2753, %v2759
        %v2762 = vadd.f32 %v2754, %v2759
        %s2763 = sld [smem:[#allocation4 + %s42]]
        %v2764 = vstv %s2763
        %vm2765 = vcmp.eq.s32.totalorder %v974, %v2764
        %vm2766 = vcmp.eq.s32.totalorder %v975, %v2764
        %v2767 = vsel %vm2765, 1, 0
        %v2768 = vsel %vm2766, 1, 0
        %vm2769 = vcmp.eq.s32.totalorder %v2767, 1
        %vm2770 = vcmp.eq.s32.totalorder %v2768, 1
        %v2771 = vsel %vm2769, %v2761, 0.0
        %v2772 = vsel %vm2770, %v2762, 0.0
        %v2773 = vsel %vm928, %v2771, 0.0
        %v2774 = vsel %vm928, %v2772, 0.0
        %v2775 = vadd.f32 %v2773, %v2774
        %v2776 = vrot.slane %v2775, 4
        %v2777 = vadd.f32 %v2775, %v2776
        %v2778 = vrot.slane %v2777, 2
        %v2779 = vadd.f32 %v2777, %v2778
        %v2780 = vrot.slane %v2779, 1
        %v2781 = vadd.f32 %v2779, %v2780
        %v2782 = vpack.c.bf16 %v2781, %v2781
        %v2783 = vld [vmem:[%s20] sm:$0xf]
        %v2784 = vld [vmem:[%s20 + $0x4] sm:$0xf]
        %v2785 = vld [vmem:[%s20 + $0x8] sm:$0xf]
        %v2786 = vld [vmem:[%s20 + $0xc] sm:$0xf]
        %v2791 = vunpack.c.l.b16 %v2783
        %v2792 = vunpack.c.l.b16 %v2784
        %v2793 = vunpack.c.l.b16 %v2785
        %v2794 = vunpack.c.l.b16 %v2786
        %v2795 = vpack.c.b16 %v2792, %v2791
        %v2796 = vpack.c.b16 %v2794, %v2793
        %v2800 = vsel %vm928, %v2782, 0
        %2802 = vmatprep.subr.bf16.mxu0 0
        %2803 = vmatpush1.bf16.msra.mxu0 %v2795
        %2804 = vmatprep.subr.bf16.mxu0 0
        %2805 = vmatpush1.bf16.msra.mxu0 %v2796
        %2806 = vmatprep.subr.bf16.mxu0 0
        %2807 = vmatpush1.bf16.msra.mxu0 0
        %2808 = vmatprep.subr.bf16.mxu0 0
        %2809 = vmatpush1.bf16.msra.mxu0 0
        %2810 = vmatprep.subr.bf16.mxu0 0
        %2811 = vmatpush1.bf16.msra.mxu0 0
        %2812 = vmatprep.subr.bf16.mxu0 0
        %2813 = vmatpush1.bf16.msra.mxu0 0
        %2814 = vmatprep.subr.bf16.mxu0 0
        %2815 = vmatpush1.bf16.msra.mxu0 0
        %2816 = vmatprep.subr.bf16.mxu0 0
        %2817 = vmatpush1.bf16.msra.mxu0 0
        %2818 = vmatprep.subr.bf16.mxu0 0
        %2819 = vmatpush1.bf16.msra.mxu0 0
        %2820 = vmatprep.subr.bf16.mxu0 0
        %2821 = vmatpush1.bf16.msra.mxu0 0
        %2822 = vmatprep.subr.bf16.mxu0 0
        %2823 = vmatpush1.bf16.msra.mxu0 0
        %2824 = vmatprep.subr.bf16.mxu0 0
        %2825 = vmatpush1.bf16.msra.mxu0 0
        %2826 = vmatprep.subr.bf16.mxu0 0
        %2827 = vmatpush1.bf16.msra.mxu0 0
        %2828 = vmatprep.subr.bf16.mxu0 0
        %2829 = vmatpush1.bf16.msra.mxu0 0
        %2830 = vmatprep.subr.bf16.mxu0 0
        %2831 = vmatpush1.bf16.msra.mxu0 0
        %2832 = vmatprep.subr.bf16.mxu0 0
        %2833 = vmatpush1.bf16.msra.mxu0 0
        %2834 = vmatprep.mubr.bf16.mxu0 0
        %2835 = vmatmul.mubr.bf16.gmra.mrb[0].mxu0 %v2800
        %v2836 = vpop.f32.mrb[0].mxu0
        %v2837 = vadd.f32 0.0, %v2836
        %v2838 = vpop.f32.mrb[0].mxu0
        %v2839 = vpop.f32.mrb[0].mxu0
        %v2840 = vpop.f32.mrb[0].mxu0
        %2841 = vdwg.mxu0
        %vm2842 = vcmask 253952
        %2843 = vst.msk [vmem:[%s913] sm:$0x1] %vm2842, %v2837
      $region108: #{textual_encoder_forward.1} parent=99 // pred_fallthru
        _
      %p2844 = scmp.lt.s32.totalorder %s42, 1
      %s2845 = scalar_select %p2844, %s42, 1
      %s2846 = scalar_lea.vmem %s21, %s2845
      // Predicated region
      $region109: #{textual_encoder_forward.1} parent=99 // pred_check
        %p2847 = pneg %p573
      $region110: #{textual_encoder_forward.1} parent=99 // pred_check_branch
        %2849 = sbr.rel (%p2847) target = $region112
      $region111: #{textual_encoder_forward.1} parent=99 // pred_region
        _
      $region112: #{textual_encoder_forward.1} parent=99 // pred_fallthru
        _
    $region100: #{textual_encoder_forward.1} parent=5 // pred_fallthru
      _
    %p2850 = scmp.le.s32.totalorder 2, %s33
    // Predicated region
    $region113: #{textual_encoder_forward.1} parent=5 // pred_check
      %p2851 = pneg %p2850
    $region114: #{textual_encoder_forward.1} parent=5 // pred_check_branch
      %2853 = sbr.rel (%p2851) target = $region116
    $region115: #{textual_encoder_forward.1} parent=5 // pred_region
      %s2854 = ssub.s32 %s33, 2
      // Predicated region
      $region117: #{textual_encoder_forward.1} parent=115 // pred_check
        %p2855 = pneg %p579
      $region118: #{textual_encoder_forward.1} parent=115 // pred_check_branch
        %2857 = sbr.rel (%p2855) target = $region120
      $region119: #{textual_encoder_forward.1} parent=115 // pred_region
        %p2858 = scmp.lt.s32.totalorder %s44, 1
        %s2859 = scalar_select %p2858, %s44, 1
        %s2860 = scalar_lea.vmem %s21, %s2859
      $region120: #{textual_encoder_forward.1} parent=115 // pred_fallthru
        _
    $region116: #{textual_encoder_forward.1} parent=5 // pred_fallthru
      _
  $region6: #{textual_encoder_forward.1} parent=0 // loop_footer
    %s37 = sadd.s32 1, %s33
  $region7: #{textual_encoder_forward.1} parent=0 // loop_footer_branch
    %32 = sbr.rel target = $region3
  $region8: #{textual_encoder_forward.1} parent=0 // loop_exit
    _

</llo_original>
